<compile_context>
chip_gen: v6e
topology: v6e:2x2x1
jax: 0.10.0
libtpu: 0.0.40
codegen_flags: <defaults>
</compile_context>

<pallas_src>
import functools
import numpy as np
import jax
import jax.numpy as jnp
from jax.experimental import pallas as pl
from jax.experimental.pallas import tpu as pltpu  # noqa: F401

PRIMITIVES = [
    'none', 'max_pool_3x3', 'avg_pool_3x3', 'skip_connect',
    'sep_conv_3x3', 'sep_conv_5x5', 'dil_conv_3x3', 'dil_conv_5x5',
]

BN_EPS = 1e-5


def _ceil_to(x, m):
    return ((x + m - 1) // m) * m


# ---------------------------------------------------------------------------
# Kernel 1: conv-as-matmul.
#   W: (Coutp, Kp)      rows = output channels, lanes = contraction (Cin*k*k)
#   A: (Kp, Lp)         rows = contraction, lanes = (batch, spatial) columns
#   O = W @ relu?(A), then optional per-row training-mode BatchNorm over the
#   L valid columns (== per-channel BN over batch x spatial).
# ---------------------------------------------------------------------------
def _conv_bn_kernel(w_ref, a_ref, o_ref, *, relu, bn, l_valid, eps):
    a = a_ref[...]
    if relu:
        a = jnp.maximum(a, 0.0)
    y = jnp.dot(w_ref[...], a, preferred_element_type=jnp.float32)
    if bn:
        lanes = y.shape[-1]
        if l_valid < lanes:
            lane = jax.lax.broadcasted_iota(jnp.int32, y.shape, 1)
            valid = lane < l_valid
            ysum = jnp.where(valid, y, 0.0)
        else:
            valid = None
            ysum = y
        inv_l = 1.0 / l_valid
        mean = jnp.sum(ysum, axis=1, keepdims=True) * inv_l
        d = y - mean
        if valid is not None:
            d = jnp.where(valid, d, 0.0)
        var = jnp.sum(d * d, axis=1, keepdims=True) * inv_l
        y = (y - mean) * jax.lax.rsqrt(var + eps)
    o_ref[...] = y


def conv_matmul_bn(wm, a, *, relu, bn, eps=BN_EPS):
    """wm: (Cout, Kd) f32, a: (Kd, L) f32 with columns = (batch, spatial).
    Returns (Cout, L) = wm @ relu?(a) with optional fused per-channel BN."""
    Cout, Kd = wm.shape
    Kd2, L = a.shape
    assert Kd2 == Kd
    Coutp = _ceil_to(max(Cout, 8), 8)
    Kp = _ceil_to(max(Kd, 128), 128)       # lane-aligned contraction
    Lp = _ceil_to(max(L, 128), 128)        # lane-dense output columns
    wp = jnp.pad(wm.astype(jnp.float32), ((0, Coutp - Cout), (0, Kp - Kd)))
    ap = jnp.pad(a.astype(jnp.float32), ((0, Kp - Kd), (0, Lp - L)))
    out = pl.pallas_call(
        functools.partial(_conv_bn_kernel, relu=relu, bn=bn, l_valid=L, eps=eps),
        out_shape=jax.ShapeDtypeStruct((Coutp, Lp), jnp.float32),
    )(wp, ap)
    return out[:Cout, :L]


# ---------------------------------------------------------------------------
# Kernel 2: 3x3 max/avg pooling + fused training-mode BatchNorm.
#   taps: (9, Cp, Lp)  channels on sublanes, (batch, spatial) on lanes.
# ---------------------------------------------------------------------------
def _pool_bn_kernel(x_ref, inv_ref, o_ref, *, kk, is_max, l_valid, eps):
    acc = x_ref[0]
    for k in range(1, kk):
        acc = jnp.maximum(acc, x_ref[k]) if is_max else acc + x_ref[k]
    if not is_max:
        acc = acc * inv_ref[...]           # precomputed reciprocal counts
    lanes = acc.shape[-1]
    if l_valid < lanes:
        lane = jax.lax.broadcasted_iota(jnp.int32, acc.shape, 1)
        valid = lane < l_valid
        asum = jnp.where(valid, acc, 0.0)
    else:
        valid = None
        asum = acc
    inv_l = 1.0 / l_valid
    mean = jnp.sum(asum, axis=1, keepdims=True) * inv_l
    d = acc - mean
    if valid is not None:
        d = jnp.where(valid, d, 0.0)
    var = jnp.sum(d * d, axis=1, keepdims=True) * inv_l
    o_ref[...] = (acc - mean) * jax.lax.rsqrt(var + eps)


def pool3x3_bn(x, *, stride, mode):
    """MaxPool2d/AvgPool2d(3, stride, padding=1) + BatchNorm2d(affine=False)."""
    N, C, H, W = x.shape
    pad_val = -1e30 if mode == 'max' else 0.0
    taps, OH, OW = _extract_taps(x, 3, stride, 1, 1, pad_val)   # (9,N,C,OH,OW)
    P = OH * OW
    L = N * P
    Lp = _ceil_to(max(L, 128), 128)
    Cp = _ceil_to(max(C, 8), 8)
    xt = jnp.transpose(taps, (0, 2, 1, 3, 4)).reshape(9, C, L)
    xt = jnp.pad(xt, ((0, 0), (0, Cp - C), (0, Lp - L)))
    if mode == 'avg':
        # count_include_pad=False (DARTS): per-position reciprocal counts.
        rows = np.array([sum(1 for kh in range(3) if 0 <= oh * stride + kh - 1 < H)
                         for oh in range(OH)], dtype=np.float32)
        cols = np.array([sum(1 for kw in range(3) if 0 <= ow * stride + kw - 1 < W)
                         for ow in range(OW)], dtype=np.float32)
        inv = np.ones((Lp,), dtype=np.float32)
        inv[:L] = np.tile(1.0 / np.outer(rows, cols).reshape(-1), N)
        inv_cnt = jnp.asarray(inv).reshape(1, Lp)
    else:
        inv_cnt = jnp.ones((1, Lp), jnp.float32)
    out = pl.pallas_call(
        functools.partial(_pool_bn_kernel, kk=9, is_max=(mode == 'max'),
                          l_valid=L, eps=BN_EPS),
        out_shape=jax.ShapeDtypeStruct((Cp, Lp), jnp.float32),
    )(xt, inv_cnt)
    return jnp.transpose(out[:C, :L].reshape(C, N, OH, OW), (1, 0, 2, 3))


# ------------------------------- glue helpers -------------------------------

def _extract_taps(x, k, stride, padding, dilation, pad_value):
    """x: (N,C,H,W) -> stacked shifted windows (k*k, N, C, OH, OW)."""
    N, C, H, W = x.shape
    OH = (H + 2 * padding - dilation * (k - 1) - 1) // stride + 1
    OW = (W + 2 * padding - dilation * (k - 1) - 1) // stride + 1
    xp = jnp.pad(x, ((0, 0), (0, 0), (padding, padding), (padding, padding)),
                 constant_values=pad_value)
    taps = []
    for kh in range(k):
        for kw in range(k):
            h0, w0 = kh * dilation, kw * dilation
            taps.append(xp[:, :, h0:h0 + (OH - 1) * stride + 1:stride,
                               w0:w0 + (OW - 1) * stride + 1:stride])
    return jnp.stack(taps, axis=0), OH, OW


def conv2d_bn(x, w, *, stride=1, padding=0, dilation=1, relu=False, bn=True):
    """Dense conv (groups=1) via the unified Pallas conv-as-matmul kernel with
    optional fused leading ReLU and trailing training-mode BatchNorm.
    w: (Cout, Cin, KH, KW).  ReLU commutes with tap extraction (relu(0)==0)."""
    N, Cin, H, _ = x.shape
    Cout, _, KH, KW = w.shape
    if KH == 1 and KW == 1 and dilation == 1 and padding == 0:
        # 1x1 fast path: no tap stack, no im2col.
        xs = x[:, :, ::stride, ::stride] if stride > 1 else x
        _, _, OH, OW = xs.shape
        A = jnp.transpose(xs, (1, 0, 2, 3)).reshape(Cin, N * OH * OW)
        wm = w.reshape(Cout, Cin)
    else:
        taps, OH, OW = _extract_taps(x, KH, stride, padding, dilation, 0.0)
        # rows = (ci, kh, kw) ci-major; cols = (n, oh, ow) n-major.
        A = jnp.transpose(taps, (2, 0, 1, 3, 4)).reshape(Cin * KH * KW, N * OH * OW)
        wm = w.reshape(Cout, Cin * KH * KW)
        # TODO(synk): the kk-fold tap stack is still materialized XLA-side
        # (fused in the whole-forward jit); in-kernel shifted-window indexing
        # would remove the amplification, only relevant at much larger shapes.
    out = conv_matmul_bn(wm, A, relu=relu, bn=bn)
    return jnp.transpose(out.reshape(Cout, N, OH, OW), (1, 0, 2, 3))


# ------------------------------ DARTS-style ops ------------------------------

def _compose_sep_weight(pw, dw):
    """dwconv (Cin,1,k,k) followed by 1x1 conv (Cout,Cin,1,1) with no BN in
    between == dense conv with W[co,ci,kh,kw] = pw[co,ci] * dw[ci,kh,kw]."""
    return pw[:, :, 0, 0][:, :, None, None] * dw[:, 0, :, :][None, :, :, :]


def factorized_reduce(x, w1, w2):
    # BN of the channel-concatenation == per-half BN (per-channel stats), so
    # BN is fused into each 1x1 stride-2 conv.
    y1 = conv2d_bn(x, w1, stride=2, padding=0, relu=True, bn=True)
    y2 = conv2d_bn(x[:, :, 1:, 1:], w2, stride=2, padding=0, relu=True, bn=True)
    return jnp.concatenate([y1, y2], axis=1)


def zero_op(x, stride):
    if stride == 1:
        return jnp.zeros_like(x)
    return jnp.zeros_like(x[:, :, ::stride, ::stride])


def sep_conv(x, params, stride, padding):
    dw1, pw1, dw2, pw2 = params
    y = conv2d_bn(x, _compose_sep_weight(pw1, dw1), stride=stride,
                  padding=padding, relu=True, bn=True)
    return conv2d_bn(y, _compose_sep_weight(pw2, dw2), stride=1,
                     padding=padding, relu=True, bn=True)


def dil_conv(x, params, stride, padding, dilation):
    dw, pw = params
    return conv2d_bn(x, _compose_sep_weight(pw, dw), stride=stride,
                     padding=padding, dilation=dilation, relu=True, bn=True)


def conv_w(key, cout, cin, k):
    return jax.random.normal(key, (cout, cin, k, k), jnp.float32) / np.sqrt(cin * k * k)


def dw_w(key, c, k):
    return jax.random.normal(key, (c, 1, k, k), jnp.float32) / np.sqrt(k * k)


def make_mixed_op_params(key, prim, C, stride):
    if prim in ('none', 'max_pool_3x3', 'avg_pool_3x3'):
        return ()
    if prim == 'skip_connect':
        if stride == 1:
            return ()
        return (conv_w(jax.random.fold_in(key, 0), C // 2, C, 1),
                conv_w(jax.random.fold_in(key, 1), C // 2, C, 1))
    k = 3 if '3x3' in prim else 5
    if prim.startswith('sep_conv'):
        return (dw_w(jax.random.fold_in(key, 0), C, k),
                conv_w(jax.random.fold_in(key, 1), C, C, 1),
                dw_w(jax.random.fold_in(key, 2), C, k),
                conv_w(jax.random.fold_in(key, 3), C, C, 1))
    if prim.startswith('dil_conv'):
        return (dw_w(jax.random.fold_in(key, 0), C, k),
                conv_w(jax.random.fold_in(key, 1), C, C, 1))
    raise ValueError(prim)


def apply_mixed_op(x, prim, stride, params):
    if prim == 'none':
        return zero_op(x, stride)
    if prim == 'max_pool_3x3':
        return pool3x3_bn(x, stride=stride, mode='max')
    if prim == 'avg_pool_3x3':
        return pool3x3_bn(x, stride=stride, mode='avg')
    if prim == 'skip_connect':
        return x if stride == 1 else factorized_reduce(x, params[0], params[1])
    if prim == 'sep_conv_3x3':
        return sep_conv(x, params, stride, 1)
    if prim == 'sep_conv_5x5':
        return sep_conv(x, params, stride, 2)
    if prim == 'dil_conv_3x3':
        return dil_conv(x, params, stride, 2, 2)
    if prim == 'dil_conv_5x5':
        return dil_conv(x, params, stride, 4, 2)
    raise ValueError(prim)


# --------------------------------- network ----------------------------------

class NetworkRAMPallas:
    def __init__(self, C=4, num_classes=10, layers=3, steps=4, multiplier=4,
                 stem_multiplier=3, num_reduction=2, input_size=32, key=None):
        if input_size == 224:
            # TODO(synk): ImageNet (input_size=224) stem path not implemented;
            # only the CIFAR-style stem branch is supported.
            raise NotImplementedError("input_size=224 stem not implemented")
        num_reduction = int(num_reduction) + 1
        self._steps = steps
        self._multiplier = multiplier
        self.num_k = sum(1 for i in range(steps) for _ in range(2 + i))
        self.num_ops = len(PRIMITIVES)

        k_an, k_ar, k_sample, k_params = jax.random.split(key, 4)
        self.alphas_normal = jnp.log(jax.nn.softmax(
            1e-3 * jax.random.normal(k_an, (self.num_k, self.num_ops)), axis=-1))
        self.alphas_reduce = jnp.log(jax.nn.softmax(
            1e-3 * jax.random.normal(k_ar, (self.num_k, self.num_ops)), axis=-1))

        # sampling(): first column of torch.multinomial(softmax(alphas), ...).
        # TODO(synk): torch RNG stream cannot be replicated; same distribution
        # via jax.random.categorical, drawn once at construction (fixed key).
        con = jax.nn.softmax(
            jnp.concatenate([self.alphas_reduce, self.alphas_normal], axis=0), axis=-1)
        self.sample0 = np.asarray(
            jax.random.categorical(k_sample, jnp.log(con), axis=-1))

        # ------- persistent parameters: generated once, reused every call ----
        C_curr = stem_multiplier * C
        params = {'stem_w': conv_w(jax.random.fold_in(k_params, 9999), C_curr, 3, 3)}
        C_prev_prev, C_prev, C_curr = C_curr, C_curr, C
        reduction_prev = False
        red_layers = [j * layers // num_reduction for j in range(1, num_reduction)]
        self.cell_cfgs = []
        cells_p = []
        for i in range(layers):
            reduction = i in red_layers
            if reduction:
                C_curr *= 2
            ck = jax.random.fold_in(k_params, i)
            if reduction_prev:
                pre0 = (conv_w(jax.random.fold_in(ck, 1000), C_curr // 2, C_prev_prev, 1),
                        conv_w(jax.random.fold_in(ck, 1001), C_curr // 2, C_prev_prev, 1))
            else:
                pre0 = (conv_w(jax.random.fold_in(ck, 1000), C_curr, C_prev_prev, 1),)
            pre1 = (conv_w(jax.random.fold_in(ck, 1002), C_curr, C_prev, 1),)
            edges = []
            e = 0
            for st in range(steps):
                for j in range(2 + st):
                    stride = 2 if reduction and j < 2 else 1
                    ek = jax.random.fold_in(ck, e)
                    edges.append({prim: make_mixed_op_params(
                        jax.random.fold_in(ek, pi), prim, C_curr, stride)
                        for pi, prim in enumerate(PRIMITIVES)})
                    e += 1
            cells_p.append({'pre0': pre0, 'pre1': pre1, 'edges': edges})
            self.cell_cfgs.append(dict(C=C_curr, reduction=reduction,
                                       reduction_prev=reduction_prev,
                                       steps=steps, multiplier=multiplier))
            reduction_prev = reduction
            C_prev_prev, C_prev = C_prev, multiplier * C_curr
        params['cells'] = cells_p

        self.C_prev = C_prev
        params['cls_w'] = (jax.random.normal(jax.random.fold_in(k_params, 5000),
                                             (num_classes, C_prev), jnp.float32)
                           / np.sqrt(C_prev))
        params['cls_b'] = jnp.zeros((num_classes,), jnp.float32)
        self.params = params

        # Whole forward pass under a single jit: one dispatch per call, all the
        # tap/transpose glue around the Pallas kernels fused by XLA.
        self._jit_forward = jax.jit(self._forward_impl)

    # ------------------------------------------------------------------ cells
    def _cell_forward(self, cfg, cp, s0, s1, ops):
        if cfg['reduction_prev']:
            s0 = factorized_reduce(s0, *cp['pre0'])
        else:
            s0 = conv2d_bn(s0, cp['pre0'][0], stride=1, padding=0, relu=True, bn=True)
        s1 = conv2d_bn(s1, cp['pre1'][0], stride=1, padding=0, relu=True, bn=True)

        states = [s0, s1]
        offset = 0
        for _ in range(cfg['steps']):
            s = None
            for j, h in enumerate(states):
                stride = 2 if cfg['reduction'] and j < 2 else 1
                prim = PRIMITIVES[int(ops[offset + j])]
                # TODO(synk): edges sharing the same input/stride could be
                # batched into one pallas_call (extra parallel grid axis) to
                # feed v7x's second TensorCore; skipped at these tiny shapes.
                y = apply_mixed_op(h, prim, stride, cp['edges'][offset + j][prim])
                s = y if s is None else s + y
            offset += len(states)
            states.append(s)
        return jnp.concatenate(states[-cfg['multiplier']:], axis=1)

    # ---------------------------------------------------------------- forward
    def _forward_impl(self, x, params):
        ops_reduce = self.sample0[:self.num_k]
        ops_normal = self.sample0[self.num_k:]
        s0 = s1 = conv2d_bn(x, params['stem_w'], stride=1, padding=1,
                            relu=False, bn=True)
        for cfg, cp in zip(self.cell_cfgs, params['cells']):
            ops = ops_reduce if cfg['reduction'] else ops_normal
            s0, s1 = s1, self._cell_forward(cfg, cp, s0, s1, ops)
        # Head: plain global average pool (fused by XLA) followed by the
        # classifier as a small Pallas matmul (no K-inflation).
        gap = jnp.mean(s1, axis=(2, 3))                       # (N, C_prev)
        logits_t = conv_matmul_bn(params['cls_w'], jnp.transpose(gap, (1, 0)),
                                  relu=False, bn=False)       # (num_classes, N)
        return jnp.transpose(logits_t, (1, 0)) + params['cls_b'][None, :]

    def sampling(self):
        return self.sample0

    def forward(self, x):
        return self._jit_forward(x, self.params)


if __name__ == "__main__":
    key = jax.random.PRNGKey(0)
    k_model, k_input = jax.random.split(key)
    net = NetworkRAMPallas(C=4, num_classes=10, layers=3, steps=4, multiplier=4,
                           stem_multiplier=3, num_reduction=2, input_size=32,
                           key=k_model)
    x = jax.random.normal(k_input, (2, 3, 16, 16), jnp.float32)
    logits = jax.block_until_ready(net.forward(x))
    assert logits.shape == (2, 10)
    assert bool(jnp.all(jnp.isfinite(logits)))
    print("KERNEL_OK")
</pallas_src>

<mosaic_0001>
module attributes {stable_mosaic.version = 11 : i64} {
  func.func @_conv_bn_kernel(%arg0: memref<16x128xf32, #tpu.memory_space<vmem>>, %arg1: memref<128x512xf32, #tpu.memory_space<vmem>>, %arg2: memref<16x512xf32, #tpu.memory_space<vmem>>) attributes {dimension_semantics = [], scalar_prefetch = 0 : i64, scratch_operands = 0 : i64, tpu.core_type = #tpu.core_type<tc>} {
    %c0 = arith.constant 0 : index
    %c0_0 = arith.constant 0 : index
    %0 = vector.load %arg1[%c0, %c0_0] : memref<128x512xf32, #tpu.memory_space<vmem>>, vector<128x512xf32>
    %c0_1 = arith.constant 0 : index
    %c0_2 = arith.constant 0 : index
    %1 = vector.load %arg0[%c0_1, %c0_2] : memref<16x128xf32, #tpu.memory_space<vmem>>, vector<16x128xf32>
    %cst = arith.constant dense<0.000000e+00> : vector<16x512xf32>
    %2 = tpu.matmul %1, %0, %cst {dimension_numbers = #tpu.dot_dimension_numbers<[1], [0], [0], [1], [0, 0, 1, 1], [], []>} : vector<16x128xf32>, vector<128x512xf32>, vector<16x512xf32> -> vector<16x512xf32>
    %cst_3 = arith.constant dense<0.000000e+00> : vector<16xf32>
    %3 = vector.multi_reduction <add>, %2, %cst_3 [1] : vector<16x512xf32> to vector<16xf32>
    %4 = vector.shape_cast %3 : vector<16xf32> to vector<16x1xf32>
    %cst_4 = arith.constant 0.001953125 : f32
    %5 = vector.broadcast %cst_4 : f32 to vector<16x1xf32>
    %6 = arith.mulf %4, %5 : vector<16x1xf32>
    %7 = vector.broadcast %6 : vector<16x1xf32> to vector<16x512xf32>
    %8 = arith.subf %2, %7 : vector<16x512xf32>
    %9 = arith.mulf %8, %8 : vector<16x512xf32>
    %cst_5 = arith.constant dense<0.000000e+00> : vector<16xf32>
    %10 = vector.multi_reduction <add>, %9, %cst_5 [1] : vector<16x512xf32> to vector<16xf32>
    %11 = vector.shape_cast %10 : vector<16xf32> to vector<16x1xf32>
    %cst_6 = arith.constant 0.001953125 : f32
    %12 = vector.broadcast %cst_6 : f32 to vector<16x1xf32>
    %13 = arith.mulf %11, %12 : vector<16x1xf32>
    %14 = vector.broadcast %6 : vector<16x1xf32> to vector<16x512xf32>
    %15 = arith.subf %2, %14 : vector<16x512xf32>
    %cst_7 = arith.constant 9.99999974E-6 : f32
    %16 = vector.broadcast %cst_7 : f32 to vector<16x1xf32>
    %17 = arith.addf %13, %16 : vector<16x1xf32>
    %18 = math.rsqrt %17 : vector<16x1xf32>
    %19 = vector.broadcast %18 : vector<16x1xf32> to vector<16x512xf32>
    %20 = arith.mulf %15, %19 : vector<16x512xf32>
    %c0_8 = arith.constant 0 : index
    %c0_9 = arith.constant 0 : index
    %21 = vector.load %arg2[%c0_8, %c0_9] : memref<16x512xf32, #tpu.memory_space<vmem>>, vector<16x512xf32>
    tpu.vector_store %arg2[%c0_8, %c0_9], %20 {strides = array<i32>} : memref<16x512xf32, #tpu.memory_space<vmem>>, vector<16x512xf32>,
    return
  }
}

module attributes {stable_mosaic.version = 11 : i64} {
  func.func @_conv_bn_kernel(%arg0: memref<8x128xf32, #tpu.memory_space<vmem>>, %arg1: memref<128x512xf32, #tpu.memory_space<vmem>>, %arg2: memref<8x512xf32, #tpu.memory_space<vmem>>) attributes {dimension_semantics = [], scalar_prefetch = 0 : i64, scratch_operands = 0 : i64, tpu.core_type = #tpu.core_type<tc>} {
    %c0 = arith.constant 0 : index
    %c0_0 = arith.constant 0 : index
    %0 = vector.load %arg1[%c0, %c0_0] : memref<128x512xf32, #tpu.memory_space<vmem>>, vector<128x512xf32>
    %cst = arith.constant 0.000000e+00 : f32
    %1 = vector.broadcast %cst : f32 to vector<128x512xf32>
    %2 = arith.maximumf %0, %1 : vector<128x512xf32>
    %c0_1 = arith.constant 0 : index
    %c0_2 = arith.constant 0 : index
    %3 = vector.load %arg0[%c0_1, %c0_2] : memref<8x128xf32, #tpu.memory_space<vmem>>, vector<8x128xf32>
    %cst_3 = arith.constant dense<0.000000e+00> : vector<8x512xf32>
    %4 = tpu.matmul %3, %2, %cst_3 {dimension_numbers = #tpu.dot_dimension_numbers<[1], [0], [0], [1], [0, 0, 1, 1], [], []>} : vector<8x128xf32>, vector<128x512xf32>, vector<8x512xf32> -> vector<8x512xf32>
    %cst_4 = arith.constant dense<0.000000e+00> : vector<8xf32>
    %5 = vector.multi_reduction <add>, %4, %cst_4 [1] : vector<8x512xf32> to vector<8xf32>
    %6 = vector.shape_cast %5 : vector<8xf32> to vector<8x1xf32>
    %cst_5 = arith.constant 0.001953125 : f32
    %7 = vector.broadcast %cst_5 : f32 to vector<8x1xf32>
    %8 = arith.mulf %6, %7 : vector<8x1xf32>
    %9 = vector.broadcast %8 : vector<8x1xf32> to vector<8x512xf32>
    %10 = arith.subf %4, %9 : vector<8x512xf32>
    %11 = arith.mulf %10, %10 : vector<8x512xf32>
    %cst_6 = arith.constant dense<0.000000e+00> : vector<8xf32>
    %12 = vector.multi_reduction <add>, %11, %cst_6 [1] : vector<8x512xf32> to vector<8xf32>
    %13 = vector.shape_cast %12 : vector<8xf32> to vector<8x1xf32>
    %cst_7 = arith.constant 0.001953125 : f32
    %14 = vector.broadcast %cst_7 : f32 to vector<8x1xf32>
    %15 = arith.mulf %13, %14 : vector<8x1xf32>
    %16 = vector.broadcast %8 : vector<8x1xf32> to vector<8x512xf32>
    %17 = arith.subf %4, %16 : vector<8x512xf32>
    %cst_8 = arith.constant 9.99999974E-6 : f32
    %18 = vector.broadcast %cst_8 : f32 to vector<8x1xf32>
    %19 = arith.addf %15, %18 : vector<8x1xf32>
    %20 = math.rsqrt %19 : vector<8x1xf32>
    %21 = vector.broadcast %20 : vector<8x1xf32> to vector<8x512xf32>
    %22 = arith.mulf %17, %21 : vector<8x512xf32>
    %c0_9 = arith.constant 0 : index
    %c0_10 = arith.constant 0 : index
    %23 = vector.load %arg2[%c0_9, %c0_10] : memref<8x512xf32, #tpu.memory_space<vmem>>, vector<8x512xf32>
    tpu.vector_store %arg2[%c0_9, %c0_10], %22 {strides = array<i32>} : memref<8x512xf32, #tpu.memory_space<vmem>>, vector<8x512xf32>,
    return
  }
}

module attributes {stable_mosaic.version = 11 : i64} {
  func.func @_pool_bn_kernel(%arg0: memref<9x8x512xf32, #tpu.memory_space<vmem>>, %arg1: memref<1x512xf32, #tpu.memory_space<vmem>>, %arg2: memref<8x512xf32, #tpu.memory_space<vmem>>) attributes {dimension_semantics = [], scalar_prefetch = 0 : i64, scratch_operands = 0 : i64, tpu.core_type = #tpu.core_type<tc>} {
    %c0 = arith.constant 0 : index
    %c0_0 = arith.constant 0 : index
    %c0_1 = arith.constant 0 : index
    %0 = vector.load %arg0[%c0, %c0_0, %c0_1] : memref<9x8x512xf32, #tpu.memory_space<vmem>>, vector<1x8x512xf32>
    %1 = vector.shape_cast %0 : vector<1x8x512xf32> to vector<8x512xf32>
    %c1 = arith.constant 1 : index
    %c0_2 = arith.constant 0 : index
    %c0_3 = arith.constant 0 : index
    %2 = vector.load %arg0[%c1, %c0_2, %c0_3] : memref<9x8x512xf32, #tpu.memory_space<vmem>>, vector<1x8x512xf32>
    %3 = vector.shape_cast %2 : vector<1x8x512xf32> to vector<8x512xf32>
    %4 = arith.addf %1, %3 : vector<8x512xf32>
    %c2 = arith.constant 2 : index
    %c0_4 = arith.constant 0 : index
    %c0_5 = arith.constant 0 : index
    %5 = vector.load %arg0[%c2, %c0_4, %c0_5] : memref<9x8x512xf32, #tpu.memory_space<vmem>>, vector<1x8x512xf32>
    %6 = vector.shape_cast %5 : vector<1x8x512xf32> to vector<8x512xf32>
    %7 = arith.addf %4, %6 : vector<8x512xf32>
    %c3 = arith.constant 3 : index
    %c0_6 = arith.constant 0 : index
    %c0_7 = arith.constant 0 : index
    %8 = vector.load %arg0[%c3, %c0_6, %c0_7] : memref<9x8x512xf32, #tpu.memory_space<vmem>>, vector<1x8x512xf32>
    %9 = vector.shape_cast %8 : vector<1x8x512xf32> to vector<8x512xf32>
    %10 = arith.addf %7, %9 : vector<8x512xf32>
    %c4 = arith.constant 4 : index
    %c0_8 = arith.constant 0 : index
    %c0_9 = arith.constant 0 : index
    %11 = vector.load %arg0[%c4, %c0_8, %c0_9] : memref<9x8x512xf32, #tpu.memory_space<vmem>>, vector<1x8x512xf32>
    %12 = vector.shape_cast %11 : vector<1x8x512xf32> to vector<8x512xf32>
    %13 = arith.addf %10, %12 : vector<8x512xf32>
    %c5 = arith.constant 5 : index
    %c0_10 = arith.constant 0 : index
    %c0_11 = arith.constant 0 : index
    %14 = vector.load %arg0[%c5, %c0_10, %c0_11] : memref<9x8x512xf32, #tpu.memory_space<vmem>>, vector<1x8x512xf32>
    %15 = vector.shape_cast %14 : vector<1x8x512xf32> to vector<8x512xf32>
    %16 = arith.addf %13, %15 : vector<8x512xf32>
    %c6 = arith.constant 6 : index
    %c0_12 = arith.constant 0 : index
    %c0_13 = arith.constant 0 : index
    %17 = vector.load %arg0[%c6, %c0_12, %c0_13] : memref<9x8x512xf32, #tpu.memory_space<vmem>>, vector<1x8x512xf32>
    %18 = vector.shape_cast %17 : vector<1x8x512xf32> to vector<8x512xf32>
    %19 = arith.addf %16, %18 : vector<8x512xf32>
    %c7 = arith.constant 7 : index
    %c0_14 = arith.constant 0 : index
    %c0_15 = arith.constant 0 : index
    %20 = vector.load %arg0[%c7, %c0_14, %c0_15] : memref<9x8x512xf32, #tpu.memory_space<vmem>>, vector<1x8x512xf32>
    %21 = vector.shape_cast %20 : vector<1x8x512xf32> to vector<8x512xf32>
    %22 = arith.addf %19, %21 : vector<8x512xf32>
    %c8 = arith.constant 8 : index
    %c0_16 = arith.constant 0 : index
    %c0_17 = arith.constant 0 : index
    %23 = vector.load %arg0[%c8, %c0_16, %c0_17] : memref<9x8x512xf32, #tpu.memory_space<vmem>>, vector<1x8x512xf32>
    %24 = vector.shape_cast %23 : vector<1x8x512xf32> to vector<8x512xf32>
    %25 = arith.addf %22, %24 : vector<8x512xf32>
    %c0_18 = arith.constant 0 : index
    %c0_19 = arith.constant 0 : index
    %26 = vector.load %arg1[%c0_18, %c0_19] : memref<1x512xf32, #tpu.memory_space<vmem>>, vector<1x512xf32>
    %27 = vector.broadcast %26 : vector<1x512xf32> to vector<8x512xf32>
    %28 = arith.mulf %25, %27 : vector<8x512xf32>
    %cst = arith.constant dense<0.000000e+00> : vector<8xf32>
    %29 = vector.multi_reduction <add>, %28, %cst [1] : vector<8x512xf32> to vector<8xf32>
    %30 = vector.shape_cast %29 : vector<8xf32> to vector<8x1xf32>
    %cst_20 = arith.constant 0.001953125 : f32
    %31 = vector.broadcast %cst_20 : f32 to vector<8x1xf32>
    %32 = arith.mulf %30, %31 : vector<8x1xf32>
    %33 = vector.broadcast %32 : vector<8x1xf32> to vector<8x512xf32>
    %34 = arith.subf %28, %33 : vector<8x512xf32>
    %35 = arith.mulf %34, %34 : vector<8x512xf32>
    %cst_21 = arith.constant dense<0.000000e+00> : vector<8xf32>
    %36 = vector.multi_reduction <add>, %35, %cst_21 [1] : vector<8x512xf32> to vector<8xf32>
    %37 = vector.shape_cast %36 : vector<8xf32> to vector<8x1xf32>
    %cst_22 = arith.constant 0.001953125 : f32
    %38 = vector.broadcast %cst_22 : f32 to vector<8x1xf32>
    %39 = arith.mulf %37, %38 : vector<8x1xf32>
    %40 = vector.broadcast %32 : vector<8x1xf32> to vector<8x512xf32>
    %41 = arith.subf %28, %40 : vector<8x512xf32>
    %cst_23 = arith.constant 9.99999974E-6 : f32
    %42 = vector.broadcast %cst_23 : f32 to vector<8x1xf32>
    %43 = arith.addf %39, %42 : vector<8x1xf32>
    %44 = math.rsqrt %43 : vector<8x1xf32>
    %45 = vector.broadcast %44 : vector<8x1xf32> to vector<8x512xf32>
    %46 = arith.mulf %41, %45 : vector<8x512xf32>
    %c0_24 = arith.constant 0 : index
    %c0_25 = arith.constant 0 : index
    %47 = vector.load %arg2[%c0_24, %c0_25] : memref<8x512xf32, #tpu.memory_space<vmem>>, vector<8x512xf32>
    tpu.vector_store %arg2[%c0_24, %c0_25], %46 {strides = array<i32>} : memref<8x512xf32, #tpu.memory_space<vmem>>, vector<8x512xf32>,
    return
  }
}

module attributes {stable_mosaic.version = 11 : i64} {
  func.func @_pool_bn_kernel(%arg0: memref<9x8x512xf32, #tpu.memory_space<vmem>>, %arg1: memref<1x512xf32, #tpu.memory_space<vmem>>, %arg2: memref<8x512xf32, #tpu.memory_space<vmem>>) attributes {dimension_semantics = [], scalar_prefetch = 0 : i64, scratch_operands = 0 : i64, tpu.core_type = #tpu.core_type<tc>} {
    %c0 = arith.constant 0 : index
    %c0_0 = arith.constant 0 : index
    %c0_1 = arith.constant 0 : index
    %0 = vector.load %arg0[%c0, %c0_0, %c0_1] : memref<9x8x512xf32, #tpu.memory_space<vmem>>, vector<1x8x512xf32>
    %1 = vector.shape_cast %0 : vector<1x8x512xf32> to vector<8x512xf32>
    %c1 = arith.constant 1 : index
    %c0_2 = arith.constant 0 : index
    %c0_3 = arith.constant 0 : index
    %2 = vector.load %arg0[%c1, %c0_2, %c0_3] : memref<9x8x512xf32, #tpu.memory_space<vmem>>, vector<1x8x512xf32>
    %3 = vector.shape_cast %2 : vector<1x8x512xf32> to vector<8x512xf32>
    %4 = arith.maximumf %1, %3 : vector<8x512xf32>
    %c2 = arith.constant 2 : index
    %c0_4 = arith.constant 0 : index
    %c0_5 = arith.constant 0 : index
    %5 = vector.load %arg0[%c2, %c0_4, %c0_5] : memref<9x8x512xf32, #tpu.memory_space<vmem>>, vector<1x8x512xf32>
    %6 = vector.shape_cast %5 : vector<1x8x512xf32> to vector<8x512xf32>
    %7 = arith.maximumf %4, %6 : vector<8x512xf32>
    %c3 = arith.constant 3 : index
    %c0_6 = arith.constant 0 : index
    %c0_7 = arith.constant 0 : index
    %8 = vector.load %arg0[%c3, %c0_6, %c0_7] : memref<9x8x512xf32, #tpu.memory_space<vmem>>, vector<1x8x512xf32>
    %9 = vector.shape_cast %8 : vector<1x8x512xf32> to vector<8x512xf32>
    %10 = arith.maximumf %7, %9 : vector<8x512xf32>
    %c4 = arith.constant 4 : index
    %c0_8 = arith.constant 0 : index
    %c0_9 = arith.constant 0 : index
    %11 = vector.load %arg0[%c4, %c0_8, %c0_9] : memref<9x8x512xf32, #tpu.memory_space<vmem>>, vector<1x8x512xf32>
    %12 = vector.shape_cast %11 : vector<1x8x512xf32> to vector<8x512xf32>
    %13 = arith.maximumf %10, %12 : vector<8x512xf32>
    %c5 = arith.constant 5 : index
    %c0_10 = arith.constant 0 : index
    %c0_11 = arith.constant 0 : index
    %14 = vector.load %arg0[%c5, %c0_10, %c0_11] : memref<9x8x512xf32, #tpu.memory_space<vmem>>, vector<1x8x512xf32>
    %15 = vector.shape_cast %14 : vector<1x8x512xf32> to vector<8x512xf32>
    %16 = arith.maximumf %13, %15 : vector<8x512xf32>
    %c6 = arith.constant 6 : index
    %c0_12 = arith.constant 0 : index
    %c0_13 = arith.constant 0 : index
    %17 = vector.load %arg0[%c6, %c0_12, %c0_13] : memref<9x8x512xf32, #tpu.memory_space<vmem>>, vector<1x8x512xf32>
    %18 = vector.shape_cast %17 : vector<1x8x512xf32> to vector<8x512xf32>
    %19 = arith.maximumf %16, %18 : vector<8x512xf32>
    %c7 = arith.constant 7 : index
    %c0_14 = arith.constant 0 : index
    %c0_15 = arith.constant 0 : index
    %20 = vector.load %arg0[%c7, %c0_14, %c0_15] : memref<9x8x512xf32, #tpu.memory_space<vmem>>, vector<1x8x512xf32>
    %21 = vector.shape_cast %20 : vector<1x8x512xf32> to vector<8x512xf32>
    %22 = arith.maximumf %19, %21 : vector<8x512xf32>
    %c8 = arith.constant 8 : index
    %c0_16 = arith.constant 0 : index
    %c0_17 = arith.constant 0 : index
    %23 = vector.load %arg0[%c8, %c0_16, %c0_17] : memref<9x8x512xf32, #tpu.memory_space<vmem>>, vector<1x8x512xf32>
    %24 = vector.shape_cast %23 : vector<1x8x512xf32> to vector<8x512xf32>
    %25 = arith.maximumf %22, %24 : vector<8x512xf32>
    %cst = arith.constant dense<0.000000e+00> : vector<8xf32>
    %26 = vector.multi_reduction <add>, %25, %cst [1] : vector<8x512xf32> to vector<8xf32>
    %27 = vector.shape_cast %26 : vector<8xf32> to vector<8x1xf32>
    %cst_18 = arith.constant 0.001953125 : f32
    %28 = vector.broadcast %cst_18 : f32 to vector<8x1xf32>
    %29 = arith.mulf %27, %28 : vector<8x1xf32>
    %30 = vector.broadcast %29 : vector<8x1xf32> to vector<8x512xf32>
    %31 = arith.subf %25, %30 : vector<8x512xf32>
    %32 = arith.mulf %31, %31 : vector<8x512xf32>
    %cst_19 = arith.constant dense<0.000000e+00> : vector<8xf32>
    %33 = vector.multi_reduction <add>, %32, %cst_19 [1] : vector<8x512xf32> to vector<8xf32>
    %34 = vector.shape_cast %33 : vector<8xf32> to vector<8x1xf32>
    %cst_20 = arith.constant 0.001953125 : f32
    %35 = vector.broadcast %cst_20 : f32 to vector<8x1xf32>
    %36 = arith.mulf %34, %35 : vector<8x1xf32>
    %37 = vector.broadcast %29 : vector<8x1xf32> to vector<8x512xf32>
    %38 = arith.subf %25, %37 : vector<8x512xf32>
    %cst_21 = arith.constant 9.99999974E-6 : f32
    %39 = vector.broadcast %cst_21 : f32 to vector<8x1xf32>
    %40 = arith.addf %36, %39 : vector<8x1xf32>
    %41 = math.rsqrt %40 : vector<8x1xf32>
    %42 = vector.broadcast %41 : vector<8x1xf32> to vector<8x512xf32>
    %43 = arith.mulf %38, %42 : vector<8x512xf32>
    %c0_22 = arith.constant 0 : index
    %c0_23 = arith.constant 0 : index
    %44 = vector.load %arg2[%c0_22, %c0_23] : memref<8x512xf32, #tpu.memory_space<vmem>>, vector<8x512xf32>
    tpu.vector_store %arg2[%c0_22, %c0_23], %43 {strides = array<i32>} : memref<8x512xf32, #tpu.memory_space<vmem>>, vector<8x512xf32>,
    return
  }
}

module attributes {stable_mosaic.version = 11 : i64} {
  func.func @_conv_bn_kernel(%arg0: memref<8x256xf32, #tpu.memory_space<vmem>>, %arg1: memref<256x128xf32, #tpu.memory_space<vmem>>, %arg2: memref<8x128xf32, #tpu.memory_space<vmem>>) attributes {dimension_semantics = [], scalar_prefetch = 0 : i64, scratch_operands = 0 : i64, tpu.core_type = #tpu.core_type<tc>} {
    %c0 = arith.constant 0 : index
    %c0_0 = arith.constant 0 : index
    %0 = vector.load %arg1[%c0, %c0_0] : memref<256x128xf32, #tpu.memory_space<vmem>>, vector<256x128xf32>
    %cst = arith.constant 0.000000e+00 : f32
    %1 = vector.broadcast %cst : f32 to vector<256x128xf32>
    %2 = arith.maximumf %0, %1 : vector<256x128xf32>
    %c0_1 = arith.constant 0 : index
    %c0_2 = arith.constant 0 : index
    %3 = vector.load %arg0[%c0_1, %c0_2] : memref<8x256xf32, #tpu.memory_space<vmem>>, vector<8x256xf32>
    %cst_3 = arith.constant dense<0.000000e+00> : vector<8x128xf32>
    %4 = tpu.matmul %3, %2, %cst_3 {dimension_numbers = #tpu.dot_dimension_numbers<[1], [0], [0], [1], [0, 0, 1, 1], [], []>} : vector<8x256xf32>, vector<256x128xf32>, vector<8x128xf32> -> vector<8x128xf32>
    %cst_4 = arith.constant dense<0.000000e+00> : vector<8xf32>
    %5 = vector.multi_reduction <add>, %4, %cst_4 [1] : vector<8x128xf32> to vector<8xf32>
    %6 = vector.shape_cast %5 : vector<8xf32> to vector<8x1xf32>
    %cst_5 = arith.constant 7.812500e-03 : f32
    %7 = vector.broadcast %cst_5 : f32 to vector<8x1xf32>
    %8 = arith.mulf %6, %7 : vector<8x1xf32>
    %9 = vector.broadcast %8 : vector<8x1xf32> to vector<8x128xf32>
    %10 = arith.subf %4, %9 : vector<8x128xf32>
    %11 = arith.mulf %10, %10 : vector<8x128xf32>
    %cst_6 = arith.constant dense<0.000000e+00> : vector<8xf32>
    %12 = vector.multi_reduction <add>, %11, %cst_6 [1] : vector<8x128xf32> to vector<8xf32>
    %13 = vector.shape_cast %12 : vector<8xf32> to vector<8x1xf32>
    %cst_7 = arith.constant 7.812500e-03 : f32
    %14 = vector.broadcast %cst_7 : f32 to vector<8x1xf32>
    %15 = arith.mulf %13, %14 : vector<8x1xf32>
    %16 = vector.broadcast %8 : vector<8x1xf32> to vector<8x128xf32>
    %17 = arith.subf %4, %16 : vector<8x128xf32>
    %cst_8 = arith.constant 9.99999974E-6 : f32
    %18 = vector.broadcast %cst_8 : f32 to vector<8x1xf32>
    %19 = arith.addf %15, %18 : vector<8x1xf32>
    %20 = math.rsqrt %19 : vector<8x1xf32>
    %21 = vector.broadcast %20 : vector<8x1xf32> to vector<8x128xf32>
    %22 = arith.mulf %17, %21 : vector<8x128xf32>
    %c0_9 = arith.constant 0 : index
    %c0_10 = arith.constant 0 : index
    %23 = vector.load %arg2[%c0_9, %c0_10] : memref<8x128xf32, #tpu.memory_space<vmem>>, vector<8x128xf32>
    tpu.vector_store %arg2[%c0_9, %c0_10], %22 {strides = array<i32>} : memref<8x128xf32, #tpu.memory_space<vmem>>, vector<8x128xf32>,
    return
  }
}

module attributes {stable_mosaic.version = 11 : i64} {
  func.func @_conv_bn_kernel(%arg0: memref<8x128xf32, #tpu.memory_space<vmem>>, %arg1: memref<128x128xf32, #tpu.memory_space<vmem>>, %arg2: memref<8x128xf32, #tpu.memory_space<vmem>>) attributes {dimension_semantics = [], scalar_prefetch = 0 : i64, scratch_operands = 0 : i64, tpu.core_type = #tpu.core_type<tc>} {
    %c0 = arith.constant 0 : index
    %c0_0 = arith.constant 0 : index
    %0 = vector.load %arg1[%c0, %c0_0] : memref<128x128xf32, #tpu.memory_space<vmem>>, vector<128x128xf32>
    %cst = arith.constant 0.000000e+00 : f32
    %1 = vector.broadcast %cst : f32 to vector<128x128xf32>
    %2 = arith.maximumf %0, %1 : vector<128x128xf32>
    %c0_1 = arith.constant 0 : index
    %c0_2 = arith.constant 0 : index
    %3 = vector.load %arg0[%c0_1, %c0_2] : memref<8x128xf32, #tpu.memory_space<vmem>>, vector<8x128xf32>
    %cst_3 = arith.constant dense<0.000000e+00> : vector<8x128xf32>
    %4 = tpu.matmul %3, %2, %cst_3 {dimension_numbers = #tpu.dot_dimension_numbers<[1], [0], [0], [1], [0, 0, 1, 1], [], []>} : vector<8x128xf32>, vector<128x128xf32>, vector<8x128xf32> -> vector<8x128xf32>
    %cst_4 = arith.constant dense<0.000000e+00> : vector<8xf32>
    %5 = vector.multi_reduction <add>, %4, %cst_4 [1] : vector<8x128xf32> to vector<8xf32>
    %6 = vector.shape_cast %5 : vector<8xf32> to vector<8x1xf32>
    %cst_5 = arith.constant 7.812500e-03 : f32
    %7 = vector.broadcast %cst_5 : f32 to vector<8x1xf32>
    %8 = arith.mulf %6, %7 : vector<8x1xf32>
    %9 = vector.broadcast %8 : vector<8x1xf32> to vector<8x128xf32>
    %10 = arith.subf %4, %9 : vector<8x128xf32>
    %11 = arith.mulf %10, %10 : vector<8x128xf32>
    %cst_6 = arith.constant dense<0.000000e+00> : vector<8xf32>
    %12 = vector.multi_reduction <add>, %11, %cst_6 [1] : vector<8x128xf32> to vector<8xf32>
    %13 = vector.shape_cast %12 : vector<8xf32> to vector<8x1xf32>
    %cst_7 = arith.constant 7.812500e-03 : f32
    %14 = vector.broadcast %cst_7 : f32 to vector<8x1xf32>
    %15 = arith.mulf %13, %14 : vector<8x1xf32>
    %16 = vector.broadcast %8 : vector<8x1xf32> to vector<8x128xf32>
    %17 = arith.subf %4, %16 : vector<8x128xf32>
    %cst_8 = arith.constant 9.99999974E-6 : f32
    %18 = vector.broadcast %cst_8 : f32 to vector<8x1xf32>
    %19 = arith.addf %15, %18 : vector<8x1xf32>
    %20 = math.rsqrt %19 : vector<8x1xf32>
    %21 = vector.broadcast %20 : vector<8x1xf32> to vector<8x128xf32>
    %22 = arith.mulf %17, %21 : vector<8x128xf32>
    %c0_9 = arith.constant 0 : index
    %c0_10 = arith.constant 0 : index
    %23 = vector.load %arg2[%c0_9, %c0_10] : memref<8x128xf32, #tpu.memory_space<vmem>>, vector<8x128xf32>
    tpu.vector_store %arg2[%c0_9, %c0_10], %22 {strides = array<i32>} : memref<8x128xf32, #tpu.memory_space<vmem>>, vector<8x128xf32>,
    return
  }
}

module attributes {stable_mosaic.version = 11 : i64} {
  func.func @_pool_bn_kernel(%arg0: memref<9x8x128xf32, #tpu.memory_space<vmem>>, %arg1: memref<1x128xf32, #tpu.memory_space<vmem>>, %arg2: memref<8x128xf32, #tpu.memory_space<vmem>>) attributes {dimension_semantics = [], scalar_prefetch = 0 : i64, scratch_operands = 0 : i64, tpu.core_type = #tpu.core_type<tc>} {
    %c0 = arith.constant 0 : index
    %c0_0 = arith.constant 0 : index
    %c0_1 = arith.constant 0 : index
    %0 = vector.load %arg0[%c0, %c0_0, %c0_1] : memref<9x8x128xf32, #tpu.memory_space<vmem>>, vector<1x8x128xf32>
    %1 = vector.shape_cast %0 : vector<1x8x128xf32> to vector<8x128xf32>
    %c1 = arith.constant 1 : index
    %c0_2 = arith.constant 0 : index
    %c0_3 = arith.constant 0 : index
    %2 = vector.load %arg0[%c1, %c0_2, %c0_3] : memref<9x8x128xf32, #tpu.memory_space<vmem>>, vector<1x8x128xf32>
    %3 = vector.shape_cast %2 : vector<1x8x128xf32> to vector<8x128xf32>
    %4 = arith.maximumf %1, %3 : vector<8x128xf32>
    %c2 = arith.constant 2 : index
    %c0_4 = arith.constant 0 : index
    %c0_5 = arith.constant 0 : index
    %5 = vector.load %arg0[%c2, %c0_4, %c0_5] : memref<9x8x128xf32, #tpu.memory_space<vmem>>, vector<1x8x128xf32>
    %6 = vector.shape_cast %5 : vector<1x8x128xf32> to vector<8x128xf32>
    %7 = arith.maximumf %4, %6 : vector<8x128xf32>
    %c3 = arith.constant 3 : index
    %c0_6 = arith.constant 0 : index
    %c0_7 = arith.constant 0 : index
    %8 = vector.load %arg0[%c3, %c0_6, %c0_7] : memref<9x8x128xf32, #tpu.memory_space<vmem>>, vector<1x8x128xf32>
    %9 = vector.shape_cast %8 : vector<1x8x128xf32> to vector<8x128xf32>
    %10 = arith.maximumf %7, %9 : vector<8x128xf32>
    %c4 = arith.constant 4 : index
    %c0_8 = arith.constant 0 : index
    %c0_9 = arith.constant 0 : index
    %11 = vector.load %arg0[%c4, %c0_8, %c0_9] : memref<9x8x128xf32, #tpu.memory_space<vmem>>, vector<1x8x128xf32>
    %12 = vector.shape_cast %11 : vector<1x8x128xf32> to vector<8x128xf32>
    %13 = arith.maximumf %10, %12 : vector<8x128xf32>
    %c5 = arith.constant 5 : index
    %c0_10 = arith.constant 0 : index
    %c0_11 = arith.constant 0 : index
    %14 = vector.load %arg0[%c5, %c0_10, %c0_11] : memref<9x8x128xf32, #tpu.memory_space<vmem>>, vector<1x8x128xf32>
    %15 = vector.shape_cast %14 : vector<1x8x128xf32> to vector<8x128xf32>
    %16 = arith.maximumf %13, %15 : vector<8x128xf32>
    %c6 = arith.constant 6 : index
    %c0_12 = arith.constant 0 : index
    %c0_13 = arith.constant 0 : index
    %17 = vector.load %arg0[%c6, %c0_12, %c0_13] : memref<9x8x128xf32, #tpu.memory_space<vmem>>, vector<1x8x128xf32>
    %18 = vector.shape_cast %17 : vector<1x8x128xf32> to vector<8x128xf32>
    %19 = arith.maximumf %16, %18 : vector<8x128xf32>
    %c7 = arith.constant 7 : index
    %c0_14 = arith.constant 0 : index
    %c0_15 = arith.constant 0 : index
    %20 = vector.load %arg0[%c7, %c0_14, %c0_15] : memref<9x8x128xf32, #tpu.memory_space<vmem>>, vector<1x8x128xf32>
    %21 = vector.shape_cast %20 : vector<1x8x128xf32> to vector<8x128xf32>
    %22 = arith.maximumf %19, %21 : vector<8x128xf32>
    %c8 = arith.constant 8 : index
    %c0_16 = arith.constant 0 : index
    %c0_17 = arith.constant 0 : index
    %23 = vector.load %arg0[%c8, %c0_16, %c0_17] : memref<9x8x128xf32, #tpu.memory_space<vmem>>, vector<1x8x128xf32>
    %24 = vector.shape_cast %23 : vector<1x8x128xf32> to vector<8x128xf32>
    %25 = arith.maximumf %22, %24 : vector<8x128xf32>
    %cst = arith.constant dense<0.000000e+00> : vector<8xf32>
    %26 = vector.multi_reduction <add>, %25, %cst [1] : vector<8x128xf32> to vector<8xf32>
    %27 = vector.shape_cast %26 : vector<8xf32> to vector<8x1xf32>
    %cst_18 = arith.constant 7.812500e-03 : f32
    %28 = vector.broadcast %cst_18 : f32 to vector<8x1xf32>
    %29 = arith.mulf %27, %28 : vector<8x1xf32>
    %30 = vector.broadcast %29 : vector<8x1xf32> to vector<8x128xf32>
    %31 = arith.subf %25, %30 : vector<8x128xf32>
    %32 = arith.mulf %31, %31 : vector<8x128xf32>
    %cst_19 = arith.constant dense<0.000000e+00> : vector<8xf32>
    %33 = vector.multi_reduction <add>, %32, %cst_19 [1] : vector<8x128xf32> to vector<8xf32>
    %34 = vector.shape_cast %33 : vector<8xf32> to vector<8x1xf32>
    %cst_20 = arith.constant 7.812500e-03 : f32
    %35 = vector.broadcast %cst_20 : f32 to vector<8x1xf32>
    %36 = arith.mulf %34, %35 : vector<8x1xf32>
    %37 = vector.broadcast %29 : vector<8x1xf32> to vector<8x128xf32>
    %38 = arith.subf %25, %37 : vector<8x128xf32>
    %cst_21 = arith.constant 9.99999974E-6 : f32
    %39 = vector.broadcast %cst_21 : f32 to vector<8x1xf32>
    %40 = arith.addf %36, %39 : vector<8x1xf32>
    %41 = math.rsqrt %40 : vector<8x1xf32>
    %42 = vector.broadcast %41 : vector<8x1xf32> to vector<8x128xf32>
    %43 = arith.mulf %38, %42 : vector<8x128xf32>
    %c0_22 = arith.constant 0 : index
    %c0_23 = arith.constant 0 : index
    %44 = vector.load %arg2[%c0_22, %c0_23] : memref<8x128xf32, #tpu.memory_space<vmem>>, vector<8x128xf32>
    tpu.vector_store %arg2[%c0_22, %c0_23], %43 {strides = array<i32>} : memref<8x128xf32, #tpu.memory_space<vmem>>, vector<8x128xf32>,
    return
  }
}

module attributes {stable_mosaic.version = 11 : i64} {
  func.func @_pool_bn_kernel(%arg0: memref<9x8x128xf32, #tpu.memory_space<vmem>>, %arg1: memref<1x128xf32, #tpu.memory_space<vmem>>, %arg2: memref<8x128xf32, #tpu.memory_space<vmem>>) attributes {dimension_semantics = [], scalar_prefetch = 0 : i64, scratch_operands = 0 : i64, tpu.core_type = #tpu.core_type<tc>} {
    %c0 = arith.constant 0 : index
    %c0_0 = arith.constant 0 : index
    %c0_1 = arith.constant 0 : index
    %0 = vector.load %arg0[%c0, %c0_0, %c0_1] : memref<9x8x128xf32, #tpu.memory_space<vmem>>, vector<1x8x128xf32>
    %1 = vector.shape_cast %0 : vector<1x8x128xf32> to vector<8x128xf32>
    %c1 = arith.constant 1 : index
    %c0_2 = arith.constant 0 : index
    %c0_3 = arith.constant 0 : index
    %2 = vector.load %arg0[%c1, %c0_2, %c0_3] : memref<9x8x128xf32, #tpu.memory_space<vmem>>, vector<1x8x128xf32>
    %3 = vector.shape_cast %2 : vector<1x8x128xf32> to vector<8x128xf32>
    %4 = arith.addf %1, %3 : vector<8x128xf32>
    %c2 = arith.constant 2 : index
    %c0_4 = arith.constant 0 : index
    %c0_5 = arith.constant 0 : index
    %5 = vector.load %arg0[%c2, %c0_4, %c0_5] : memref<9x8x128xf32, #tpu.memory_space<vmem>>, vector<1x8x128xf32>
    %6 = vector.shape_cast %5 : vector<1x8x128xf32> to vector<8x128xf32>
    %7 = arith.addf %4, %6 : vector<8x128xf32>
    %c3 = arith.constant 3 : index
    %c0_6 = arith.constant 0 : index
    %c0_7 = arith.constant 0 : index
    %8 = vector.load %arg0[%c3, %c0_6, %c0_7] : memref<9x8x128xf32, #tpu.memory_space<vmem>>, vector<1x8x128xf32>
    %9 = vector.shape_cast %8 : vector<1x8x128xf32> to vector<8x128xf32>
    %10 = arith.addf %7, %9 : vector<8x128xf32>
    %c4 = arith.constant 4 : index
    %c0_8 = arith.constant 0 : index
    %c0_9 = arith.constant 0 : index
    %11 = vector.load %arg0[%c4, %c0_8, %c0_9] : memref<9x8x128xf32, #tpu.memory_space<vmem>>, vector<1x8x128xf32>
    %12 = vector.shape_cast %11 : vector<1x8x128xf32> to vector<8x128xf32>
    %13 = arith.addf %10, %12 : vector<8x128xf32>
    %c5 = arith.constant 5 : index
    %c0_10 = arith.constant 0 : index
    %c0_11 = arith.constant 0 : index
    %14 = vector.load %arg0[%c5, %c0_10, %c0_11] : memref<9x8x128xf32, #tpu.memory_space<vmem>>, vector<1x8x128xf32>
    %15 = vector.shape_cast %14 : vector<1x8x128xf32> to vector<8x128xf32>
    %16 = arith.addf %13, %15 : vector<8x128xf32>
    %c6 = arith.constant 6 : index
    %c0_12 = arith.constant 0 : index
    %c0_13 = arith.constant 0 : index
    %17 = vector.load %arg0[%c6, %c0_12, %c0_13] : memref<9x8x128xf32, #tpu.memory_space<vmem>>, vector<1x8x128xf32>
    %18 = vector.shape_cast %17 : vector<1x8x128xf32> to vector<8x128xf32>
    %19 = arith.addf %16, %18 : vector<8x128xf32>
    %c7 = arith.constant 7 : index
    %c0_14 = arith.constant 0 : index
    %c0_15 = arith.constant 0 : index
    %20 = vector.load %arg0[%c7, %c0_14, %c0_15] : memref<9x8x128xf32, #tpu.memory_space<vmem>>, vector<1x8x128xf32>
    %21 = vector.shape_cast %20 : vector<1x8x128xf32> to vector<8x128xf32>
    %22 = arith.addf %19, %21 : vector<8x128xf32>
    %c8 = arith.constant 8 : index
    %c0_16 = arith.constant 0 : index
    %c0_17 = arith.constant 0 : index
    %23 = vector.load %arg0[%c8, %c0_16, %c0_17] : memref<9x8x128xf32, #tpu.memory_space<vmem>>, vector<1x8x128xf32>
    %24 = vector.shape_cast %23 : vector<1x8x128xf32> to vector<8x128xf32>
    %25 = arith.addf %22, %24 : vector<8x128xf32>
    %c0_18 = arith.constant 0 : index
    %c0_19 = arith.constant 0 : index
    %26 = vector.load %arg1[%c0_18, %c0_19] : memref<1x128xf32, #tpu.memory_space<vmem>>, vector<1x128xf32>
    %27 = vector.broadcast %26 : vector<1x128xf32> to vector<8x128xf32>
    %28 = arith.mulf %25, %27 : vector<8x128xf32>
    %cst = arith.constant dense<0.000000e+00> : vector<8xf32>
    %29 = vector.multi_reduction <add>, %28, %cst [1] : vector<8x128xf32> to vector<8xf32>
    %30 = vector.shape_cast %29 : vector<8xf32> to vector<8x1xf32>
    %cst_20 = arith.constant 7.812500e-03 : f32
    %31 = vector.broadcast %cst_20 : f32 to vector<8x1xf32>
    %32 = arith.mulf %30, %31 : vector<8x1xf32>
    %33 = vector.broadcast %32 : vector<8x1xf32> to vector<8x128xf32>
    %34 = arith.subf %28, %33 : vector<8x128xf32>
    %35 = arith.mulf %34, %34 : vector<8x128xf32>
    %cst_21 = arith.constant dense<0.000000e+00> : vector<8xf32>
    %36 = vector.multi_reduction <add>, %35, %cst_21 [1] : vector<8x128xf32> to vector<8xf32>
    %37 = vector.shape_cast %36 : vector<8xf32> to vector<8x1xf32>
    %cst_22 = arith.constant 7.812500e-03 : f32
    %38 = vector.broadcast %cst_22 : f32 to vector<8x1xf32>
    %39 = arith.mulf %37, %38 : vector<8x1xf32>
    %40 = vector.broadcast %32 : vector<8x1xf32> to vector<8x128xf32>
    %41 = arith.subf %28, %40 : vector<8x128xf32>
    %cst_23 = arith.constant 9.99999974E-6 : f32
    %42 = vector.broadcast %cst_23 : f32 to vector<8x1xf32>
    %43 = arith.addf %39, %42 : vector<8x1xf32>
    %44 = math.rsqrt %43 : vector<8x1xf32>
    %45 = vector.broadcast %44 : vector<8x1xf32> to vector<8x128xf32>
    %46 = arith.mulf %41, %45 : vector<8x128xf32>
    %c0_24 = arith.constant 0 : index
    %c0_25 = arith.constant 0 : index
    %47 = vector.load %arg2[%c0_24, %c0_25] : memref<8x128xf32, #tpu.memory_space<vmem>>, vector<8x128xf32>
    tpu.vector_store %arg2[%c0_24, %c0_25], %46 {strides = array<i32>} : memref<8x128xf32, #tpu.memory_space<vmem>>, vector<8x128xf32>,
    return
  }
}

module attributes {stable_mosaic.version = 11 : i64} {
  func.func @_conv_bn_kernel(%arg0: memref<16x128xf32, #tpu.memory_space<vmem>>, %arg1: memref<128x128xf32, #tpu.memory_space<vmem>>, %arg2: memref<16x128xf32, #tpu.memory_space<vmem>>) attributes {dimension_semantics = [], scalar_prefetch = 0 : i64, scratch_operands = 0 : i64, tpu.core_type = #tpu.core_type<tc>} {
    %c0 = arith.constant 0 : index
    %c0_0 = arith.constant 0 : index
    %0 = vector.load %arg1[%c0, %c0_0] : memref<128x128xf32, #tpu.memory_space<vmem>>, vector<128x128xf32>
    %cst = arith.constant 0.000000e+00 : f32
    %1 = vector.broadcast %cst : f32 to vector<128x128xf32>
    %2 = arith.maximumf %0, %1 : vector<128x128xf32>
    %c0_1 = arith.constant 0 : index
    %c0_2 = arith.constant 0 : index
    %3 = vector.load %arg0[%c0_1, %c0_2] : memref<16x128xf32, #tpu.memory_space<vmem>>, vector<16x128xf32>
    %cst_3 = arith.constant dense<0.000000e+00> : vector<16x128xf32>
    %4 = tpu.matmul %3, %2, %cst_3 {dimension_numbers = #tpu.dot_dimension_numbers<[1], [0], [0], [1], [0, 0, 1, 1], [], []>} : vector<16x128xf32>, vector<128x128xf32>, vector<16x128xf32> -> vector<16x128xf32>
    %cst_4 = arith.constant dense<0.000000e+00> : vector<16xf32>
    %5 = vector.multi_reduction <add>, %4, %cst_4 [1] : vector<16x128xf32> to vector<16xf32>
    %6 = vector.shape_cast %5 : vector<16xf32> to vector<16x1xf32>
    %cst_5 = arith.constant 7.812500e-03 : f32
    %7 = vector.broadcast %cst_5 : f32 to vector<16x1xf32>
    %8 = arith.mulf %6, %7 : vector<16x1xf32>
    %9 = vector.broadcast %8 : vector<16x1xf32> to vector<16x128xf32>
    %10 = arith.subf %4, %9 : vector<16x128xf32>
    %11 = arith.mulf %10, %10 : vector<16x128xf32>
    %cst_6 = arith.constant dense<0.000000e+00> : vector<16xf32>
    %12 = vector.multi_reduction <add>, %11, %cst_6 [1] : vector<16x128xf32> to vector<16xf32>
    %13 = vector.shape_cast %12 : vector<16xf32> to vector<16x1xf32>
    %cst_7 = arith.constant 7.812500e-03 : f32
    %14 = vector.broadcast %cst_7 : f32 to vector<16x1xf32>
    %15 = arith.mulf %13, %14 : vector<16x1xf32>
    %16 = vector.broadcast %8 : vector<16x1xf32> to vector<16x128xf32>
    %17 = arith.subf %4, %16 : vector<16x128xf32>
    %cst_8 = arith.constant 9.99999974E-6 : f32
    %18 = vector.broadcast %cst_8 : f32 to vector<16x1xf32>
    %19 = arith.addf %15, %18 : vector<16x1xf32>
    %20 = math.rsqrt %19 : vector<16x1xf32>
    %21 = vector.broadcast %20 : vector<16x1xf32> to vector<16x128xf32>
    %22 = arith.mulf %17, %21 : vector<16x128xf32>
    %c0_9 = arith.constant 0 : index
    %c0_10 = arith.constant 0 : index
    %23 = vector.load %arg2[%c0_9, %c0_10] : memref<16x128xf32, #tpu.memory_space<vmem>>, vector<16x128xf32>
    tpu.vector_store %arg2[%c0_9, %c0_10], %22 {strides = array<i32>} : memref<16x128xf32, #tpu.memory_space<vmem>>, vector<16x128xf32>,
    return
  }
}

module attributes {stable_mosaic.version = 11 : i64} {
  func.func @_conv_bn_kernel(%arg0: memref<16x512xf32, #tpu.memory_space<vmem>>, %arg1: memref<512x128xf32, #tpu.memory_space<vmem>>, %arg2: memref<16x128xf32, #tpu.memory_space<vmem>>) attributes {dimension_semantics = [], scalar_prefetch = 0 : i64, scratch_operands = 0 : i64, tpu.core_type = #tpu.core_type<tc>} {
    %c0 = arith.constant 0 : index
    %c0_0 = arith.constant 0 : index
    %0 = vector.load %arg1[%c0, %c0_0] : memref<512x128xf32, #tpu.memory_space<vmem>>, vector<512x128xf32>
    %cst = arith.constant 0.000000e+00 : f32
    %1 = vector.broadcast %cst : f32 to vector<512x128xf32>
    %2 = arith.maximumf %0, %1 : vector<512x128xf32>
    %c0_1 = arith.constant 0 : index
    %c0_2 = arith.constant 0 : index
    %3 = vector.load %arg0[%c0_1, %c0_2] : memref<16x512xf32, #tpu.memory_space<vmem>>, vector<16x512xf32>
    %cst_3 = arith.constant dense<0.000000e+00> : vector<16x128xf32>
    %4 = tpu.matmul %3, %2, %cst_3 {dimension_numbers = #tpu.dot_dimension_numbers<[1], [0], [0], [1], [0, 0, 1, 1], [], []>} : vector<16x512xf32>, vector<512x128xf32>, vector<16x128xf32> -> vector<16x128xf32>
    %5 = tpu.iota {dimensions = array<i32: 1>} : vector<16x128xi32>
    %c32_i32 = arith.constant 32 : i32
    %6 = vector.broadcast %c32_i32 : i32 to vector<16x128xi32>
    %7 = arith.cmpi slt, %5, %6 : vector<16x128xi32>
    %cst_4 = arith.constant 0.000000e+00 : f32
    %8 = vector.broadcast %cst_4 : f32 to vector<16x128xf32>
    %9 = arith.select %7, %4, %8 : vector<16x128xi1>, vector<16x128xf32>
    %cst_5 = arith.constant dense<0.000000e+00> : vector<16xf32>
    %10 = vector.multi_reduction <add>, %9, %cst_5 [1] : vector<16x128xf32> to vector<16xf32>
    %11 = vector.shape_cast %10 : vector<16xf32> to vector<16x1xf32>
    %cst_6 = arith.constant 3.125000e-02 : f32
    %12 = vector.broadcast %cst_6 : f32 to vector<16x1xf32>
    %13 = arith.mulf %11, %12 : vector<16x1xf32>
    %14 = vector.broadcast %13 : vector<16x1xf32> to vector<16x128xf32>
    %15 = arith.subf %4, %14 : vector<16x128xf32>
    %cst_7 = arith.constant 0.000000e+00 : f32
    %16 = vector.broadcast %cst_7 : f32 to vector<16x128xf32>
    %17 = arith.select %7, %15, %16 : vector<16x128xi1>, vector<16x128xf32>
    %18 = arith.mulf %17, %17 : vector<16x128xf32>
    %cst_8 = arith.constant dense<0.000000e+00> : vector<16xf32>
    %19 = vector.multi_reduction <add>, %18, %cst_8 [1] : vector<16x128xf32> to vector<16xf32>
    %20 = vector.shape_cast %19 : vector<16xf32> to vector<16x1xf32>
    %cst_9 = arith.constant 3.125000e-02 : f32
    %21 = vector.broadcast %cst_9 : f32 to vector<16x1xf32>
    %22 = arith.mulf %20, %21 : vector<16x1xf32>
    %23 = vector.broadcast %13 : vector<16x1xf32> to vector<16x128xf32>
    %24 = arith.subf %4, %23 : vector<16x128xf32>
    %cst_10 = arith.constant 9.99999974E-6 : f32
    %25 = vector.broadcast %cst_10 : f32 to vector<16x1xf32>
    %26 = arith.addf %22, %25 : vector<16x1xf32>
    %27 = math.rsqrt %26 : vector<16x1xf32>
    %28 = vector.broadcast %27 : vector<16x1xf32> to vector<16x128xf32>
    %29 = arith.mulf %24, %28 : vector<16x128xf32>
    %c0_11 = arith.constant 0 : index
    %c0_12 = arith.constant 0 : index
    %30 = vector.load %arg2[%c0_11, %c0_12] : memref<16x128xf32, #tpu.memory_space<vmem>>, vector<16x128xf32>
    tpu.vector_store %arg2[%c0_11, %c0_12], %29 {strides = array<i32>} : memref<16x128xf32, #tpu.memory_space<vmem>>, vector<16x128xf32>,
    return
  }
}

module attributes {stable_mosaic.version = 11 : i64} {
  func.func @_conv_bn_kernel(%arg0: memref<16x256xf32, #tpu.memory_space<vmem>>, %arg1: memref<256x128xf32, #tpu.memory_space<vmem>>, %arg2: memref<16x128xf32, #tpu.memory_space<vmem>>) attributes {dimension_semantics = [], scalar_prefetch = 0 : i64, scratch_operands = 0 : i64, tpu.core_type = #tpu.core_type<tc>} {
    %c0 = arith.constant 0 : index
    %c0_0 = arith.constant 0 : index
    %0 = vector.load %arg1[%c0, %c0_0] : memref<256x128xf32, #tpu.memory_space<vmem>>, vector<256x128xf32>
    %cst = arith.constant 0.000000e+00 : f32
    %1 = vector.broadcast %cst : f32 to vector<256x128xf32>
    %2 = arith.maximumf %0, %1 : vector<256x128xf32>
    %c0_1 = arith.constant 0 : index
    %c0_2 = arith.constant 0 : index
    %3 = vector.load %arg0[%c0_1, %c0_2] : memref<16x256xf32, #tpu.memory_space<vmem>>, vector<16x256xf32>
    %cst_3 = arith.constant dense<0.000000e+00> : vector<16x128xf32>
    %4 = tpu.matmul %3, %2, %cst_3 {dimension_numbers = #tpu.dot_dimension_numbers<[1], [0], [0], [1], [0, 0, 1, 1], [], []>} : vector<16x256xf32>, vector<256x128xf32>, vector<16x128xf32> -> vector<16x128xf32>
    %5 = tpu.iota {dimensions = array<i32: 1>} : vector<16x128xi32>
    %c32_i32 = arith.constant 32 : i32
    %6 = vector.broadcast %c32_i32 : i32 to vector<16x128xi32>
    %7 = arith.cmpi slt, %5, %6 : vector<16x128xi32>
    %cst_4 = arith.constant 0.000000e+00 : f32
    %8 = vector.broadcast %cst_4 : f32 to vector<16x128xf32>
    %9 = arith.select %7, %4, %8 : vector<16x128xi1>, vector<16x128xf32>
    %cst_5 = arith.constant dense<0.000000e+00> : vector<16xf32>
    %10 = vector.multi_reduction <add>, %9, %cst_5 [1] : vector<16x128xf32> to vector<16xf32>
    %11 = vector.shape_cast %10 : vector<16xf32> to vector<16x1xf32>
    %cst_6 = arith.constant 3.125000e-02 : f32
    %12 = vector.broadcast %cst_6 : f32 to vector<16x1xf32>
    %13 = arith.mulf %11, %12 : vector<16x1xf32>
    %14 = vector.broadcast %13 : vector<16x1xf32> to vector<16x128xf32>
    %15 = arith.subf %4, %14 : vector<16x128xf32>
    %cst_7 = arith.constant 0.000000e+00 : f32
    %16 = vector.broadcast %cst_7 : f32 to vector<16x128xf32>
    %17 = arith.select %7, %15, %16 : vector<16x128xi1>, vector<16x128xf32>
    %18 = arith.mulf %17, %17 : vector<16x128xf32>
    %cst_8 = arith.constant dense<0.000000e+00> : vector<16xf32>
    %19 = vector.multi_reduction <add>, %18, %cst_8 [1] : vector<16x128xf32> to vector<16xf32>
    %20 = vector.shape_cast %19 : vector<16xf32> to vector<16x1xf32>
    %cst_9 = arith.constant 3.125000e-02 : f32
    %21 = vector.broadcast %cst_9 : f32 to vector<16x1xf32>
    %22 = arith.mulf %20, %21 : vector<16x1xf32>
    %23 = vector.broadcast %13 : vector<16x1xf32> to vector<16x128xf32>
    %24 = arith.subf %4, %23 : vector<16x128xf32>
    %cst_10 = arith.constant 9.99999974E-6 : f32
    %25 = vector.broadcast %cst_10 : f32 to vector<16x1xf32>
    %26 = arith.addf %22, %25 : vector<16x1xf32>
    %27 = math.rsqrt %26 : vector<16x1xf32>
    %28 = vector.broadcast %27 : vector<16x1xf32> to vector<16x128xf32>
    %29 = arith.mulf %24, %28 : vector<16x128xf32>
    %c0_11 = arith.constant 0 : index
    %c0_12 = arith.constant 0 : index
    %30 = vector.load %arg2[%c0_11, %c0_12] : memref<16x128xf32, #tpu.memory_space<vmem>>, vector<16x128xf32>
    tpu.vector_store %arg2[%c0_11, %c0_12], %29 {strides = array<i32>} : memref<16x128xf32, #tpu.memory_space<vmem>>, vector<16x128xf32>,
    return
  }
}

module attributes {stable_mosaic.version = 11 : i64} {
  func.func @_pool_bn_kernel(%arg0: memref<9x16x128xf32, #tpu.memory_space<vmem>>, %arg1: memref<1x128xf32, #tpu.memory_space<vmem>>, %arg2: memref<16x128xf32, #tpu.memory_space<vmem>>) attributes {dimension_semantics = [], scalar_prefetch = 0 : i64, scratch_operands = 0 : i64, tpu.core_type = #tpu.core_type<tc>} {
    %c0 = arith.constant 0 : index
    %c0_0 = arith.constant 0 : index
    %c0_1 = arith.constant 0 : index
    %0 = vector.load %arg0[%c0, %c0_0, %c0_1] : memref<9x16x128xf32, #tpu.memory_space<vmem>>, vector<1x16x128xf32>
    %1 = vector.shape_cast %0 : vector<1x16x128xf32> to vector<16x128xf32>
    %c1 = arith.constant 1 : index
    %c0_2 = arith.constant 0 : index
    %c0_3 = arith.constant 0 : index
    %2 = vector.load %arg0[%c1, %c0_2, %c0_3] : memref<9x16x128xf32, #tpu.memory_space<vmem>>, vector<1x16x128xf32>
    %3 = vector.shape_cast %2 : vector<1x16x128xf32> to vector<16x128xf32>
    %4 = arith.maximumf %1, %3 : vector<16x128xf32>
    %c2 = arith.constant 2 : index
    %c0_4 = arith.constant 0 : index
    %c0_5 = arith.constant 0 : index
    %5 = vector.load %arg0[%c2, %c0_4, %c0_5] : memref<9x16x128xf32, #tpu.memory_space<vmem>>, vector<1x16x128xf32>
    %6 = vector.shape_cast %5 : vector<1x16x128xf32> to vector<16x128xf32>
    %7 = arith.maximumf %4, %6 : vector<16x128xf32>
    %c3 = arith.constant 3 : index
    %c0_6 = arith.constant 0 : index
    %c0_7 = arith.constant 0 : index
    %8 = vector.load %arg0[%c3, %c0_6, %c0_7] : memref<9x16x128xf32, #tpu.memory_space<vmem>>, vector<1x16x128xf32>
    %9 = vector.shape_cast %8 : vector<1x16x128xf32> to vector<16x128xf32>
    %10 = arith.maximumf %7, %9 : vector<16x128xf32>
    %c4 = arith.constant 4 : index
    %c0_8 = arith.constant 0 : index
    %c0_9 = arith.constant 0 : index
    %11 = vector.load %arg0[%c4, %c0_8, %c0_9] : memref<9x16x128xf32, #tpu.memory_space<vmem>>, vector<1x16x128xf32>
    %12 = vector.shape_cast %11 : vector<1x16x128xf32> to vector<16x128xf32>
    %13 = arith.maximumf %10, %12 : vector<16x128xf32>
    %c5 = arith.constant 5 : index
    %c0_10 = arith.constant 0 : index
    %c0_11 = arith.constant 0 : index
    %14 = vector.load %arg0[%c5, %c0_10, %c0_11] : memref<9x16x128xf32, #tpu.memory_space<vmem>>, vector<1x16x128xf32>
    %15 = vector.shape_cast %14 : vector<1x16x128xf32> to vector<16x128xf32>
    %16 = arith.maximumf %13, %15 : vector<16x128xf32>
    %c6 = arith.constant 6 : index
    %c0_12 = arith.constant 0 : index
    %c0_13 = arith.constant 0 : index
    %17 = vector.load %arg0[%c6, %c0_12, %c0_13] : memref<9x16x128xf32, #tpu.memory_space<vmem>>, vector<1x16x128xf32>
    %18 = vector.shape_cast %17 : vector<1x16x128xf32> to vector<16x128xf32>
    %19 = arith.maximumf %16, %18 : vector<16x128xf32>
    %c7 = arith.constant 7 : index
    %c0_14 = arith.constant 0 : index
    %c0_15 = arith.constant 0 : index
    %20 = vector.load %arg0[%c7, %c0_14, %c0_15] : memref<9x16x128xf32, #tpu.memory_space<vmem>>, vector<1x16x128xf32>
    %21 = vector.shape_cast %20 : vector<1x16x128xf32> to vector<16x128xf32>
    %22 = arith.maximumf %19, %21 : vector<16x128xf32>
    %c8 = arith.constant 8 : index
    %c0_16 = arith.constant 0 : index
    %c0_17 = arith.constant 0 : index
    %23 = vector.load %arg0[%c8, %c0_16, %c0_17] : memref<9x16x128xf32, #tpu.memory_space<vmem>>, vector<1x16x128xf32>
    %24 = vector.shape_cast %23 : vector<1x16x128xf32> to vector<16x128xf32>
    %25 = arith.maximumf %22, %24 : vector<16x128xf32>
    %26 = tpu.iota {dimensions = array<i32: 1>} : vector<16x128xi32>
    %c32_i32 = arith.constant 32 : i32
    %27 = vector.broadcast %c32_i32 : i32 to vector<16x128xi32>
    %28 = arith.cmpi slt, %26, %27 : vector<16x128xi32>
    %cst = arith.constant 0.000000e+00 : f32
    %29 = vector.broadcast %cst : f32 to vector<16x128xf32>
    %30 = arith.select %28, %25, %29 : vector<16x128xi1>, vector<16x128xf32>
    %cst_18 = arith.constant dense<0.000000e+00> : vector<16xf32>
    %31 = vector.multi_reduction <add>, %30, %cst_18 [1] : vector<16x128xf32> to vector<16xf32>
    %32 = vector.shape_cast %31 : vector<16xf32> to vector<16x1xf32>
    %cst_19 = arith.constant 3.125000e-02 : f32
    %33 = vector.broadcast %cst_19 : f32 to vector<16x1xf32>
    %34 = arith.mulf %32, %33 : vector<16x1xf32>
    %35 = vector.broadcast %34 : vector<16x1xf32> to vector<16x128xf32>
    %36 = arith.subf %25, %35 : vector<16x128xf32>
    %cst_20 = arith.constant 0.000000e+00 : f32
    %37 = vector.broadcast %cst_20 : f32 to vector<16x128xf32>
    %38 = arith.select %28, %36, %37 : vector<16x128xi1>, vector<16x128xf32>
    %39 = arith.mulf %38, %38 : vector<16x128xf32>
    %cst_21 = arith.constant dense<0.000000e+00> : vector<16xf32>
    %40 = vector.multi_reduction <add>, %39, %cst_21 [1] : vector<16x128xf32> to vector<16xf32>
    %41 = vector.shape_cast %40 : vector<16xf32> to vector<16x1xf32>
    %cst_22 = arith.constant 3.125000e-02 : f32
    %42 = vector.broadcast %cst_22 : f32 to vector<16x1xf32>
    %43 = arith.mulf %41, %42 : vector<16x1xf32>
    %44 = vector.broadcast %34 : vector<16x1xf32> to vector<16x128xf32>
    %45 = arith.subf %25, %44 : vector<16x128xf32>
    %cst_23 = arith.constant 9.99999974E-6 : f32
    %46 = vector.broadcast %cst_23 : f32 to vector<16x1xf32>
    %47 = arith.addf %43, %46 : vector<16x1xf32>
    %48 = math.rsqrt %47 : vector<16x1xf32>
    %49 = vector.broadcast %48 : vector<16x1xf32> to vector<16x128xf32>
    %50 = arith.mulf %45, %49 : vector<16x128xf32>
    %c0_24 = arith.constant 0 : index
    %c0_25 = arith.constant 0 : index
    %51 = vector.load %arg2[%c0_24, %c0_25] : memref<16x128xf32, #tpu.memory_space<vmem>>, vector<16x128xf32>
    tpu.vector_store %arg2[%c0_24, %c0_25], %50 {strides = array<i32>} : memref<16x128xf32, #tpu.memory_space<vmem>>, vector<16x128xf32>,
    return
  }
}

module attributes {stable_mosaic.version = 11 : i64} {
  func.func @_conv_bn_kernel(%arg0: memref<16x128xf32, #tpu.memory_space<vmem>>, %arg1: memref<128x128xf32, #tpu.memory_space<vmem>>, %arg2: memref<16x128xf32, #tpu.memory_space<vmem>>) attributes {dimension_semantics = [], scalar_prefetch = 0 : i64, scratch_operands = 0 : i64, tpu.core_type = #tpu.core_type<tc>} {
    %c0 = arith.constant 0 : index
    %c0_0 = arith.constant 0 : index
    %0 = vector.load %arg1[%c0, %c0_0] : memref<128x128xf32, #tpu.memory_space<vmem>>, vector<128x128xf32>
    %c0_1 = arith.constant 0 : index
    %c0_2 = arith.constant 0 : index
    %1 = vector.load %arg0[%c0_1, %c0_2] : memref<16x128xf32, #tpu.memory_space<vmem>>, vector<16x128xf32>
    %cst = arith.constant dense<0.000000e+00> : vector<16x128xf32>
    %2 = tpu.matmul %1, %0, %cst {dimension_numbers = #tpu.dot_dimension_numbers<[1], [0], [0], [1], [0, 0, 1, 1], [], []>} : vector<16x128xf32>, vector<128x128xf32>, vector<16x128xf32> -> vector<16x128xf32>
    %c0_3 = arith.constant 0 : index
    %c0_4 = arith.constant 0 : index
    %3 = vector.load %arg2[%c0_3, %c0_4] : memref<16x128xf32, #tpu.memory_space<vmem>>, vector<16x128xf32>
    tpu.vector_store %arg2[%c0_3, %c0_4], %2 {strides = array<i32>} : memref<16x128xf32, #tpu.memory_space<vmem>>, vector<16x128xf32>,
    return
  }
}

module attributes {stable_mosaic.version = 11 : i64} {
  func.func @_pool_bn_kernel(%arg0: memref<9x16x128xf32, #tpu.memory_space<vmem>>, %arg1: memref<1x128xf32, #tpu.memory_space<vmem>>, %arg2: memref<16x128xf32, #tpu.memory_space<vmem>>) attributes {dimension_semantics = [], scalar_prefetch = 0 : i64, scratch_operands = 0 : i64, tpu.core_type = #tpu.core_type<tc>} {
    %c0 = arith.constant 0 : index
    %c0_0 = arith.constant 0 : index
    %c0_1 = arith.constant 0 : index
    %0 = vector.load %arg0[%c0, %c0_0, %c0_1] : memref<9x16x128xf32, #tpu.memory_space<vmem>>, vector<1x16x128xf32>
    %1 = vector.shape_cast %0 : vector<1x16x128xf32> to vector<16x128xf32>
    %c1 = arith.constant 1 : index
    %c0_2 = arith.constant 0 : index
    %c0_3 = arith.constant 0 : index
    %2 = vector.load %arg0[%c1, %c0_2, %c0_3] : memref<9x16x128xf32, #tpu.memory_space<vmem>>, vector<1x16x128xf32>
    %3 = vector.shape_cast %2 : vector<1x16x128xf32> to vector<16x128xf32>
    %4 = arith.addf %1, %3 : vector<16x128xf32>
    %c2 = arith.constant 2 : index
    %c0_4 = arith.constant 0 : index
    %c0_5 = arith.constant 0 : index
    %5 = vector.load %arg0[%c2, %c0_4, %c0_5] : memref<9x16x128xf32, #tpu.memory_space<vmem>>, vector<1x16x128xf32>
    %6 = vector.shape_cast %5 : vector<1x16x128xf32> to vector<16x128xf32>
    %7 = arith.addf %4, %6 : vector<16x128xf32>
    %c3 = arith.constant 3 : index
    %c0_6 = arith.constant 0 : index
    %c0_7 = arith.constant 0 : index
    %8 = vector.load %arg0[%c3, %c0_6, %c0_7] : memref<9x16x128xf32, #tpu.memory_space<vmem>>, vector<1x16x128xf32>
    %9 = vector.shape_cast %8 : vector<1x16x128xf32> to vector<16x128xf32>
    %10 = arith.addf %7, %9 : vector<16x128xf32>
    %c4 = arith.constant 4 : index
    %c0_8 = arith.constant 0 : index
    %c0_9 = arith.constant 0 : index
    %11 = vector.load %arg0[%c4, %c0_8, %c0_9] : memref<9x16x128xf32, #tpu.memory_space<vmem>>, vector<1x16x128xf32>
    %12 = vector.shape_cast %11 : vector<1x16x128xf32> to vector<16x128xf32>
    %13 = arith.addf %10, %12 : vector<16x128xf32>
    %c5 = arith.constant 5 : index
    %c0_10 = arith.constant 0 : index
    %c0_11 = arith.constant 0 : index
    %14 = vector.load %arg0[%c5, %c0_10, %c0_11] : memref<9x16x128xf32, #tpu.memory_space<vmem>>, vector<1x16x128xf32>
    %15 = vector.shape_cast %14 : vector<1x16x128xf32> to vector<16x128xf32>
    %16 = arith.addf %13, %15 : vector<16x128xf32>
    %c6 = arith.constant 6 : index
    %c0_12 = arith.constant 0 : index
    %c0_13 = arith.constant 0 : index
    %17 = vector.load %arg0[%c6, %c0_12, %c0_13] : memref<9x16x128xf32, #tpu.memory_space<vmem>>, vector<1x16x128xf32>
    %18 = vector.shape_cast %17 : vector<1x16x128xf32> to vector<16x128xf32>
    %19 = arith.addf %16, %18 : vector<16x128xf32>
    %c7 = arith.constant 7 : index
    %c0_14 = arith.constant 0 : index
    %c0_15 = arith.constant 0 : index
    %20 = vector.load %arg0[%c7, %c0_14, %c0_15] : memref<9x16x128xf32, #tpu.memory_space<vmem>>, vector<1x16x128xf32>
    %21 = vector.shape_cast %20 : vector<1x16x128xf32> to vector<16x128xf32>
    %22 = arith.addf %19, %21 : vector<16x128xf32>
    %c8 = arith.constant 8 : index
    %c0_16 = arith.constant 0 : index
    %c0_17 = arith.constant 0 : index
    %23 = vector.load %arg0[%c8, %c0_16, %c0_17] : memref<9x16x128xf32, #tpu.memory_space<vmem>>, vector<1x16x128xf32>
    %24 = vector.shape_cast %23 : vector<1x16x128xf32> to vector<16x128xf32>
    %25 = arith.addf %22, %24 : vector<16x128xf32>
    %c0_18 = arith.constant 0 : index
    %c0_19 = arith.constant 0 : index
    %26 = vector.load %arg1[%c0_18, %c0_19] : memref<1x128xf32, #tpu.memory_space<vmem>>, vector<1x128xf32>
    %27 = vector.broadcast %26 : vector<1x128xf32> to vector<16x128xf32>
    %28 = arith.mulf %25, %27 : vector<16x128xf32>
    %29 = tpu.iota {dimensions = array<i32: 1>} : vector<16x128xi32>
    %c32_i32 = arith.constant 32 : i32
    %30 = vector.broadcast %c32_i32 : i32 to vector<16x128xi32>
    %31 = arith.cmpi slt, %29, %30 : vector<16x128xi32>
    %cst = arith.constant 0.000000e+00 : f32
    %32 = vector.broadcast %cst : f32 to vector<16x128xf32>
    %33 = arith.select %31, %28, %32 : vector<16x128xi1>, vector<16x128xf32>
    %cst_20 = arith.constant dense<0.000000e+00> : vector<16xf32>
    %34 = vector.multi_reduction <add>, %33, %cst_20 [1] : vector<16x128xf32> to vector<16xf32>
    %35 = vector.shape_cast %34 : vector<16xf32> to vector<16x1xf32>
    %cst_21 = arith.constant 3.125000e-02 : f32
    %36 = vector.broadcast %cst_21 : f32 to vector<16x1xf32>
    %37 = arith.mulf %35, %36 : vector<16x1xf32>
    %38 = vector.broadcast %37 : vector<16x1xf32> to vector<16x128xf32>
    %39 = arith.subf %28, %38 : vector<16x128xf32>
    %cst_22 = arith.constant 0.000000e+00 : f32
    %40 = vector.broadcast %cst_22 : f32 to vector<16x128xf32>
    %41 = arith.select %31, %39, %40 : vector<16x128xi1>, vector<16x128xf32>
    %42 = arith.mulf %41, %41 : vector<16x128xf32>
    %cst_23 = arith.constant dense<0.000000e+00> : vector<16xf32>
    %43 = vector.multi_reduction <add>, %42, %cst_23 [1] : vector<16x128xf32> to vector<16xf32>
    %44 = vector.shape_cast %43 : vector<16xf32> to vector<16x1xf32>
    %cst_24 = arith.constant 3.125000e-02 : f32
    %45 = vector.broadcast %cst_24 : f32 to vector<16x1xf32>
    %46 = arith.mulf %44, %45 : vector<16x1xf32>
    %47 = vector.broadcast %37 : vector<16x1xf32> to vector<16x128xf32>
    %48 = arith.subf %28, %47 : vector<16x128xf32>
    %cst_25 = arith.constant 9.99999974E-6 : f32
    %49 = vector.broadcast %cst_25 : f32 to vector<16x1xf32>
    %50 = arith.addf %46, %49 : vector<16x1xf32>
    %51 = math.rsqrt %50 : vector<16x1xf32>
    %52 = vector.broadcast %51 : vector<16x1xf32> to vector<16x128xf32>
    %53 = arith.mulf %48, %52 : vector<16x128xf32>
    %c0_26 = arith.constant 0 : index
    %c0_27 = arith.constant 0 : index
    %54 = vector.load %arg2[%c0_26, %c0_27] : memref<16x128xf32, #tpu.memory_space<vmem>>, vector<16x128xf32>
    tpu.vector_store %arg2[%c0_26, %c0_27], %53 {strides = array<i32>} : memref<16x128xf32, #tpu.memory_space<vmem>>, vector<16x128xf32>,
    return
  }
}

</mosaic_0001>

<llo_original>
// kernel: _forward_impl.65
$region0: #{_forward_impl.65}
  #allocation0 [shape = 'u32[]', space=smem, size = 0x4, offset = 0x4, fixed_abs, tag = 'smem constant byte address 0x4 - core index']
  #allocation1 [shape = 'u32[144,128]{1,0:T(1,128)}', space=vmem, size = 0x12000, scoped, tag = 'internal scratch']
  %s0 = inlined_call_operand.vmem [shape: f32[8,128], index: 0, kind: input, shape index: {}]
  %s1 = inlined_call_operand.vmem [shape: f32[128,512], index: 1, kind: input, shape index: {}]
  %s2 = inlined_call_operand.vmem [shape: f32[8,512], index: 2, kind: output, shape index: {}]
  %s3 = sld [smem:[#allocation0]]
  $region18: #{_forward_impl.65} parent=0
    _
  %s5 = ssub.s32 1, %s3
  %s6 = scalar_select 0, %s5, %s3
  // Predicated region
  $region2: #{_forward_impl.65} parent=0 // pred_check
    _
  $region3: #{_forward_impl.65} parent=0 // pred_check_branch
    %8 = sbr.rel (0) target = $region5
  $region4: #{_forward_impl.65} parent=0 // pred_region
    _
  $region5: #{_forward_impl.65} parent=0 // pred_fallthru
    _
  // Predicated region
  $region6: #{_forward_impl.65} parent=0 // pred_check
    _
  $region7: #{_forward_impl.65} parent=0 // pred_check_branch
    %10 = sbr.rel (0) target = $region9
  $region8: #{_forward_impl.65} parent=0 // pred_region
    _
  $region9: #{_forward_impl.65} parent=0 // pred_fallthru
    _
  %v11 = vld [vmem:[%s1] sm:$0xff]
  %v12 = vld [vmem:[%s1 + $0x8] sm:$0xff]
  %v13 = vld [vmem:[%s1 + $0x10] sm:$0xff]
  %v14 = vld [vmem:[%s1 + $0x18] sm:$0xff]
  %v15 = vld [vmem:[%s1 + $0x20] sm:$0xff]
  %v16 = vld [vmem:[%s1 + $0x28] sm:$0xff]
  %v17 = vld [vmem:[%s1 + $0x30] sm:$0xff]
  %v18 = vld [vmem:[%s1 + $0x38] sm:$0xff]
  %v19 = vld [vmem:[%s1 + $0x40] sm:$0xff]
  %v20 = vld [vmem:[%s1 + $0x48] sm:$0xff]
  %v21 = vld [vmem:[%s1 + $0x50] sm:$0xff]
  %v22 = vld [vmem:[%s1 + $0x58] sm:$0xff]
  %v23 = vld [vmem:[%s1 + $0x60] sm:$0xff]
  %v24 = vld [vmem:[%s1 + $0x68] sm:$0xff]
  %v25 = vld [vmem:[%s1 + $0x70] sm:$0xff]
  %v26 = vld [vmem:[%s1 + $0x78] sm:$0xff]
  %v27 = vld [vmem:[%s1 + $0x80] sm:$0xff]
  %v28 = vld [vmem:[%s1 + $0x88] sm:$0xff]
  %v29 = vld [vmem:[%s1 + $0x90] sm:$0xff]
  %v30 = vld [vmem:[%s1 + $0x98] sm:$0xff]
  %v31 = vld [vmem:[%s1 + $0xa0] sm:$0xff]
  %v32 = vld [vmem:[%s1 + $0xa8] sm:$0xff]
  %v33 = vld [vmem:[%s1 + $0xb0] sm:$0xff]
  %v34 = vld [vmem:[%s1 + $0xb8] sm:$0xff]
  %v35 = vld [vmem:[%s1 + $0xc0] sm:$0xff]
  %v36 = vld [vmem:[%s1 + $0xc8] sm:$0xff]
  %v37 = vld [vmem:[%s1 + $0xd0] sm:$0xff]
  %v38 = vld [vmem:[%s1 + $0xd8] sm:$0xff]
  %v39 = vld [vmem:[%s1 + $0xe0] sm:$0xff]
  %v40 = vld [vmem:[%s1 + $0xe8] sm:$0xff]
  %v41 = vld [vmem:[%s1 + $0xf0] sm:$0xff]
  %v42 = vld [vmem:[%s1 + $0xf8] sm:$0xff]
  %v43 = vld [vmem:[%s1 + $0x100] sm:$0xff]
  %v44 = vld [vmem:[%s1 + $0x108] sm:$0xff]
  %v45 = vld [vmem:[%s1 + $0x110] sm:$0xff]
  %v46 = vld [vmem:[%s1 + $0x118] sm:$0xff]
  %v47 = vld [vmem:[%s1 + $0x120] sm:$0xff]
  %v48 = vld [vmem:[%s1 + $0x128] sm:$0xff]
  %v49 = vld [vmem:[%s1 + $0x130] sm:$0xff]
  %v50 = vld [vmem:[%s1 + $0x138] sm:$0xff]
  %v51 = vld [vmem:[%s1 + $0x140] sm:$0xff]
  %v52 = vld [vmem:[%s1 + $0x148] sm:$0xff]
  %v53 = vld [vmem:[%s1 + $0x150] sm:$0xff]
  %v54 = vld [vmem:[%s1 + $0x158] sm:$0xff]
  %v55 = vld [vmem:[%s1 + $0x160] sm:$0xff]
  %v56 = vld [vmem:[%s1 + $0x168] sm:$0xff]
  %v57 = vld [vmem:[%s1 + $0x170] sm:$0xff]
  %v58 = vld [vmem:[%s1 + $0x178] sm:$0xff]
  %v59 = vld [vmem:[%s1 + $0x180] sm:$0xff]
  %v60 = vld [vmem:[%s1 + $0x188] sm:$0xff]
  %v61 = vld [vmem:[%s1 + $0x190] sm:$0xff]
  %v62 = vld [vmem:[%s1 + $0x198] sm:$0xff]
  %v63 = vld [vmem:[%s1 + $0x1a0] sm:$0xff]
  %v64 = vld [vmem:[%s1 + $0x1a8] sm:$0xff]
  %v65 = vld [vmem:[%s1 + $0x1b0] sm:$0xff]
  %v66 = vld [vmem:[%s1 + $0x1b8] sm:$0xff]
  %v67 = vld [vmem:[%s1 + $0x1c0] sm:$0xff]
  %v68 = vld [vmem:[%s1 + $0x1c8] sm:$0xff]
  %v69 = vld [vmem:[%s1 + $0x1d0] sm:$0xff]
  %v70 = vld [vmem:[%s1 + $0x1d8] sm:$0xff]
  %v71 = vld [vmem:[%s1 + $0x1e0] sm:$0xff]
  %v72 = vld [vmem:[%s1 + $0x1e8] sm:$0xff]
  %v73 = vld [vmem:[%s1 + $0x1f0] sm:$0xff]
  %v74 = vld [vmem:[%s1 + $0x1f8] sm:$0xff]
  %v75 = vmax.f32 %v11, 0.0
  %v76 = vmax.f32 %v12, 0.0
  %v77 = vmax.f32 %v13, 0.0
  %v78 = vmax.f32 %v14, 0.0
  %v79 = vmax.f32 %v15, 0.0
  %v80 = vmax.f32 %v16, 0.0
  %v81 = vmax.f32 %v17, 0.0
  %v82 = vmax.f32 %v18, 0.0
  %v83 = vmax.f32 %v19, 0.0
  %v84 = vmax.f32 %v20, 0.0
  %v85 = vmax.f32 %v21, 0.0
  %v86 = vmax.f32 %v22, 0.0
  %v87 = vmax.f32 %v23, 0.0
  %v88 = vmax.f32 %v24, 0.0
  %v89 = vmax.f32 %v25, 0.0
  %v90 = vmax.f32 %v26, 0.0
  %v91 = vmax.f32 %v27, 0.0
  %v92 = vmax.f32 %v28, 0.0
  %v93 = vmax.f32 %v29, 0.0
  %v94 = vmax.f32 %v30, 0.0
  %v95 = vmax.f32 %v31, 0.0
  %v96 = vmax.f32 %v32, 0.0
  %v97 = vmax.f32 %v33, 0.0
  %v98 = vmax.f32 %v34, 0.0
  %v99 = vmax.f32 %v35, 0.0
  %v100 = vmax.f32 %v36, 0.0
  %v101 = vmax.f32 %v37, 0.0
  %v102 = vmax.f32 %v38, 0.0
  %v103 = vmax.f32 %v39, 0.0
  %v104 = vmax.f32 %v40, 0.0
  %v105 = vmax.f32 %v41, 0.0
  %v106 = vmax.f32 %v42, 0.0
  %v107 = vmax.f32 %v43, 0.0
  %v108 = vmax.f32 %v44, 0.0
  %v109 = vmax.f32 %v45, 0.0
  %v110 = vmax.f32 %v46, 0.0
  %v111 = vmax.f32 %v47, 0.0
  %v112 = vmax.f32 %v48, 0.0
  %v113 = vmax.f32 %v49, 0.0
  %v114 = vmax.f32 %v50, 0.0
  %v115 = vmax.f32 %v51, 0.0
  %v116 = vmax.f32 %v52, 0.0
  %v117 = vmax.f32 %v53, 0.0
  %v118 = vmax.f32 %v54, 0.0
  %v119 = vmax.f32 %v55, 0.0
  %v120 = vmax.f32 %v56, 0.0
  %v121 = vmax.f32 %v57, 0.0
  %v122 = vmax.f32 %v58, 0.0
  %v123 = vmax.f32 %v59, 0.0
  %v124 = vmax.f32 %v60, 0.0
  %v125 = vmax.f32 %v61, 0.0
  %v126 = vmax.f32 %v62, 0.0
  %v127 = vmax.f32 %v63, 0.0
  %v128 = vmax.f32 %v64, 0.0
  %v129 = vmax.f32 %v65, 0.0
  %v130 = vmax.f32 %v66, 0.0
  %v131 = vmax.f32 %v67, 0.0
  %v132 = vmax.f32 %v68, 0.0
  %v133 = vmax.f32 %v69, 0.0
  %v134 = vmax.f32 %v70, 0.0
  %v135 = vmax.f32 %v71, 0.0
  %v136 = vmax.f32 %v72, 0.0
  %v137 = vmax.f32 %v73, 0.0
  %v138 = vmax.f32 %v74, 0.0
  %v139 = vld [vmem:[%s0] sm:$0xff]
  %140 = vmatprep.subr.mxu0 %v136
  %141 = vmatpush1.msra.mxu0 %v135
  %142 = vmatprep.subr.mxu0 %v132
  %143 = vmatpush1.msra.mxu0 %v131
  %144 = vmatprep.subr.mxu0 %v128
  %145 = vmatpush1.msra.mxu0 %v127
  %146 = vmatprep.subr.mxu0 %v124
  %147 = vmatpush1.msra.mxu0 %v123
  %148 = vmatprep.subr.mxu0 %v120
  %149 = vmatpush1.msra.mxu0 %v119
  %150 = vmatprep.subr.mxu0 %v116
  %151 = vmatpush1.msra.mxu0 %v115
  %152 = vmatprep.subr.mxu0 %v112
  %153 = vmatpush1.msra.mxu0 %v111
  %154 = vmatprep.subr.mxu0 %v108
  %155 = vmatpush1.msra.mxu0 %v107
  %156 = vmatprep.subr.mxu0 %v104
  %157 = vmatpush1.msra.mxu0 %v103
  %158 = vmatprep.subr.mxu0 %v100
  %159 = vmatpush1.msra.mxu0 %v99
  %160 = vmatprep.subr.mxu0 %v96
  %161 = vmatpush1.msra.mxu0 %v95
  %162 = vmatprep.subr.mxu0 %v92
  %163 = vmatpush1.msra.mxu0 %v91
  %164 = vmatprep.subr.mxu0 %v88
  %165 = vmatpush1.msra.mxu0 %v87
  %166 = vmatprep.subr.mxu0 %v84
  %167 = vmatpush1.msra.mxu0 %v83
  %168 = vmatprep.subr.mxu0 %v80
  %169 = vmatpush1.msra.mxu0 %v79
  %170 = vmatprep.subr.mxu0 %v76
  %171 = vmatpush1.msra.mxu0 %v75
  %172 = vmatprep.subr.mxu0 0.0
  %173 = vmatpush2.msra.mxu0 0.0
  %174 = vmatprep.subr.mxu0 0.0
  %175 = vmatpush2.msra.mxu0 0.0
  %176 = vmatprep.subr.mxu0 0.0
  %177 = vmatpush2.msra.mxu0 0.0
  %178 = vmatprep.subr.mxu0 0.0
  %179 = vmatpush2.msra.mxu0 0.0
  %180 = vmatprep.subr.mxu0 0.0
  %181 = vmatpush2.msra.mxu0 0.0
  %182 = vmatprep.subr.mxu0 0.0
  %183 = vmatpush2.msra.mxu0 0.0
  %184 = vmatprep.subr.mxu0 0.0
  %185 = vmatpush2.msra.mxu0 0.0
  %186 = vmatprep.subr.mxu0 0.0
  %187 = vmatpush2.msra.mxu0 0.0
  %188 = vmatprep.subr.mxu0 0.0
  %189 = vmatpush2.msra.mxu0 0.0
  %190 = vmatprep.subr.mxu0 0.0
  %191 = vmatpush2.msra.mxu0 0.0
  %192 = vmatprep.subr.mxu0 0.0
  %193 = vmatpush2.msra.mxu0 0.0
  %194 = vmatprep.subr.mxu0 0.0
  %195 = vmatpush2.msra.mxu0 0.0
  %196 = vmatprep.subr.mxu0 0.0
  %197 = vmatpush2.msra.mxu0 0.0
  %198 = vmatprep.subr.mxu0 0.0
  %199 = vmatpush2.msra.mxu0 0.0
  %200 = vmatprep.subr.mxu0 0.0
  %201 = vmatpush2.msra.mxu0 0.0
  %202 = vmatprep.subr.mxu0 0.0
  %203 = vmatpush2.msra.mxu0 0.0
  %204 = vmatprep.mubr.f32.mxu0 0.0
  %205 = vmatmul.mubr.f32.gmra.mxu0 %v139
  %v206 = vpop.f32.mrf.mxu0
  %v207 = vadd.f32 0.0, %v206
  %v208 = vpop.f32.mrf.mxu0
  %v209 = vadd.f32 0.0, %v208
  %210 = vdwg.mxu0
  %211 = vmatprep.subr.mxu0 %v138
  %212 = vmatpush1.msra.mxu0 %v137
  %213 = vmatprep.subr.mxu0 %v134
  %214 = vmatpush1.msra.mxu0 %v133
  %215 = vmatprep.subr.mxu0 %v130
  %216 = vmatpush1.msra.mxu0 %v129
  %217 = vmatprep.subr.mxu0 %v126
  %218 = vmatpush1.msra.mxu0 %v125
  %219 = vmatprep.subr.mxu0 %v122
  %220 = vmatpush1.msra.mxu0 %v121
  %221 = vmatprep.subr.mxu0 %v118
  %222 = vmatpush1.msra.mxu0 %v117
  %223 = vmatprep.subr.mxu0 %v114
  %224 = vmatpush1.msra.mxu0 %v113
  %225 = vmatprep.subr.mxu0 %v110
  %226 = vmatpush1.msra.mxu0 %v109
  %227 = vmatprep.subr.mxu0 %v106
  %228 = vmatpush1.msra.mxu0 %v105
  %229 = vmatprep.subr.mxu0 %v102
  %230 = vmatpush1.msra.mxu0 %v101
  %231 = vmatprep.subr.mxu0 %v98
  %232 = vmatpush1.msra.mxu0 %v97
  %233 = vmatprep.subr.mxu0 %v94
  %234 = vmatpush1.msra.mxu0 %v93
  %235 = vmatprep.subr.mxu0 %v90
  %236 = vmatpush1.msra.mxu0 %v89
  %237 = vmatprep.subr.mxu0 %v86
  %238 = vmatpush1.msra.mxu0 %v85
  %239 = vmatprep.subr.mxu0 %v82
  %240 = vmatpush1.msra.mxu0 %v81
  %241 = vmatprep.subr.mxu0 %v78
  %242 = vmatpush1.msra.mxu0 %v77
  %243 = vmatprep.subr.mxu0 0.0
  %244 = vmatpush2.msra.mxu0 0.0
  %245 = vmatprep.subr.mxu0 0.0
  %246 = vmatpush2.msra.mxu0 0.0
  %247 = vmatprep.subr.mxu0 0.0
  %248 = vmatpush2.msra.mxu0 0.0
  %249 = vmatprep.subr.mxu0 0.0
  %250 = vmatpush2.msra.mxu0 0.0
  %251 = vmatprep.subr.mxu0 0.0
  %252 = vmatpush2.msra.mxu0 0.0
  %253 = vmatprep.subr.mxu0 0.0
  %254 = vmatpush2.msra.mxu0 0.0
  %255 = vmatprep.subr.mxu0 0.0
  %256 = vmatpush2.msra.mxu0 0.0
  %257 = vmatprep.subr.mxu0 0.0
  %258 = vmatpush2.msra.mxu0 0.0
  %259 = vmatprep.subr.mxu0 0.0
  %260 = vmatpush2.msra.mxu0 0.0
  %261 = vmatprep.subr.mxu0 0.0
  %262 = vmatpush2.msra.mxu0 0.0
  %263 = vmatprep.subr.mxu0 0.0
  %264 = vmatpush2.msra.mxu0 0.0
  %265 = vmatprep.subr.mxu0 0.0
  %266 = vmatpush2.msra.mxu0 0.0
  %267 = vmatprep.subr.mxu0 0.0
  %268 = vmatpush2.msra.mxu0 0.0
  %269 = vmatprep.subr.mxu0 0.0
  %270 = vmatpush2.msra.mxu0 0.0
  %271 = vmatprep.subr.mxu0 0.0
  %272 = vmatpush2.msra.mxu0 0.0
  %273 = vmatprep.subr.mxu0 0.0
  %274 = vmatpush2.msra.mxu0 0.0
  %275 = vmatprep.mubr.f32.mxu0 0.0
  %276 = vmatmul.mubr.f32.gmra.mxu0 %v139
  %v277 = vpop.f32.mrf.mxu0
  %v278 = vadd.f32 0.0, %v277
  %v279 = vpop.f32.mrf.mxu0
  %v280 = vadd.f32 0.0, %v279
  %281 = vdwg.mxu0
  %v282 = vadd.f32 %v207, %v209
  %v283 = vadd.f32 %v282, %v278
  %v284 = vadd.f32 %v283, %v280
  %285 = vadd.xlane.f32.xlu0 %v284
  %v286 = vpop.xlane.xlu0 %285
  %v287 = vmul.f32 %v286, 0.001953125
  %v288 = vsub.f32 %v207, %v287
  %v289 = vsub.f32 %v209, %v287
  %v290 = vsub.f32 %v278, %v287
  %v291 = vsub.f32 %v280, %v287
  %v292 = vmul.f32 %v288, %v288
  %v293 = vmul.f32 %v289, %v289
  %v294 = vmul.f32 %v290, %v290
  %v295 = vmul.f32 %v291, %v291
  %v296 = vadd.f32 %v292, %v293
  %v297 = vadd.f32 %v296, %v294
  %v298 = vadd.f32 %v297, %v295
  %299 = vadd.xlane.f32.xlu0 %v298
  %v300 = vpop.xlane.xlu0 %299
  %v301 = vmul.f32 %v300, 0.001953125
  %v302 = vadd.f32 %v301, 1e-05
  %v303 = vrsqrt.pop %v302
  %v304 = vmul.f32 %v288, %v303
  %v305 = vmul.f32 %v289, %v303
  %v306 = vmul.f32 %v290, %v303
  %v307 = vmul.f32 %v291, %v303
  %308 = vst [vmem:[%s2] sm:$0xff] %v304
  %309 = vst [vmem:[%s2 + $0x8] sm:$0xff] %v305
  %310 = vst [vmem:[%s2 + $0x10] sm:$0xff] %v306
  %311 = vst [vmem:[%s2 + $0x18] sm:$0xff] %v307
  // Predicated region
  $region10: #{_forward_impl.65} parent=0 // pred_check
    _
  $region11: #{_forward_impl.65} parent=0 // pred_check_branch
    %313 = sbr.rel (0) target = $region13
  $region12: #{_forward_impl.65} parent=0 // pred_region
    _
  $region13: #{_forward_impl.65} parent=0 // pred_fallthru
    _
  // Predicated region
  $region14: #{_forward_impl.65} parent=0 // pred_check
    _
  $region15: #{_forward_impl.65} parent=0 // pred_check_branch
    %315 = sbr.rel (0) target = $region17
  $region16: #{_forward_impl.65} parent=0 // pred_region
    _
  $region17: #{_forward_impl.65} parent=0 // pred_fallthru
    _

// kernel: _forward_impl.64
$region0: #{_forward_impl.64}
  #allocation0 [shape = 'u32[]', space=smem, size = 0x4, offset = 0x4, fixed_abs, tag = 'smem constant byte address 0x4 - core index']
  #allocation1 [shape = 'u32[144,128]{1,0:T(1,128)}', space=vmem, size = 0x12000, scoped, tag = 'internal scratch']
  %s0 = inlined_call_operand.vmem [shape: f32[16,128], index: 0, kind: input, shape index: {}]
  %s1 = inlined_call_operand.vmem [shape: f32[128,512], index: 1, kind: input, shape index: {}]
  %s2 = inlined_call_operand.vmem [shape: f32[16,512], index: 2, kind: output, shape index: {}]
  %s3 = sld [smem:[#allocation0]]
  $region18: #{_forward_impl.64} parent=0
    _
  %s5 = ssub.s32 1, %s3
  %s6 = scalar_select 0, %s5, %s3
  // Predicated region
  $region2: #{_forward_impl.64} parent=0 // pred_check
    _
  $region3: #{_forward_impl.64} parent=0 // pred_check_branch
    %8 = sbr.rel (0) target = $region5
  $region4: #{_forward_impl.64} parent=0 // pred_region
    _
  $region5: #{_forward_impl.64} parent=0 // pred_fallthru
    _
  // Predicated region
  $region6: #{_forward_impl.64} parent=0 // pred_check
    _
  $region7: #{_forward_impl.64} parent=0 // pred_check_branch
    %10 = sbr.rel (0) target = $region9
  $region8: #{_forward_impl.64} parent=0 // pred_region
    _
  $region9: #{_forward_impl.64} parent=0 // pred_fallthru
    _
  %v11 = vld [vmem:[%s1] sm:$0xff]
  %v12 = vld [vmem:[%s1 + $0x8] sm:$0xff]
  %v13 = vld [vmem:[%s1 + $0x10] sm:$0xff]
  %v14 = vld [vmem:[%s1 + $0x18] sm:$0xff]
  %v15 = vld [vmem:[%s1 + $0x20] sm:$0xff]
  %v16 = vld [vmem:[%s1 + $0x28] sm:$0xff]
  %v17 = vld [vmem:[%s1 + $0x30] sm:$0xff]
  %v18 = vld [vmem:[%s1 + $0x38] sm:$0xff]
  %v19 = vld [vmem:[%s1 + $0x40] sm:$0xff]
  %v20 = vld [vmem:[%s1 + $0x48] sm:$0xff]
  %v21 = vld [vmem:[%s1 + $0x50] sm:$0xff]
  %v22 = vld [vmem:[%s1 + $0x58] sm:$0xff]
  %v23 = vld [vmem:[%s1 + $0x60] sm:$0xff]
  %v24 = vld [vmem:[%s1 + $0x68] sm:$0xff]
  %v25 = vld [vmem:[%s1 + $0x70] sm:$0xff]
  %v26 = vld [vmem:[%s1 + $0x78] sm:$0xff]
  %v27 = vld [vmem:[%s1 + $0x80] sm:$0xff]
  %v28 = vld [vmem:[%s1 + $0x88] sm:$0xff]
  %v29 = vld [vmem:[%s1 + $0x90] sm:$0xff]
  %v30 = vld [vmem:[%s1 + $0x98] sm:$0xff]
  %v31 = vld [vmem:[%s1 + $0xa0] sm:$0xff]
  %v32 = vld [vmem:[%s1 + $0xa8] sm:$0xff]
  %v33 = vld [vmem:[%s1 + $0xb0] sm:$0xff]
  %v34 = vld [vmem:[%s1 + $0xb8] sm:$0xff]
  %v35 = vld [vmem:[%s1 + $0xc0] sm:$0xff]
  %v36 = vld [vmem:[%s1 + $0xc8] sm:$0xff]
  %v37 = vld [vmem:[%s1 + $0xd0] sm:$0xff]
  %v38 = vld [vmem:[%s1 + $0xd8] sm:$0xff]
  %v39 = vld [vmem:[%s1 + $0xe0] sm:$0xff]
  %v40 = vld [vmem:[%s1 + $0xe8] sm:$0xff]
  %v41 = vld [vmem:[%s1 + $0xf0] sm:$0xff]
  %v42 = vld [vmem:[%s1 + $0xf8] sm:$0xff]
  %v43 = vld [vmem:[%s1 + $0x100] sm:$0xff]
  %v44 = vld [vmem:[%s1 + $0x108] sm:$0xff]
  %v45 = vld [vmem:[%s1 + $0x110] sm:$0xff]
  %v46 = vld [vmem:[%s1 + $0x118] sm:$0xff]
  %v47 = vld [vmem:[%s1 + $0x120] sm:$0xff]
  %v48 = vld [vmem:[%s1 + $0x128] sm:$0xff]
  %v49 = vld [vmem:[%s1 + $0x130] sm:$0xff]
  %v50 = vld [vmem:[%s1 + $0x138] sm:$0xff]
  %v51 = vld [vmem:[%s1 + $0x140] sm:$0xff]
  %v52 = vld [vmem:[%s1 + $0x148] sm:$0xff]
  %v53 = vld [vmem:[%s1 + $0x150] sm:$0xff]
  %v54 = vld [vmem:[%s1 + $0x158] sm:$0xff]
  %v55 = vld [vmem:[%s1 + $0x160] sm:$0xff]
  %v56 = vld [vmem:[%s1 + $0x168] sm:$0xff]
  %v57 = vld [vmem:[%s1 + $0x170] sm:$0xff]
  %v58 = vld [vmem:[%s1 + $0x178] sm:$0xff]
  %v59 = vld [vmem:[%s1 + $0x180] sm:$0xff]
  %v60 = vld [vmem:[%s1 + $0x188] sm:$0xff]
  %v61 = vld [vmem:[%s1 + $0x190] sm:$0xff]
  %v62 = vld [vmem:[%s1 + $0x198] sm:$0xff]
  %v63 = vld [vmem:[%s1 + $0x1a0] sm:$0xff]
  %v64 = vld [vmem:[%s1 + $0x1a8] sm:$0xff]
  %v65 = vld [vmem:[%s1 + $0x1b0] sm:$0xff]
  %v66 = vld [vmem:[%s1 + $0x1b8] sm:$0xff]
  %v67 = vld [vmem:[%s1 + $0x1c0] sm:$0xff]
  %v68 = vld [vmem:[%s1 + $0x1c8] sm:$0xff]
  %v69 = vld [vmem:[%s1 + $0x1d0] sm:$0xff]
  %v70 = vld [vmem:[%s1 + $0x1d8] sm:$0xff]
  %v71 = vld [vmem:[%s1 + $0x1e0] sm:$0xff]
  %v72 = vld [vmem:[%s1 + $0x1e8] sm:$0xff]
  %v73 = vld [vmem:[%s1 + $0x1f0] sm:$0xff]
  %v74 = vld [vmem:[%s1 + $0x1f8] sm:$0xff]
  %v75 = vld [vmem:[%s0] sm:$0xff]
  %v76 = vld [vmem:[%s0 + $0x8] sm:$0xff]
  %77 = vmatprep.subr.mxu0 %v72
  %78 = vmatpush1.msra.mxu0 %v71
  %79 = vmatprep.subr.mxu0 %v68
  %80 = vmatpush1.msra.mxu0 %v67
  %81 = vmatprep.subr.mxu0 %v64
  %82 = vmatpush1.msra.mxu0 %v63
  %83 = vmatprep.subr.mxu0 %v60
  %84 = vmatpush1.msra.mxu0 %v59
  %85 = vmatprep.subr.mxu0 %v56
  %86 = vmatpush1.msra.mxu0 %v55
  %87 = vmatprep.subr.mxu0 %v52
  %88 = vmatpush1.msra.mxu0 %v51
  %89 = vmatprep.subr.mxu0 %v48
  %90 = vmatpush1.msra.mxu0 %v47
  %91 = vmatprep.subr.mxu0 %v44
  %92 = vmatpush1.msra.mxu0 %v43
  %93 = vmatprep.subr.mxu0 %v40
  %94 = vmatpush1.msra.mxu0 %v39
  %95 = vmatprep.subr.mxu0 %v36
  %96 = vmatpush1.msra.mxu0 %v35
  %97 = vmatprep.subr.mxu0 %v32
  %98 = vmatpush1.msra.mxu0 %v31
  %99 = vmatprep.subr.mxu0 %v28
  %100 = vmatpush1.msra.mxu0 %v27
  %101 = vmatprep.subr.mxu0 %v24
  %102 = vmatpush1.msra.mxu0 %v23
  %103 = vmatprep.subr.mxu0 %v20
  %104 = vmatpush1.msra.mxu0 %v19
  %105 = vmatprep.subr.mxu0 %v16
  %106 = vmatpush1.msra.mxu0 %v15
  %107 = vmatprep.subr.mxu0 %v12
  %108 = vmatpush1.msra.mxu0 %v11
  %109 = vmatprep.subr.mxu0 0.0
  %110 = vmatpush2.msra.mxu0 0.0
  %111 = vmatprep.subr.mxu0 0.0
  %112 = vmatpush2.msra.mxu0 0.0
  %113 = vmatprep.subr.mxu0 0.0
  %114 = vmatpush2.msra.mxu0 0.0
  %115 = vmatprep.subr.mxu0 0.0
  %116 = vmatpush2.msra.mxu0 0.0
  %117 = vmatprep.subr.mxu0 0.0
  %118 = vmatpush2.msra.mxu0 0.0
  %119 = vmatprep.subr.mxu0 0.0
  %120 = vmatpush2.msra.mxu0 0.0
  %121 = vmatprep.subr.mxu0 0.0
  %122 = vmatpush2.msra.mxu0 0.0
  %123 = vmatprep.subr.mxu0 0.0
  %124 = vmatpush2.msra.mxu0 0.0
  %125 = vmatprep.subr.mxu0 0.0
  %126 = vmatpush2.msra.mxu0 0.0
  %127 = vmatprep.subr.mxu0 0.0
  %128 = vmatpush2.msra.mxu0 0.0
  %129 = vmatprep.subr.mxu0 0.0
  %130 = vmatpush2.msra.mxu0 0.0
  %131 = vmatprep.subr.mxu0 0.0
  %132 = vmatpush2.msra.mxu0 0.0
  %133 = vmatprep.subr.mxu0 0.0
  %134 = vmatpush2.msra.mxu0 0.0
  %135 = vmatprep.subr.mxu0 0.0
  %136 = vmatpush2.msra.mxu0 0.0
  %137 = vmatprep.subr.mxu0 0.0
  %138 = vmatpush2.msra.mxu0 0.0
  %139 = vmatprep.subr.mxu0 0.0
  %140 = vmatpush2.msra.mxu0 0.0
  %141 = vmatprep.mubr.f32.mxu0 0.0
  %142 = vmatmul.mubr.f32.gmra.mxu0 %v75
  %v143 = vpop.f32.mrf.mxu0
  %v144 = vadd.f32 0.0, %v143
  %v145 = vpop.f32.mrf.mxu0
  %v146 = vadd.f32 0.0, %v145
  %147 = vmatprep.mubr.f32.mxu0 0.0
  %148 = vmatmul.mubr.f32.gmra.mxu0 %v76
  %v149 = vpop.f32.mrf.mxu0
  %v150 = vadd.f32 0.0, %v149
  %v151 = vpop.f32.mrf.mxu0
  %v152 = vadd.f32 0.0, %v151
  %153 = vdwg.mxu0
  %154 = vmatprep.subr.mxu0 %v74
  %155 = vmatpush1.msra.mxu0 %v73
  %156 = vmatprep.subr.mxu0 %v70
  %157 = vmatpush1.msra.mxu0 %v69
  %158 = vmatprep.subr.mxu0 %v66
  %159 = vmatpush1.msra.mxu0 %v65
  %160 = vmatprep.subr.mxu0 %v62
  %161 = vmatpush1.msra.mxu0 %v61
  %162 = vmatprep.subr.mxu0 %v58
  %163 = vmatpush1.msra.mxu0 %v57
  %164 = vmatprep.subr.mxu0 %v54
  %165 = vmatpush1.msra.mxu0 %v53
  %166 = vmatprep.subr.mxu0 %v50
  %167 = vmatpush1.msra.mxu0 %v49
  %168 = vmatprep.subr.mxu0 %v46
  %169 = vmatpush1.msra.mxu0 %v45
  %170 = vmatprep.subr.mxu0 %v42
  %171 = vmatpush1.msra.mxu0 %v41
  %172 = vmatprep.subr.mxu0 %v38
  %173 = vmatpush1.msra.mxu0 %v37
  %174 = vmatprep.subr.mxu0 %v34
  %175 = vmatpush1.msra.mxu0 %v33
  %176 = vmatprep.subr.mxu0 %v30
  %177 = vmatpush1.msra.mxu0 %v29
  %178 = vmatprep.subr.mxu0 %v26
  %179 = vmatpush1.msra.mxu0 %v25
  %180 = vmatprep.subr.mxu0 %v22
  %181 = vmatpush1.msra.mxu0 %v21
  %182 = vmatprep.subr.mxu0 %v18
  %183 = vmatpush1.msra.mxu0 %v17
  %184 = vmatprep.subr.mxu0 %v14
  %185 = vmatpush1.msra.mxu0 %v13
  %186 = vmatprep.subr.mxu0 0.0
  %187 = vmatpush2.msra.mxu0 0.0
  %188 = vmatprep.subr.mxu0 0.0
  %189 = vmatpush2.msra.mxu0 0.0
  %190 = vmatprep.subr.mxu0 0.0
  %191 = vmatpush2.msra.mxu0 0.0
  %192 = vmatprep.subr.mxu0 0.0
  %193 = vmatpush2.msra.mxu0 0.0
  %194 = vmatprep.subr.mxu0 0.0
  %195 = vmatpush2.msra.mxu0 0.0
  %196 = vmatprep.subr.mxu0 0.0
  %197 = vmatpush2.msra.mxu0 0.0
  %198 = vmatprep.subr.mxu0 0.0
  %199 = vmatpush2.msra.mxu0 0.0
  %200 = vmatprep.subr.mxu0 0.0
  %201 = vmatpush2.msra.mxu0 0.0
  %202 = vmatprep.subr.mxu0 0.0
  %203 = vmatpush2.msra.mxu0 0.0
  %204 = vmatprep.subr.mxu0 0.0
  %205 = vmatpush2.msra.mxu0 0.0
  %206 = vmatprep.subr.mxu0 0.0
  %207 = vmatpush2.msra.mxu0 0.0
  %208 = vmatprep.subr.mxu0 0.0
  %209 = vmatpush2.msra.mxu0 0.0
  %210 = vmatprep.subr.mxu0 0.0
  %211 = vmatpush2.msra.mxu0 0.0
  %212 = vmatprep.subr.mxu0 0.0
  %213 = vmatpush2.msra.mxu0 0.0
  %214 = vmatprep.subr.mxu0 0.0
  %215 = vmatpush2.msra.mxu0 0.0
  %216 = vmatprep.subr.mxu0 0.0
  %217 = vmatpush2.msra.mxu0 0.0
  %218 = vmatprep.mubr.f32.mxu0 0.0
  %219 = vmatmul.mubr.f32.gmra.mxu0 %v75
  %v220 = vpop.f32.mrf.mxu0
  %v221 = vadd.f32 0.0, %v220
  %v222 = vpop.f32.mrf.mxu0
  %v223 = vadd.f32 0.0, %v222
  %224 = vmatprep.mubr.f32.mxu0 0.0
  %225 = vmatmul.mubr.f32.gmra.mxu0 %v76
  %v226 = vpop.f32.mrf.mxu0
  %v227 = vadd.f32 0.0, %v226
  %v228 = vpop.f32.mrf.mxu0
  %v229 = vadd.f32 0.0, %v228
  %230 = vdwg.mxu0
  %v231 = vadd.f32 %v144, %v146
  %v232 = vadd.f32 %v231, %v221
  %v233 = vadd.f32 %v232, %v223
  %234 = vadd.xlane.f32.xlu0 %v233
  %v235 = vpop.xlane.xlu0 %234
  %v236 = vadd.f32 %v150, %v152
  %v237 = vadd.f32 %v236, %v227
  %v238 = vadd.f32 %v237, %v229
  %239 = vadd.xlane.f32.xlu0 %v238
  %v240 = vpop.xlane.xlu0 %239
  %v241 = vmul.f32 %v235, 0.001953125
  %v242 = vmul.f32 %v240, 0.001953125
  %v243 = vsub.f32 %v144, %v241
  %v244 = vsub.f32 %v146, %v241
  %v245 = vsub.f32 %v221, %v241
  %v246 = vsub.f32 %v223, %v241
  %v247 = vsub.f32 %v150, %v242
  %v248 = vsub.f32 %v152, %v242
  %v249 = vsub.f32 %v227, %v242
  %v250 = vsub.f32 %v229, %v242
  %v251 = vmul.f32 %v243, %v243
  %v252 = vmul.f32 %v244, %v244
  %v253 = vmul.f32 %v245, %v245
  %v254 = vmul.f32 %v246, %v246
  %v255 = vmul.f32 %v247, %v247
  %v256 = vmul.f32 %v248, %v248
  %v257 = vmul.f32 %v249, %v249
  %v258 = vmul.f32 %v250, %v250
  %v259 = vadd.f32 %v251, %v252
  %v260 = vadd.f32 %v259, %v253
  %v261 = vadd.f32 %v260, %v254
  %262 = vadd.xlane.f32.xlu0 %v261
  %v263 = vpop.xlane.xlu0 %262
  %v264 = vadd.f32 %v255, %v256
  %v265 = vadd.f32 %v264, %v257
  %v266 = vadd.f32 %v265, %v258
  %267 = vadd.xlane.f32.xlu0 %v266
  %v268 = vpop.xlane.xlu0 %267
  %v269 = vmul.f32 %v263, 0.001953125
  %v270 = vmul.f32 %v268, 0.001953125
  %v271 = vadd.f32 %v269, 1e-05
  %v272 = vadd.f32 %v270, 1e-05
  %v273 = vrsqrt.pop %v271
  %v274 = vrsqrt.pop %v272
  %v275 = vmul.f32 %v243, %v273
  %v276 = vmul.f32 %v244, %v273
  %v277 = vmul.f32 %v245, %v273
  %v278 = vmul.f32 %v246, %v273
  %v279 = vmul.f32 %v247, %v274
  %v280 = vmul.f32 %v248, %v274
  %v281 = vmul.f32 %v249, %v274
  %v282 = vmul.f32 %v250, %v274
  %283 = vst [vmem:[%s2] sm:$0xff] %v275
  %284 = vst [vmem:[%s2 + $0x8] sm:$0xff] %v276
  %285 = vst [vmem:[%s2 + $0x10] sm:$0xff] %v277
  %286 = vst [vmem:[%s2 + $0x18] sm:$0xff] %v278
  %287 = vst [vmem:[%s2 + $0x20] sm:$0xff] %v279
  %288 = vst [vmem:[%s2 + $0x28] sm:$0xff] %v280
  %289 = vst [vmem:[%s2 + $0x30] sm:$0xff] %v281
  %290 = vst [vmem:[%s2 + $0x38] sm:$0xff] %v282
  // Predicated region
  $region10: #{_forward_impl.64} parent=0 // pred_check
    _
  $region11: #{_forward_impl.64} parent=0 // pred_check_branch
    %292 = sbr.rel (0) target = $region13
  $region12: #{_forward_impl.64} parent=0 // pred_region
    _
  $region13: #{_forward_impl.64} parent=0 // pred_fallthru
    _
  // Predicated region
  $region14: #{_forward_impl.64} parent=0 // pred_check
    _
  $region15: #{_forward_impl.64} parent=0 // pred_check_branch
    %294 = sbr.rel (0) target = $region17
  $region16: #{_forward_impl.64} parent=0 // pred_region
    _
  $region17: #{_forward_impl.64} parent=0 // pred_fallthru
    _

// kernel: _forward_impl.67
$region0: #{_forward_impl.67}
  #allocation0 [shape = 'u32[]', space=smem, size = 0x4, offset = 0x4, fixed_abs, tag = 'smem constant byte address 0x4 - core index']
  #allocation1 [shape = 'u32[144,128]{1,0:T(1,128)}', space=vmem, size = 0x12000, scoped, tag = 'internal scratch']
  %s0 = inlined_call_operand.vmem [shape: f32[9,8,512], index: 0, kind: input, shape index: {}]
  %s1 = inlined_call_operand.vmem [shape: f32[1,512], index: 1, kind: input, shape index: {}]
  %s2 = inlined_call_operand.vmem [shape: f32[8,512], index: 2, kind: output, shape index: {}]
  %s3 = sld [smem:[#allocation0]]
  $region18: #{_forward_impl.67} parent=0
    _
  %s5 = ssub.s32 1, %s3
  %s6 = scalar_select 0, %s5, %s3
  // Predicated region
  $region2: #{_forward_impl.67} parent=0 // pred_check
    _
  $region3: #{_forward_impl.67} parent=0 // pred_check_branch
    %8 = sbr.rel (0) target = $region5
  $region4: #{_forward_impl.67} parent=0 // pred_region
    _
  $region5: #{_forward_impl.67} parent=0 // pred_fallthru
    _
  // Predicated region
  $region6: #{_forward_impl.67} parent=0 // pred_check
    _
  $region7: #{_forward_impl.67} parent=0 // pred_check_branch
    %10 = sbr.rel (0) target = $region9
  $region8: #{_forward_impl.67} parent=0 // pred_region
    _
  $region9: #{_forward_impl.67} parent=0 // pred_fallthru
    _
  %v11 = vld [vmem:[%s0] sm:$0xff]
  %v12 = vld [vmem:[%s0 + $0x8] sm:$0xff]
  %v13 = vld [vmem:[%s0 + $0x10] sm:$0xff]
  %v14 = vld [vmem:[%s0 + $0x18] sm:$0xff]
  %s15 = scalar_lea.vmem %s0, 32
  %v16 = vld [vmem:[%s15] sm:$0xff]
  %v17 = vld [vmem:[%s15 + $0x8] sm:$0xff]
  %v18 = vld [vmem:[%s15 + $0x10] sm:$0xff]
  %v19 = vld [vmem:[%s15 + $0x18] sm:$0xff]
  %v20 = vadd.f32 %v11, %v16
  %v21 = vadd.f32 %v12, %v17
  %v22 = vadd.f32 %v13, %v18
  %v23 = vadd.f32 %v14, %v19
  %s24 = scalar_lea.vmem %s0, 64
  %v25 = vld [vmem:[%s24] sm:$0xff]
  %v26 = vld [vmem:[%s24 + $0x8] sm:$0xff]
  %v27 = vld [vmem:[%s24 + $0x10] sm:$0xff]
  %v28 = vld [vmem:[%s24 + $0x18] sm:$0xff]
  %v29 = vadd.f32 %v20, %v25
  %v30 = vadd.f32 %v21, %v26
  %v31 = vadd.f32 %v22, %v27
  %v32 = vadd.f32 %v23, %v28
  %s33 = scalar_lea.vmem %s0, 96
  %v34 = vld [vmem:[%s33] sm:$0xff]
  %v35 = vld [vmem:[%s33 + $0x8] sm:$0xff]
  %v36 = vld [vmem:[%s33 + $0x10] sm:$0xff]
  %v37 = vld [vmem:[%s33 + $0x18] sm:$0xff]
  %v38 = vadd.f32 %v29, %v34
  %v39 = vadd.f32 %v30, %v35
  %v40 = vadd.f32 %v31, %v36
  %v41 = vadd.f32 %v32, %v37
  %s42 = scalar_lea.vmem %s0, 128
  %v43 = vld [vmem:[%s42] sm:$0xff]
  %v44 = vld [vmem:[%s42 + $0x8] sm:$0xff]
  %v45 = vld [vmem:[%s42 + $0x10] sm:$0xff]
  %v46 = vld [vmem:[%s42 + $0x18] sm:$0xff]
  %v47 = vadd.f32 %v38, %v43
  %v48 = vadd.f32 %v39, %v44
  %v49 = vadd.f32 %v40, %v45
  %v50 = vadd.f32 %v41, %v46
  %s51 = scalar_lea.vmem %s0, 160
  %v52 = vld [vmem:[%s51] sm:$0xff]
  %v53 = vld [vmem:[%s51 + $0x8] sm:$0xff]
  %v54 = vld [vmem:[%s51 + $0x10] sm:$0xff]
  %v55 = vld [vmem:[%s51 + $0x18] sm:$0xff]
  %v56 = vadd.f32 %v47, %v52
  %v57 = vadd.f32 %v48, %v53
  %v58 = vadd.f32 %v49, %v54
  %v59 = vadd.f32 %v50, %v55
  %s60 = scalar_lea.vmem %s0, 192
  %v61 = vld [vmem:[%s60] sm:$0xff]
  %v62 = vld [vmem:[%s60 + $0x8] sm:$0xff]
  %v63 = vld [vmem:[%s60 + $0x10] sm:$0xff]
  %v64 = vld [vmem:[%s60 + $0x18] sm:$0xff]
  %v65 = vadd.f32 %v56, %v61
  %v66 = vadd.f32 %v57, %v62
  %v67 = vadd.f32 %v58, %v63
  %v68 = vadd.f32 %v59, %v64
  %s69 = scalar_lea.vmem %s0, 224
  %v70 = vld [vmem:[%s69] sm:$0xff]
  %v71 = vld [vmem:[%s69 + $0x8] sm:$0xff]
  %v72 = vld [vmem:[%s69 + $0x10] sm:$0xff]
  %v73 = vld [vmem:[%s69 + $0x18] sm:$0xff]
  %v74 = vadd.f32 %v65, %v70
  %v75 = vadd.f32 %v66, %v71
  %v76 = vadd.f32 %v67, %v72
  %v77 = vadd.f32 %v68, %v73
  %s78 = scalar_lea.vmem %s0, 256
  %v79 = vld [vmem:[%s78] sm:$0xff]
  %v80 = vld [vmem:[%s78 + $0x8] sm:$0xff]
  %v81 = vld [vmem:[%s78 + $0x10] sm:$0xff]
  %v82 = vld [vmem:[%s78 + $0x18] sm:$0xff]
  %v83 = vadd.f32 %v74, %v79
  %v84 = vadd.f32 %v75, %v80
  %v85 = vadd.f32 %v76, %v81
  %v86 = vadd.f32 %v77, %v82
  %v87 = vld [vmem:[%s1] sm:$0xf]
  %v89 = vlaneseq
  %v90 = vshrl.u32 %v89, 7
  %v91 = vsub.s32 0, %v90
  %v92 = vrot.slane %v87, %v91
  %v93 = vlaneseq
  %v94 = vshrl.u32 %v93, 7
  %v95 = vsub.s32 1, %v94
  %v96 = vrot.slane %v87, %v95
  %v97 = vlaneseq
  %v98 = vshrl.u32 %v97, 7
  %v99 = vsub.s32 2, %v98
  %v100 = vrot.slane %v87, %v99
  %v101 = vlaneseq
  %v102 = vshrl.u32 %v101, 7
  %v103 = vsub.s32 3, %v102
  %v104 = vrot.slane %v87, %v103
  %v109 = vmul.f32 %v83, %v92
  %v110 = vmul.f32 %v84, %v96
  %v111 = vmul.f32 %v85, %v100
  %v112 = vmul.f32 %v86, %v104
  %v113 = vadd.f32 %v109, %v110
  %v114 = vadd.f32 %v113, %v111
  %v115 = vadd.f32 %v114, %v112
  %116 = vadd.xlane.f32.xlu0 %v115
  %v117 = vpop.xlane.xlu0 %116
  %v118 = vmul.f32 %v117, 0.001953125
  %v119 = vsub.f32 %v109, %v118
  %v120 = vsub.f32 %v110, %v118
  %v121 = vsub.f32 %v111, %v118
  %v122 = vsub.f32 %v112, %v118
  %v123 = vmul.f32 %v119, %v119
  %v124 = vmul.f32 %v120, %v120
  %v125 = vmul.f32 %v121, %v121
  %v126 = vmul.f32 %v122, %v122
  %v127 = vadd.f32 %v123, %v124
  %v128 = vadd.f32 %v127, %v125
  %v129 = vadd.f32 %v128, %v126
  %130 = vadd.xlane.f32.xlu0 %v129
  %v131 = vpop.xlane.xlu0 %130
  %v132 = vmul.f32 %v131, 0.001953125
  %v133 = vadd.f32 %v132, 1e-05
  %v134 = vrsqrt.pop %v133
  %v135 = vmul.f32 %v119, %v134
  %v136 = vmul.f32 %v120, %v134
  %v137 = vmul.f32 %v121, %v134
  %v138 = vmul.f32 %v122, %v134
  %139 = vst [vmem:[%s2] sm:$0xff] %v135
  %140 = vst [vmem:[%s2 + $0x8] sm:$0xff] %v136
  %141 = vst [vmem:[%s2 + $0x10] sm:$0xff] %v137
  %142 = vst [vmem:[%s2 + $0x18] sm:$0xff] %v138
  // Predicated region
  $region10: #{_forward_impl.67} parent=0 // pred_check
    _
  $region11: #{_forward_impl.67} parent=0 // pred_check_branch
    %144 = sbr.rel (0) target = $region13
  $region12: #{_forward_impl.67} parent=0 // pred_region
    _
  $region13: #{_forward_impl.67} parent=0 // pred_fallthru
    _
  // Predicated region
  $region14: #{_forward_impl.67} parent=0 // pred_check
    _
  $region15: #{_forward_impl.67} parent=0 // pred_check_branch
    %146 = sbr.rel (0) target = $region17
  $region16: #{_forward_impl.67} parent=0 // pred_region
    _
  $region17: #{_forward_impl.67} parent=0 // pred_fallthru
    _

// kernel: _forward_impl.81
$region0: #{_forward_impl.81}
  #allocation0 [shape = 'u32[]', space=smem, size = 0x4, offset = 0x4, fixed_abs, tag = 'smem constant byte address 0x4 - core index']
  #allocation1 [shape = 'u32[144,128]{1,0:T(1,128)}', space=vmem, size = 0x12000, scoped, tag = 'internal scratch']
  %s0 = inlined_call_operand.vmem [shape: f32[9,8,512], index: 0, kind: input, shape index: {}]
  %s1 = inlined_call_operand.vmem [shape: f32[1,512], index: 1, kind: input, shape index: {}]
  %s2 = inlined_call_operand.vmem [shape: f32[8,512], index: 2, kind: output, shape index: {}]
  %s3 = sld [smem:[#allocation0]]
  $region18: #{_forward_impl.81} parent=0
    _
  %s5 = ssub.s32 1, %s3
  %s6 = scalar_select 0, %s5, %s3
  // Predicated region
  $region2: #{_forward_impl.81} parent=0 // pred_check
    _
  $region3: #{_forward_impl.81} parent=0 // pred_check_branch
    %8 = sbr.rel (0) target = $region5
  $region4: #{_forward_impl.81} parent=0 // pred_region
    _
  $region5: #{_forward_impl.81} parent=0 // pred_fallthru
    _
  // Predicated region
  $region6: #{_forward_impl.81} parent=0 // pred_check
    _
  $region7: #{_forward_impl.81} parent=0 // pred_check_branch
    %10 = sbr.rel (0) target = $region9
  $region8: #{_forward_impl.81} parent=0 // pred_region
    _
  $region9: #{_forward_impl.81} parent=0 // pred_fallthru
    _
  %v11 = vld [vmem:[%s0] sm:$0xff]
  %v12 = vld [vmem:[%s0 + $0x8] sm:$0xff]
  %v13 = vld [vmem:[%s0 + $0x10] sm:$0xff]
  %v14 = vld [vmem:[%s0 + $0x18] sm:$0xff]
  %s15 = scalar_lea.vmem %s0, 32
  %v16 = vld [vmem:[%s15] sm:$0xff]
  %v17 = vld [vmem:[%s15 + $0x8] sm:$0xff]
  %v18 = vld [vmem:[%s15 + $0x10] sm:$0xff]
  %v19 = vld [vmem:[%s15 + $0x18] sm:$0xff]
  %v20 = vmax.f32 %v11, %v16
  %v21 = vmax.f32 %v12, %v17
  %v22 = vmax.f32 %v13, %v18
  %v23 = vmax.f32 %v14, %v19
  %s24 = scalar_lea.vmem %s0, 64
  %v25 = vld [vmem:[%s24] sm:$0xff]
  %v26 = vld [vmem:[%s24 + $0x8] sm:$0xff]
  %v27 = vld [vmem:[%s24 + $0x10] sm:$0xff]
  %v28 = vld [vmem:[%s24 + $0x18] sm:$0xff]
  %v29 = vmax.f32 %v20, %v25
  %v30 = vmax.f32 %v21, %v26
  %v31 = vmax.f32 %v22, %v27
  %v32 = vmax.f32 %v23, %v28
  %s33 = scalar_lea.vmem %s0, 96
  %v34 = vld [vmem:[%s33] sm:$0xff]
  %v35 = vld [vmem:[%s33 + $0x8] sm:$0xff]
  %v36 = vld [vmem:[%s33 + $0x10] sm:$0xff]
  %v37 = vld [vmem:[%s33 + $0x18] sm:$0xff]
  %v38 = vmax.f32 %v29, %v34
  %v39 = vmax.f32 %v30, %v35
  %v40 = vmax.f32 %v31, %v36
  %v41 = vmax.f32 %v32, %v37
  %s42 = scalar_lea.vmem %s0, 128
  %v43 = vld [vmem:[%s42] sm:$0xff]
  %v44 = vld [vmem:[%s42 + $0x8] sm:$0xff]
  %v45 = vld [vmem:[%s42 + $0x10] sm:$0xff]
  %v46 = vld [vmem:[%s42 + $0x18] sm:$0xff]
  %v47 = vmax.f32 %v38, %v43
  %v48 = vmax.f32 %v39, %v44
  %v49 = vmax.f32 %v40, %v45
  %v50 = vmax.f32 %v41, %v46
  %s51 = scalar_lea.vmem %s0, 160
  %v52 = vld [vmem:[%s51] sm:$0xff]
  %v53 = vld [vmem:[%s51 + $0x8] sm:$0xff]
  %v54 = vld [vmem:[%s51 + $0x10] sm:$0xff]
  %v55 = vld [vmem:[%s51 + $0x18] sm:$0xff]
  %v56 = vmax.f32 %v47, %v52
  %v57 = vmax.f32 %v48, %v53
  %v58 = vmax.f32 %v49, %v54
  %v59 = vmax.f32 %v50, %v55
  %s60 = scalar_lea.vmem %s0, 192
  %v61 = vld [vmem:[%s60] sm:$0xff]
  %v62 = vld [vmem:[%s60 + $0x8] sm:$0xff]
  %v63 = vld [vmem:[%s60 + $0x10] sm:$0xff]
  %v64 = vld [vmem:[%s60 + $0x18] sm:$0xff]
  %v65 = vmax.f32 %v56, %v61
  %v66 = vmax.f32 %v57, %v62
  %v67 = vmax.f32 %v58, %v63
  %v68 = vmax.f32 %v59, %v64
  %s69 = scalar_lea.vmem %s0, 224
  %v70 = vld [vmem:[%s69] sm:$0xff]
  %v71 = vld [vmem:[%s69 + $0x8] sm:$0xff]
  %v72 = vld [vmem:[%s69 + $0x10] sm:$0xff]
  %v73 = vld [vmem:[%s69 + $0x18] sm:$0xff]
  %v74 = vmax.f32 %v65, %v70
  %v75 = vmax.f32 %v66, %v71
  %v76 = vmax.f32 %v67, %v72
  %v77 = vmax.f32 %v68, %v73
  %s78 = scalar_lea.vmem %s0, 256
  %v79 = vld [vmem:[%s78] sm:$0xff]
  %v80 = vld [vmem:[%s78 + $0x8] sm:$0xff]
  %v81 = vld [vmem:[%s78 + $0x10] sm:$0xff]
  %v82 = vld [vmem:[%s78 + $0x18] sm:$0xff]
  %v83 = vmax.f32 %v74, %v79
  %v84 = vmax.f32 %v75, %v80
  %v85 = vmax.f32 %v76, %v81
  %v86 = vmax.f32 %v77, %v82
  %v87 = vadd.f32 %v83, %v84
  %v88 = vadd.f32 %v87, %v85
  %v89 = vadd.f32 %v88, %v86
  %90 = vadd.xlane.f32.xlu0 %v89
  %v91 = vpop.xlane.xlu0 %90
  %v92 = vmul.f32 %v91, 0.001953125
  %v93 = vsub.f32 %v83, %v92
  %v94 = vsub.f32 %v84, %v92
  %v95 = vsub.f32 %v85, %v92
  %v96 = vsub.f32 %v86, %v92
  %v97 = vmul.f32 %v93, %v93
  %v98 = vmul.f32 %v94, %v94
  %v99 = vmul.f32 %v95, %v95
  %v100 = vmul.f32 %v96, %v96
  %v101 = vadd.f32 %v97, %v98
  %v102 = vadd.f32 %v101, %v99
  %v103 = vadd.f32 %v102, %v100
  %104 = vadd.xlane.f32.xlu0 %v103
  %v105 = vpop.xlane.xlu0 %104
  %v106 = vmul.f32 %v105, 0.001953125
  %v107 = vadd.f32 %v106, 1e-05
  %v108 = vrsqrt.pop %v107
  %v109 = vmul.f32 %v93, %v108
  %v110 = vmul.f32 %v94, %v108
  %v111 = vmul.f32 %v95, %v108
  %v112 = vmul.f32 %v96, %v108
  %113 = vst [vmem:[%s2] sm:$0xff] %v109
  %114 = vst [vmem:[%s2 + $0x8] sm:$0xff] %v110
  %115 = vst [vmem:[%s2 + $0x10] sm:$0xff] %v111
  %116 = vst [vmem:[%s2 + $0x18] sm:$0xff] %v112
  // Predicated region
  $region10: #{_forward_impl.81} parent=0 // pred_check
    _
  $region11: #{_forward_impl.81} parent=0 // pred_check_branch
    %118 = sbr.rel (0) target = $region13
  $region12: #{_forward_impl.81} parent=0 // pred_region
    _
  $region13: #{_forward_impl.81} parent=0 // pred_fallthru
    _
  // Predicated region
  $region14: #{_forward_impl.81} parent=0 // pred_check
    _
  $region15: #{_forward_impl.81} parent=0 // pred_check_branch
    %120 = sbr.rel (0) target = $region17
  $region16: #{_forward_impl.81} parent=0 // pred_region
    _
  $region17: #{_forward_impl.81} parent=0 // pred_fallthru
    _

// kernel: _forward_impl.101
$region0: #{_forward_impl.101}
  #allocation0 [shape = 'u32[]', space=smem, size = 0x4, offset = 0x4, fixed_abs, tag = 'smem constant byte address 0x4 - core index']
  #allocation1 [shape = 'u32[144,128]{1,0:T(1,128)}', space=vmem, size = 0x12000, scoped, tag = 'internal scratch']
  %s0 = inlined_call_operand.vmem [shape: f32[8,256], index: 0, kind: input, shape index: {}]
  %s1 = inlined_call_operand.vmem [shape: f32[256,128], index: 1, kind: input, shape index: {}]
  %s2 = inlined_call_operand.vmem [shape: f32[8,128], index: 2, kind: output, shape index: {}]
  %s3 = sld [smem:[#allocation0]]
  $region18: #{_forward_impl.101} parent=0
    _
  %s5 = ssub.s32 1, %s3
  %s6 = scalar_select 0, %s5, %s3
  // Predicated region
  $region2: #{_forward_impl.101} parent=0 // pred_check
    _
  $region3: #{_forward_impl.101} parent=0 // pred_check_branch
    %8 = sbr.rel (0) target = $region5
  $region4: #{_forward_impl.101} parent=0 // pred_region
    _
  $region5: #{_forward_impl.101} parent=0 // pred_fallthru
    _
  // Predicated region
  $region6: #{_forward_impl.101} parent=0 // pred_check
    _
  $region7: #{_forward_impl.101} parent=0 // pred_check_branch
    %10 = sbr.rel (0) target = $region9
  $region8: #{_forward_impl.101} parent=0 // pred_region
    _
  $region9: #{_forward_impl.101} parent=0 // pred_fallthru
    _
  %v11 = vld [vmem:[%s1] sm:$0xff]
  %v12 = vld [vmem:[%s1 + $0x8] sm:$0xff]
  %v13 = vld [vmem:[%s1 + $0x10] sm:$0xff]
  %v14 = vld [vmem:[%s1 + $0x18] sm:$0xff]
  %v15 = vld [vmem:[%s1 + $0x20] sm:$0xff]
  %v16 = vld [vmem:[%s1 + $0x28] sm:$0xff]
  %v17 = vld [vmem:[%s1 + $0x30] sm:$0xff]
  %v18 = vld [vmem:[%s1 + $0x38] sm:$0xff]
  %v19 = vld [vmem:[%s1 + $0x40] sm:$0xff]
  %v20 = vld [vmem:[%s1 + $0x48] sm:$0xff]
  %v21 = vld [vmem:[%s1 + $0x50] sm:$0xff]
  %v22 = vld [vmem:[%s1 + $0x58] sm:$0xff]
  %v23 = vld [vmem:[%s1 + $0x60] sm:$0xff]
  %v24 = vld [vmem:[%s1 + $0x68] sm:$0xff]
  %v25 = vld [vmem:[%s1 + $0x70] sm:$0xff]
  %v26 = vld [vmem:[%s1 + $0x78] sm:$0xff]
  %v27 = vld [vmem:[%s1 + $0x80] sm:$0xff]
  %v28 = vld [vmem:[%s1 + $0x88] sm:$0xff]
  %v29 = vld [vmem:[%s1 + $0x90] sm:$0xff]
  %v30 = vld [vmem:[%s1 + $0x98] sm:$0xff]
  %v31 = vld [vmem:[%s1 + $0xa0] sm:$0xff]
  %v32 = vld [vmem:[%s1 + $0xa8] sm:$0xff]
  %v33 = vld [vmem:[%s1 + $0xb0] sm:$0xff]
  %v34 = vld [vmem:[%s1 + $0xb8] sm:$0xff]
  %v35 = vld [vmem:[%s1 + $0xc0] sm:$0xff]
  %v36 = vld [vmem:[%s1 + $0xc8] sm:$0xff]
  %v37 = vld [vmem:[%s1 + $0xd0] sm:$0xff]
  %v38 = vld [vmem:[%s1 + $0xd8] sm:$0xff]
  %v39 = vld [vmem:[%s1 + $0xe0] sm:$0xff]
  %v40 = vld [vmem:[%s1 + $0xe8] sm:$0xff]
  %v41 = vld [vmem:[%s1 + $0xf0] sm:$0xff]
  %v42 = vld [vmem:[%s1 + $0xf8] sm:$0xff]
  %v43 = vmax.f32 %v11, 0.0
  %v44 = vmax.f32 %v12, 0.0
  %v45 = vmax.f32 %v13, 0.0
  %v46 = vmax.f32 %v14, 0.0
  %v47 = vmax.f32 %v15, 0.0
  %v48 = vmax.f32 %v16, 0.0
  %v49 = vmax.f32 %v17, 0.0
  %v50 = vmax.f32 %v18, 0.0
  %v51 = vmax.f32 %v19, 0.0
  %v52 = vmax.f32 %v20, 0.0
  %v53 = vmax.f32 %v21, 0.0
  %v54 = vmax.f32 %v22, 0.0
  %v55 = vmax.f32 %v23, 0.0
  %v56 = vmax.f32 %v24, 0.0
  %v57 = vmax.f32 %v25, 0.0
  %v58 = vmax.f32 %v26, 0.0
  %v59 = vmax.f32 %v27, 0.0
  %v60 = vmax.f32 %v28, 0.0
  %v61 = vmax.f32 %v29, 0.0
  %v62 = vmax.f32 %v30, 0.0
  %v63 = vmax.f32 %v31, 0.0
  %v64 = vmax.f32 %v32, 0.0
  %v65 = vmax.f32 %v33, 0.0
  %v66 = vmax.f32 %v34, 0.0
  %v67 = vmax.f32 %v35, 0.0
  %v68 = vmax.f32 %v36, 0.0
  %v69 = vmax.f32 %v37, 0.0
  %v70 = vmax.f32 %v38, 0.0
  %v71 = vmax.f32 %v39, 0.0
  %v72 = vmax.f32 %v40, 0.0
  %v73 = vmax.f32 %v41, 0.0
  %v74 = vmax.f32 %v42, 0.0
  %v75 = vld [vmem:[%s0] sm:$0xff]
  %v76 = vld [vmem:[%s0 + $0x8] sm:$0xff]
  %77 = vmatprep.subr.mxu0 0.0
  %78 = vmatpush1.msra.mxu0 %v58
  %79 = vmatprep.subr.mxu0 0.0
  %80 = vmatpush1.msra.mxu0 %v57
  %81 = vmatprep.subr.mxu0 0.0
  %82 = vmatpush1.msra.mxu0 %v56
  %83 = vmatprep.subr.mxu0 0.0
  %84 = vmatpush1.msra.mxu0 %v55
  %85 = vmatprep.subr.mxu0 0.0
  %86 = vmatpush1.msra.mxu0 %v54
  %87 = vmatprep.subr.mxu0 0.0
  %88 = vmatpush1.msra.mxu0 %v53
  %89 = vmatprep.subr.mxu0 0.0
  %90 = vmatpush1.msra.mxu0 %v52
  %91 = vmatprep.subr.mxu0 0.0
  %92 = vmatpush1.msra.mxu0 %v51
  %93 = vmatprep.subr.mxu0 0.0
  %94 = vmatpush1.msra.mxu0 %v50
  %95 = vmatprep.subr.mxu0 0.0
  %96 = vmatpush1.msra.mxu0 %v49
  %97 = vmatprep.subr.mxu0 0.0
  %98 = vmatpush1.msra.mxu0 %v48
  %99 = vmatprep.subr.mxu0 0.0
  %100 = vmatpush1.msra.mxu0 %v47
  %101 = vmatprep.subr.mxu0 0.0
  %102 = vmatpush1.msra.mxu0 %v46
  %103 = vmatprep.subr.mxu0 0.0
  %104 = vmatpush1.msra.mxu0 %v45
  %105 = vmatprep.subr.mxu0 0.0
  %106 = vmatpush1.msra.mxu0 %v44
  %107 = vmatprep.subr.mxu0 0.0
  %108 = vmatpush1.msra.mxu0 %v43
  %109 = vmatprep.subr.mxu0 0.0
  %110 = vmatpush2.msra.mxu0 %v74
  %111 = vmatprep.subr.mxu0 0.0
  %112 = vmatpush2.msra.mxu0 %v73
  %113 = vmatprep.subr.mxu0 0.0
  %114 = vmatpush2.msra.mxu0 %v72
  %115 = vmatprep.subr.mxu0 0.0
  %116 = vmatpush2.msra.mxu0 %v71
  %117 = vmatprep.subr.mxu0 0.0
  %118 = vmatpush2.msra.mxu0 %v70
  %119 = vmatprep.subr.mxu0 0.0
  %120 = vmatpush2.msra.mxu0 %v69
  %121 = vmatprep.subr.mxu0 0.0
  %122 = vmatpush2.msra.mxu0 %v68
  %123 = vmatprep.subr.mxu0 0.0
  %124 = vmatpush2.msra.mxu0 %v67
  %125 = vmatprep.subr.mxu0 0.0
  %126 = vmatpush2.msra.mxu0 %v66
  %127 = vmatprep.subr.mxu0 0.0
  %128 = vmatpush2.msra.mxu0 %v65
  %129 = vmatprep.subr.mxu0 0.0
  %130 = vmatpush2.msra.mxu0 %v64
  %131 = vmatprep.subr.mxu0 0.0
  %132 = vmatpush2.msra.mxu0 %v63
  %133 = vmatprep.subr.mxu0 0.0
  %134 = vmatpush2.msra.mxu0 %v62
  %135 = vmatprep.subr.mxu0 0.0
  %136 = vmatpush2.msra.mxu0 %v61
  %137 = vmatprep.subr.mxu0 0.0
  %138 = vmatpush2.msra.mxu0 %v60
  %139 = vmatprep.subr.mxu0 0.0
  %140 = vmatpush2.msra.mxu0 %v59
  %141 = vmatprep.mubr.f32.mxu0 %v76
  %142 = vmatmul.mubr.f32.gmra.mxu0 %v75
  %v143 = vpop.f32.mrf.mxu0
  %v144 = vadd.f32 0.0, %v143
  %v145 = vpop.f32.mrf.mxu0
  %146 = vdwg.mxu0
  %147 = vadd.xlane.f32.xlu0 %v144
  %v148 = vpop.xlane.xlu0 %147
  %v149 = vmul.f32 %v148, 0.0078125
  %v150 = vsub.f32 %v144, %v149
  %v151 = vmul.f32 %v150, %v150
  %152 = vadd.xlane.f32.xlu0 %v151
  %v153 = vpop.xlane.xlu0 %152
  %v154 = vmul.f32 %v153, 0.0078125
  %v155 = vadd.f32 %v154, 1e-05
  %v156 = vrsqrt.pop %v155
  %v157 = vmul.f32 %v150, %v156
  %158 = vst [vmem:[%s2] sm:$0xff] %v157
  // Predicated region
  $region10: #{_forward_impl.101} parent=0 // pred_check
    _
  $region11: #{_forward_impl.101} parent=0 // pred_check_branch
    %160 = sbr.rel (0) target = $region13
  $region12: #{_forward_impl.101} parent=0 // pred_region
    _
  $region13: #{_forward_impl.101} parent=0 // pred_fallthru
    _
  // Predicated region
  $region14: #{_forward_impl.101} parent=0 // pred_check
    _
  $region15: #{_forward_impl.101} parent=0 // pred_check_branch
    %162 = sbr.rel (0) target = $region17
  $region16: #{_forward_impl.101} parent=0 // pred_region
    _
  $region17: #{_forward_impl.101} parent=0 // pred_fallthru
    _

// kernel: _forward_impl.97
$region0: #{_forward_impl.97}
  #allocation0 [shape = 'u32[]', space=smem, size = 0x4, offset = 0x4, fixed_abs, tag = 'smem constant byte address 0x4 - core index']
  #allocation1 [shape = 'u32[144,128]{1,0:T(1,128)}', space=vmem, size = 0x12000, scoped, tag = 'internal scratch']
  %s0 = inlined_call_operand.vmem [shape: f32[8,128], index: 0, kind: input, shape index: {}]
  %s1 = inlined_call_operand.vmem [shape: f32[128,128], index: 1, kind: input, shape index: {}]
  %s2 = inlined_call_operand.vmem [shape: f32[8,128], index: 2, kind: output, shape index: {}]
  %s3 = sld [smem:[#allocation0]]
  $region18: #{_forward_impl.97} parent=0
    _
  %s5 = ssub.s32 1, %s3
  %s6 = scalar_select 0, %s5, %s3
  // Predicated region
  $region2: #{_forward_impl.97} parent=0 // pred_check
    _
  $region3: #{_forward_impl.97} parent=0 // pred_check_branch
    %8 = sbr.rel (0) target = $region5
  $region4: #{_forward_impl.97} parent=0 // pred_region
    _
  $region5: #{_forward_impl.97} parent=0 // pred_fallthru
    _
  // Predicated region
  $region6: #{_forward_impl.97} parent=0 // pred_check
    _
  $region7: #{_forward_impl.97} parent=0 // pred_check_branch
    %10 = sbr.rel (0) target = $region9
  $region8: #{_forward_impl.97} parent=0 // pred_region
    _
  $region9: #{_forward_impl.97} parent=0 // pred_fallthru
    _
  %v11 = vld [vmem:[%s1] sm:$0xff]
  %v12 = vld [vmem:[%s1 + $0x8] sm:$0xff]
  %v13 = vld [vmem:[%s1 + $0x10] sm:$0xff]
  %v14 = vld [vmem:[%s1 + $0x18] sm:$0xff]
  %v15 = vld [vmem:[%s1 + $0x20] sm:$0xff]
  %v16 = vld [vmem:[%s1 + $0x28] sm:$0xff]
  %v17 = vld [vmem:[%s1 + $0x30] sm:$0xff]
  %v18 = vld [vmem:[%s1 + $0x38] sm:$0xff]
  %v19 = vld [vmem:[%s1 + $0x40] sm:$0xff]
  %v20 = vld [vmem:[%s1 + $0x48] sm:$0xff]
  %v21 = vld [vmem:[%s1 + $0x50] sm:$0xff]
  %v22 = vld [vmem:[%s1 + $0x58] sm:$0xff]
  %v23 = vld [vmem:[%s1 + $0x60] sm:$0xff]
  %v24 = vld [vmem:[%s1 + $0x68] sm:$0xff]
  %v25 = vld [vmem:[%s1 + $0x70] sm:$0xff]
  %v26 = vld [vmem:[%s1 + $0x78] sm:$0xff]
  %v27 = vmax.f32 %v11, 0.0
  %v28 = vmax.f32 %v12, 0.0
  %v29 = vmax.f32 %v13, 0.0
  %v30 = vmax.f32 %v14, 0.0
  %v31 = vmax.f32 %v15, 0.0
  %v32 = vmax.f32 %v16, 0.0
  %v33 = vmax.f32 %v17, 0.0
  %v34 = vmax.f32 %v18, 0.0
  %v35 = vmax.f32 %v19, 0.0
  %v36 = vmax.f32 %v20, 0.0
  %v37 = vmax.f32 %v21, 0.0
  %v38 = vmax.f32 %v22, 0.0
  %v39 = vmax.f32 %v23, 0.0
  %v40 = vmax.f32 %v24, 0.0
  %v41 = vmax.f32 %v25, 0.0
  %v42 = vmax.f32 %v26, 0.0
  %v43 = vld [vmem:[%s0] sm:$0xff]
  %44 = vmatprep.subr.mxu0 0.0
  %45 = vmatpush1.msra.mxu0 %v42
  %46 = vmatprep.subr.mxu0 0.0
  %47 = vmatpush1.msra.mxu0 %v41
  %48 = vmatprep.subr.mxu0 0.0
  %49 = vmatpush1.msra.mxu0 %v40
  %50 = vmatprep.subr.mxu0 0.0
  %51 = vmatpush1.msra.mxu0 %v39
  %52 = vmatprep.subr.mxu0 0.0
  %53 = vmatpush1.msra.mxu0 %v38
  %54 = vmatprep.subr.mxu0 0.0
  %55 = vmatpush1.msra.mxu0 %v37
  %56 = vmatprep.subr.mxu0 0.0
  %57 = vmatpush1.msra.mxu0 %v36
  %58 = vmatprep.subr.mxu0 0.0
  %59 = vmatpush1.msra.mxu0 %v35
  %60 = vmatprep.subr.mxu0 0.0
  %61 = vmatpush1.msra.mxu0 %v34
  %62 = vmatprep.subr.mxu0 0.0
  %63 = vmatpush1.msra.mxu0 %v33
  %64 = vmatprep.subr.mxu0 0.0
  %65 = vmatpush1.msra.mxu0 %v32
  %66 = vmatprep.subr.mxu0 0.0
  %67 = vmatpush1.msra.mxu0 %v31
  %68 = vmatprep.subr.mxu0 0.0
  %69 = vmatpush1.msra.mxu0 %v30
  %70 = vmatprep.subr.mxu0 0.0
  %71 = vmatpush1.msra.mxu0 %v29
  %72 = vmatprep.subr.mxu0 0.0
  %73 = vmatpush1.msra.mxu0 %v28
  %74 = vmatprep.subr.mxu0 0.0
  %75 = vmatpush1.msra.mxu0 %v27
  %76 = vmatprep.subr.mxu0 0.0
  %77 = vmatpush2.msra.mxu0 0.0
  %78 = vmatprep.subr.mxu0 0.0
  %79 = vmatpush2.msra.mxu0 0.0
  %80 = vmatprep.subr.mxu0 0.0
  %81 = vmatpush2.msra.mxu0 0.0
  %82 = vmatprep.subr.mxu0 0.0
  %83 = vmatpush2.msra.mxu0 0.0
  %84 = vmatprep.subr.mxu0 0.0
  %85 = vmatpush2.msra.mxu0 0.0
  %86 = vmatprep.subr.mxu0 0.0
  %87 = vmatpush2.msra.mxu0 0.0
  %88 = vmatprep.subr.mxu0 0.0
  %89 = vmatpush2.msra.mxu0 0.0
  %90 = vmatprep.subr.mxu0 0.0
  %91 = vmatpush2.msra.mxu0 0.0
  %92 = vmatprep.subr.mxu0 0.0
  %93 = vmatpush2.msra.mxu0 0.0
  %94 = vmatprep.subr.mxu0 0.0
  %95 = vmatpush2.msra.mxu0 0.0
  %96 = vmatprep.subr.mxu0 0.0
  %97 = vmatpush2.msra.mxu0 0.0
  %98 = vmatprep.subr.mxu0 0.0
  %99 = vmatpush2.msra.mxu0 0.0
  %100 = vmatprep.subr.mxu0 0.0
  %101 = vmatpush2.msra.mxu0 0.0
  %102 = vmatprep.subr.mxu0 0.0
  %103 = vmatpush2.msra.mxu0 0.0
  %104 = vmatprep.subr.mxu0 0.0
  %105 = vmatpush2.msra.mxu0 0.0
  %106 = vmatprep.subr.mxu0 0.0
  %107 = vmatpush2.msra.mxu0 0.0
  %108 = vmatprep.mubr.f32.mxu0 0.0
  %109 = vmatmul.mubr.f32.gmra.mxu0 %v43
  %v110 = vpop.f32.mrf.mxu0
  %v111 = vadd.f32 0.0, %v110
  %v112 = vpop.f32.mrf.mxu0
  %113 = vdwg.mxu0
  %114 = vadd.xlane.f32.xlu0 %v111
  %v115 = vpop.xlane.xlu0 %114
  %v116 = vmul.f32 %v115, 0.0078125
  %v117 = vsub.f32 %v111, %v116
  %v118 = vmul.f32 %v117, %v117
  %119 = vadd.xlane.f32.xlu0 %v118
  %v120 = vpop.xlane.xlu0 %119
  %v121 = vmul.f32 %v120, 0.0078125
  %v122 = vadd.f32 %v121, 1e-05
  %v123 = vrsqrt.pop %v122
  %v124 = vmul.f32 %v117, %v123
  %125 = vst [vmem:[%s2] sm:$0xff] %v124
  // Predicated region
  $region10: #{_forward_impl.97} parent=0 // pred_check
    _
  $region11: #{_forward_impl.97} parent=0 // pred_check_branch
    %127 = sbr.rel (0) target = $region13
  $region12: #{_forward_impl.97} parent=0 // pred_region
    _
  $region13: #{_forward_impl.97} parent=0 // pred_fallthru
    _
  // Predicated region
  $region14: #{_forward_impl.97} parent=0 // pred_check
    _
  $region15: #{_forward_impl.97} parent=0 // pred_check_branch
    %129 = sbr.rel (0) target = $region17
  $region16: #{_forward_impl.97} parent=0 // pred_region
    _
  $region17: #{_forward_impl.97} parent=0 // pred_fallthru
    _

// kernel: _forward_impl.90
$region0: #{_forward_impl.90}
  #allocation0 [shape = 'u32[]', space=smem, size = 0x4, offset = 0x4, fixed_abs, tag = 'smem constant byte address 0x4 - core index']
  #allocation1 [shape = 'u32[144,128]{1,0:T(1,128)}', space=vmem, size = 0x12000, scoped, tag = 'internal scratch']
  %s0 = inlined_call_operand.vmem [shape: f32[9,8,128], index: 0, kind: input, shape index: {}]
  %s1 = inlined_call_operand.vmem [shape: f32[1,128], index: 1, kind: input, shape index: {}]
  %s2 = inlined_call_operand.vmem [shape: f32[8,128], index: 2, kind: output, shape index: {}]
  %s3 = sld [smem:[#allocation0]]
  $region18: #{_forward_impl.90} parent=0
    _
  %s5 = ssub.s32 1, %s3
  %s6 = scalar_select 0, %s5, %s3
  // Predicated region
  $region2: #{_forward_impl.90} parent=0 // pred_check
    _
  $region3: #{_forward_impl.90} parent=0 // pred_check_branch
    %8 = sbr.rel (0) target = $region5
  $region4: #{_forward_impl.90} parent=0 // pred_region
    _
  $region5: #{_forward_impl.90} parent=0 // pred_fallthru
    _
  // Predicated region
  $region6: #{_forward_impl.90} parent=0 // pred_check
    _
  $region7: #{_forward_impl.90} parent=0 // pred_check_branch
    %10 = sbr.rel (0) target = $region9
  $region8: #{_forward_impl.90} parent=0 // pred_region
    _
  $region9: #{_forward_impl.90} parent=0 // pred_fallthru
    _
  %v11 = vld [vmem:[%s0] sm:$0xff]
  %s12 = scalar_lea.vmem %s0, 8
  %v13 = vld [vmem:[%s12] sm:$0xff]
  %v14 = vmax.f32 %v11, %v13
  %s15 = scalar_lea.vmem %s0, 16
  %v16 = vld [vmem:[%s15] sm:$0xff]
  %v17 = vmax.f32 %v14, %v16
  %s18 = scalar_lea.vmem %s0, 24
  %v19 = vld [vmem:[%s18] sm:$0xff]
  %v20 = vmax.f32 %v17, %v19
  %s21 = scalar_lea.vmem %s0, 32
  %v22 = vld [vmem:[%s21] sm:$0xff]
  %v23 = vmax.f32 %v20, %v22
  %s24 = scalar_lea.vmem %s0, 40
  %v25 = vld [vmem:[%s24] sm:$0xff]
  %v26 = vmax.f32 %v23, %v25
  %s27 = scalar_lea.vmem %s0, 48
  %v28 = vld [vmem:[%s27] sm:$0xff]
  %v29 = vmax.f32 %v26, %v28
  %s30 = scalar_lea.vmem %s0, 56
  %v31 = vld [vmem:[%s30] sm:$0xff]
  %v32 = vmax.f32 %v29, %v31
  %s33 = scalar_lea.vmem %s0, 64
  %v34 = vld [vmem:[%s33] sm:$0xff]
  %v35 = vmax.f32 %v32, %v34
  %36 = vadd.xlane.f32.xlu0 %v35
  %v37 = vpop.xlane.xlu0 %36
  %v38 = vmul.f32 %v37, 0.0078125
  %v39 = vsub.f32 %v35, %v38
  %v40 = vmul.f32 %v39, %v39
  %41 = vadd.xlane.f32.xlu0 %v40
  %v42 = vpop.xlane.xlu0 %41
  %v43 = vmul.f32 %v42, 0.0078125
  %v44 = vadd.f32 %v43, 1e-05
  %v45 = vrsqrt.pop %v44
  %v46 = vmul.f32 %v39, %v45
  %47 = vst [vmem:[%s2] sm:$0xff] %v46
  // Predicated region
  $region10: #{_forward_impl.90} parent=0 // pred_check
    _
  $region11: #{_forward_impl.90} parent=0 // pred_check_branch
    %49 = sbr.rel (0) target = $region13
  $region12: #{_forward_impl.90} parent=0 // pred_region
    _
  $region13: #{_forward_impl.90} parent=0 // pred_fallthru
    _
  // Predicated region
  $region14: #{_forward_impl.90} parent=0 // pred_check
    _
  $region15: #{_forward_impl.90} parent=0 // pred_check_branch
    %51 = sbr.rel (0) target = $region17
  $region16: #{_forward_impl.90} parent=0 // pred_region
    _
  $region17: #{_forward_impl.90} parent=0 // pred_fallthru
    _

// kernel: _forward_impl.99
$region0: #{_forward_impl.99}
  #allocation0 [shape = 'u32[]', space=smem, size = 0x4, offset = 0x4, fixed_abs, tag = 'smem constant byte address 0x4 - core index']
  #allocation1 [shape = 'u32[144,128]{1,0:T(1,128)}', space=vmem, size = 0x12000, scoped, tag = 'internal scratch']
  %s0 = inlined_call_operand.vmem [shape: f32[9,8,128], index: 0, kind: input, shape index: {}]
  %s1 = inlined_call_operand.vmem [shape: f32[1,128], index: 1, kind: input, shape index: {}]
  %s2 = inlined_call_operand.vmem [shape: f32[8,128], index: 2, kind: output, shape index: {}]
  %s3 = sld [smem:[#allocation0]]
  $region18: #{_forward_impl.99} parent=0
    _
  %s5 = ssub.s32 1, %s3
  %s6 = scalar_select 0, %s5, %s3
  // Predicated region
  $region2: #{_forward_impl.99} parent=0 // pred_check
    _
  $region3: #{_forward_impl.99} parent=0 // pred_check_branch
    %8 = sbr.rel (0) target = $region5
  $region4: #{_forward_impl.99} parent=0 // pred_region
    _
  $region5: #{_forward_impl.99} parent=0 // pred_fallthru
    _
  // Predicated region
  $region6: #{_forward_impl.99} parent=0 // pred_check
    _
  $region7: #{_forward_impl.99} parent=0 // pred_check_branch
    %10 = sbr.rel (0) target = $region9
  $region8: #{_forward_impl.99} parent=0 // pred_region
    _
  $region9: #{_forward_impl.99} parent=0 // pred_fallthru
    _
  %v11 = vld [vmem:[%s0] sm:$0xff]
  %s12 = scalar_lea.vmem %s0, 8
  %v13 = vld [vmem:[%s12] sm:$0xff]
  %v14 = vadd.f32 %v11, %v13
  %s15 = scalar_lea.vmem %s0, 16
  %v16 = vld [vmem:[%s15] sm:$0xff]
  %v17 = vadd.f32 %v14, %v16
  %s18 = scalar_lea.vmem %s0, 24
  %v19 = vld [vmem:[%s18] sm:$0xff]
  %v20 = vadd.f32 %v17, %v19
  %s21 = scalar_lea.vmem %s0, 32
  %v22 = vld [vmem:[%s21] sm:$0xff]
  %v23 = vadd.f32 %v20, %v22
  %s24 = scalar_lea.vmem %s0, 40
  %v25 = vld [vmem:[%s24] sm:$0xff]
  %v26 = vadd.f32 %v23, %v25
  %s27 = scalar_lea.vmem %s0, 48
  %v28 = vld [vmem:[%s27] sm:$0xff]
  %v29 = vadd.f32 %v26, %v28
  %s30 = scalar_lea.vmem %s0, 56
  %v31 = vld [vmem:[%s30] sm:$0xff]
  %v32 = vadd.f32 %v29, %v31
  %s33 = scalar_lea.vmem %s0, 64
  %v34 = vld [vmem:[%s33] sm:$0xff]
  %v35 = vadd.f32 %v32, %v34
  %v36 = vld [vmem:[%s1] sm:$0x1]
  %v38 = vlaneseq
  %v39 = vshrl.u32 %v38, 7
  %v40 = vsub.s32 0, %v39
  %v41 = vrot.slane %v36, %v40
  %v43 = vmul.f32 %v35, %v41
  %44 = vadd.xlane.f32.xlu0 %v43
  %v45 = vpop.xlane.xlu0 %44
  %v46 = vmul.f32 %v45, 0.0078125
  %v47 = vsub.f32 %v43, %v46
  %v48 = vmul.f32 %v47, %v47
  %49 = vadd.xlane.f32.xlu0 %v48
  %v50 = vpop.xlane.xlu0 %49
  %v51 = vmul.f32 %v50, 0.0078125
  %v52 = vadd.f32 %v51, 1e-05
  %v53 = vrsqrt.pop %v52
  %v54 = vmul.f32 %v47, %v53
  %55 = vst [vmem:[%s2] sm:$0xff] %v54
  // Predicated region
  $region10: #{_forward_impl.99} parent=0 // pred_check
    _
  $region11: #{_forward_impl.99} parent=0 // pred_check_branch
    %57 = sbr.rel (0) target = $region13
  $region12: #{_forward_impl.99} parent=0 // pred_region
    _
  $region13: #{_forward_impl.99} parent=0 // pred_fallthru
    _
  // Predicated region
  $region14: #{_forward_impl.99} parent=0 // pred_check
    _
  $region15: #{_forward_impl.99} parent=0 // pred_check_branch
    %59 = sbr.rel (0) target = $region17
  $region16: #{_forward_impl.99} parent=0 // pred_region
    _
  $region17: #{_forward_impl.99} parent=0 // pred_fallthru
    _

// kernel: _forward_impl.107
$region0: #{_forward_impl.107}
  #allocation0 [shape = 'u32[]', space=smem, size = 0x4, offset = 0x4, fixed_abs, tag = 'smem constant byte address 0x4 - core index']
  #allocation1 [shape = 'u32[144,128]{1,0:T(1,128)}', space=vmem, size = 0x12000, scoped, tag = 'internal scratch']
  %s0 = inlined_call_operand.vmem [shape: f32[16,128], index: 0, kind: input, shape index: {}]
  %s1 = inlined_call_operand.vmem [shape: f32[128,128], index: 1, kind: input, shape index: {}]
  %s2 = inlined_call_operand.vmem [shape: f32[16,128], index: 2, kind: output, shape index: {}]
  %s3 = sld [smem:[#allocation0]]
  $region18: #{_forward_impl.107} parent=0
    _
  %s5 = ssub.s32 1, %s3
  %s6 = scalar_select 0, %s5, %s3
  // Predicated region
  $region2: #{_forward_impl.107} parent=0 // pred_check
    _
  $region3: #{_forward_impl.107} parent=0 // pred_check_branch
    %8 = sbr.rel (0) target = $region5
  $region4: #{_forward_impl.107} parent=0 // pred_region
    _
  $region5: #{_forward_impl.107} parent=0 // pred_fallthru
    _
  // Predicated region
  $region6: #{_forward_impl.107} parent=0 // pred_check
    _
  $region7: #{_forward_impl.107} parent=0 // pred_check_branch
    %10 = sbr.rel (0) target = $region9
  $region8: #{_forward_impl.107} parent=0 // pred_region
    _
  $region9: #{_forward_impl.107} parent=0 // pred_fallthru
    _
  %v11 = vld [vmem:[%s1] sm:$0xff]
  %v12 = vld [vmem:[%s1 + $0x8] sm:$0xff]
  %v13 = vld [vmem:[%s1 + $0x10] sm:$0xff]
  %v14 = vld [vmem:[%s1 + $0x18] sm:$0xff]
  %v15 = vld [vmem:[%s1 + $0x20] sm:$0xff]
  %v16 = vld [vmem:[%s1 + $0x28] sm:$0xff]
  %v17 = vld [vmem:[%s1 + $0x30] sm:$0xff]
  %v18 = vld [vmem:[%s1 + $0x38] sm:$0xff]
  %v19 = vld [vmem:[%s1 + $0x40] sm:$0xff]
  %v20 = vld [vmem:[%s1 + $0x48] sm:$0xff]
  %v21 = vld [vmem:[%s1 + $0x50] sm:$0xff]
  %v22 = vld [vmem:[%s1 + $0x58] sm:$0xff]
  %v23 = vld [vmem:[%s1 + $0x60] sm:$0xff]
  %v24 = vld [vmem:[%s1 + $0x68] sm:$0xff]
  %v25 = vld [vmem:[%s1 + $0x70] sm:$0xff]
  %v26 = vld [vmem:[%s1 + $0x78] sm:$0xff]
  %v27 = vmax.f32 %v11, 0.0
  %v28 = vmax.f32 %v12, 0.0
  %v29 = vmax.f32 %v13, 0.0
  %v30 = vmax.f32 %v14, 0.0
  %v31 = vmax.f32 %v15, 0.0
  %v32 = vmax.f32 %v16, 0.0
  %v33 = vmax.f32 %v17, 0.0
  %v34 = vmax.f32 %v18, 0.0
  %v35 = vmax.f32 %v19, 0.0
  %v36 = vmax.f32 %v20, 0.0
  %v37 = vmax.f32 %v21, 0.0
  %v38 = vmax.f32 %v22, 0.0
  %v39 = vmax.f32 %v23, 0.0
  %v40 = vmax.f32 %v24, 0.0
  %v41 = vmax.f32 %v25, 0.0
  %v42 = vmax.f32 %v26, 0.0
  %v43 = vld [vmem:[%s0] sm:$0xff]
  %v44 = vld [vmem:[%s0 + $0x8] sm:$0xff]
  %45 = vmatprep.subr.mxu0 0.0
  %46 = vmatpush1.msra.mxu0 %v42
  %47 = vmatprep.subr.mxu0 0.0
  %48 = vmatpush1.msra.mxu0 %v41
  %49 = vmatprep.subr.mxu0 0.0
  %50 = vmatpush1.msra.mxu0 %v40
  %51 = vmatprep.subr.mxu0 0.0
  %52 = vmatpush1.msra.mxu0 %v39
  %53 = vmatprep.subr.mxu0 0.0
  %54 = vmatpush1.msra.mxu0 %v38
  %55 = vmatprep.subr.mxu0 0.0
  %56 = vmatpush1.msra.mxu0 %v37
  %57 = vmatprep.subr.mxu0 0.0
  %58 = vmatpush1.msra.mxu0 %v36
  %59 = vmatprep.subr.mxu0 0.0
  %60 = vmatpush1.msra.mxu0 %v35
  %61 = vmatprep.subr.mxu0 0.0
  %62 = vmatpush1.msra.mxu0 %v34
  %63 = vmatprep.subr.mxu0 0.0
  %64 = vmatpush1.msra.mxu0 %v33
  %65 = vmatprep.subr.mxu0 0.0
  %66 = vmatpush1.msra.mxu0 %v32
  %67 = vmatprep.subr.mxu0 0.0
  %68 = vmatpush1.msra.mxu0 %v31
  %69 = vmatprep.subr.mxu0 0.0
  %70 = vmatpush1.msra.mxu0 %v30
  %71 = vmatprep.subr.mxu0 0.0
  %72 = vmatpush1.msra.mxu0 %v29
  %73 = vmatprep.subr.mxu0 0.0
  %74 = vmatpush1.msra.mxu0 %v28
  %75 = vmatprep.subr.mxu0 0.0
  %76 = vmatpush1.msra.mxu0 %v27
  %77 = vmatprep.subr.mxu0 0.0
  %78 = vmatpush2.msra.mxu0 0.0
  %79 = vmatprep.subr.mxu0 0.0
  %80 = vmatpush2.msra.mxu0 0.0
  %81 = vmatprep.subr.mxu0 0.0
  %82 = vmatpush2.msra.mxu0 0.0
  %83 = vmatprep.subr.mxu0 0.0
  %84 = vmatpush2.msra.mxu0 0.0
  %85 = vmatprep.subr.mxu0 0.0
  %86 = vmatpush2.msra.mxu0 0.0
  %87 = vmatprep.subr.mxu0 0.0
  %88 = vmatpush2.msra.mxu0 0.0
  %89 = vmatprep.subr.mxu0 0.0
  %90 = vmatpush2.msra.mxu0 0.0
  %91 = vmatprep.subr.mxu0 0.0
  %92 = vmatpush2.msra.mxu0 0.0
  %93 = vmatprep.subr.mxu0 0.0
  %94 = vmatpush2.msra.mxu0 0.0
  %95 = vmatprep.subr.mxu0 0.0
  %96 = vmatpush2.msra.mxu0 0.0
  %97 = vmatprep.subr.mxu0 0.0
  %98 = vmatpush2.msra.mxu0 0.0
  %99 = vmatprep.subr.mxu0 0.0
  %100 = vmatpush2.msra.mxu0 0.0
  %101 = vmatprep.subr.mxu0 0.0
  %102 = vmatpush2.msra.mxu0 0.0
  %103 = vmatprep.subr.mxu0 0.0
  %104 = vmatpush2.msra.mxu0 0.0
  %105 = vmatprep.subr.mxu0 0.0
  %106 = vmatpush2.msra.mxu0 0.0
  %107 = vmatprep.subr.mxu0 0.0
  %108 = vmatpush2.msra.mxu0 0.0
  %109 = vmatprep.mubr.f32.mxu0 0.0
  %110 = vmatmul.mubr.f32.gmra.mxu0 %v43
  %v111 = vpop.f32.mrf.mxu0
  %v112 = vadd.f32 0.0, %v111
  %v113 = vpop.f32.mrf.mxu0
  %114 = vmatprep.mubr.f32.mxu0 0.0
  %115 = vmatmul.mubr.f32.gmra.mxu0 %v44
  %v116 = vpop.f32.mrf.mxu0
  %v117 = vadd.f32 0.0, %v116
  %v118 = vpop.f32.mrf.mxu0
  %119 = vdwg.mxu0
  %120 = vadd.xlane.f32.xlu0 %v112
  %v121 = vpop.xlane.xlu0 %120
  %122 = vadd.xlane.f32.xlu0 %v117
  %v123 = vpop.xlane.xlu0 %122
  %v124 = vmul.f32 %v121, 0.0078125
  %v125 = vmul.f32 %v123, 0.0078125
  %v126 = vsub.f32 %v112, %v124
  %v127 = vsub.f32 %v117, %v125
  %v128 = vmul.f32 %v126, %v126
  %v129 = vmul.f32 %v127, %v127
  %130 = vadd.xlane.f32.xlu0 %v128
  %v131 = vpop.xlane.xlu0 %130
  %132 = vadd.xlane.f32.xlu0 %v129
  %v133 = vpop.xlane.xlu0 %132
  %v134 = vmul.f32 %v131, 0.0078125
  %v135 = vmul.f32 %v133, 0.0078125
  %v136 = vadd.f32 %v134, 1e-05
  %v137 = vadd.f32 %v135, 1e-05
  %v138 = vrsqrt.pop %v136
  %v139 = vrsqrt.pop %v137
  %v140 = vmul.f32 %v126, %v138
  %v141 = vmul.f32 %v127, %v139
  %142 = vst [vmem:[%s2] sm:$0xff] %v140
  %143 = vst [vmem:[%s2 + $0x8] sm:$0xff] %v141
  // Predicated region
  $region10: #{_forward_impl.107} parent=0 // pred_check
    _
  $region11: #{_forward_impl.107} parent=0 // pred_check_branch
    %145 = sbr.rel (0) target = $region13
  $region12: #{_forward_impl.107} parent=0 // pred_region
    _
  $region13: #{_forward_impl.107} parent=0 // pred_fallthru
    _
  // Predicated region
  $region14: #{_forward_impl.107} parent=0 // pred_check
    _
  $region15: #{_forward_impl.107} parent=0 // pred_check_branch
    %147 = sbr.rel (0) target = $region17
  $region16: #{_forward_impl.107} parent=0 // pred_region
    _
  $region17: #{_forward_impl.107} parent=0 // pred_fallthru
    _

// kernel: _forward_impl.121
$region0: #{_forward_impl.121}
  #allocation0 [shape = 'u32[]', space=smem, size = 0x4, offset = 0x4, fixed_abs, tag = 'smem constant byte address 0x4 - core index']
  #allocation1 [shape = 'u32[144,128]{1,0:T(1,128)}', space=vmem, size = 0x12000, scoped, tag = 'internal scratch']
  %s0 = inlined_call_operand.vmem [shape: f32[16,512], index: 0, kind: input, shape index: {}]
  %s1 = inlined_call_operand.vmem [shape: f32[512,128], index: 1, kind: input, shape index: {}]
  %s2 = inlined_call_operand.vmem [shape: f32[16,128], index: 2, kind: output, shape index: {}]
  %s3 = sld [smem:[#allocation0]]
  $region18: #{_forward_impl.121} parent=0
    _
  %s5 = ssub.s32 1, %s3
  %s6 = scalar_select 0, %s5, %s3
  // Predicated region
  $region2: #{_forward_impl.121} parent=0 // pred_check
    _
  $region3: #{_forward_impl.121} parent=0 // pred_check_branch
    %8 = sbr.rel (0) target = $region5
  $region4: #{_forward_impl.121} parent=0 // pred_region
    _
  $region5: #{_forward_impl.121} parent=0 // pred_fallthru
    _
  // Predicated region
  $region6: #{_forward_impl.121} parent=0 // pred_check
    _
  $region7: #{_forward_impl.121} parent=0 // pred_check_branch
    %10 = sbr.rel (0) target = $region9
  $region8: #{_forward_impl.121} parent=0 // pred_region
    _
  $region9: #{_forward_impl.121} parent=0 // pred_fallthru
    _
  %v11 = vld [vmem:[%s1] sm:$0xff]
  %v12 = vld [vmem:[%s1 + $0x8] sm:$0xff]
  %v13 = vld [vmem:[%s1 + $0x10] sm:$0xff]
  %v14 = vld [vmem:[%s1 + $0x18] sm:$0xff]
  %v15 = vld [vmem:[%s1 + $0x20] sm:$0xff]
  %v16 = vld [vmem:[%s1 + $0x28] sm:$0xff]
  %v17 = vld [vmem:[%s1 + $0x30] sm:$0xff]
  %v18 = vld [vmem:[%s1 + $0x38] sm:$0xff]
  %v19 = vld [vmem:[%s1 + $0x40] sm:$0xff]
  %v20 = vld [vmem:[%s1 + $0x48] sm:$0xff]
  %v21 = vld [vmem:[%s1 + $0x50] sm:$0xff]
  %v22 = vld [vmem:[%s1 + $0x58] sm:$0xff]
  %v23 = vld [vmem:[%s1 + $0x60] sm:$0xff]
  %v24 = vld [vmem:[%s1 + $0x68] sm:$0xff]
  %v25 = vld [vmem:[%s1 + $0x70] sm:$0xff]
  %v26 = vld [vmem:[%s1 + $0x78] sm:$0xff]
  %v27 = vld [vmem:[%s1 + $0x80] sm:$0xff]
  %v28 = vld [vmem:[%s1 + $0x88] sm:$0xff]
  %v29 = vld [vmem:[%s1 + $0x90] sm:$0xff]
  %v30 = vld [vmem:[%s1 + $0x98] sm:$0xff]
  %v31 = vld [vmem:[%s1 + $0xa0] sm:$0xff]
  %v32 = vld [vmem:[%s1 + $0xa8] sm:$0xff]
  %v33 = vld [vmem:[%s1 + $0xb0] sm:$0xff]
  %v34 = vld [vmem:[%s1 + $0xb8] sm:$0xff]
  %v35 = vld [vmem:[%s1 + $0xc0] sm:$0xff]
  %v36 = vld [vmem:[%s1 + $0xc8] sm:$0xff]
  %v37 = vld [vmem:[%s1 + $0xd0] sm:$0xff]
  %v38 = vld [vmem:[%s1 + $0xd8] sm:$0xff]
  %v39 = vld [vmem:[%s1 + $0xe0] sm:$0xff]
  %v40 = vld [vmem:[%s1 + $0xe8] sm:$0xff]
  %v41 = vld [vmem:[%s1 + $0xf0] sm:$0xff]
  %v42 = vld [vmem:[%s1 + $0xf8] sm:$0xff]
  %v43 = vld [vmem:[%s1 + $0x100] sm:$0xff]
  %v44 = vld [vmem:[%s1 + $0x108] sm:$0xff]
  %v45 = vld [vmem:[%s1 + $0x110] sm:$0xff]
  %v46 = vld [vmem:[%s1 + $0x118] sm:$0xff]
  %v47 = vld [vmem:[%s1 + $0x120] sm:$0xff]
  %v48 = vld [vmem:[%s1 + $0x128] sm:$0xff]
  %v49 = vld [vmem:[%s1 + $0x130] sm:$0xff]
  %v50 = vld [vmem:[%s1 + $0x138] sm:$0xff]
  %v51 = vld [vmem:[%s1 + $0x140] sm:$0xff]
  %v52 = vld [vmem:[%s1 + $0x148] sm:$0xff]
  %v53 = vld [vmem:[%s1 + $0x150] sm:$0xff]
  %v54 = vld [vmem:[%s1 + $0x158] sm:$0xff]
  %v55 = vld [vmem:[%s1 + $0x160] sm:$0xff]
  %v56 = vld [vmem:[%s1 + $0x168] sm:$0xff]
  %v57 = vld [vmem:[%s1 + $0x170] sm:$0xff]
  %v58 = vld [vmem:[%s1 + $0x178] sm:$0xff]
  %v59 = vld [vmem:[%s1 + $0x180] sm:$0xff]
  %v60 = vld [vmem:[%s1 + $0x188] sm:$0xff]
  %v61 = vld [vmem:[%s1 + $0x190] sm:$0xff]
  %v62 = vld [vmem:[%s1 + $0x198] sm:$0xff]
  %v63 = vld [vmem:[%s1 + $0x1a0] sm:$0xff]
  %v64 = vld [vmem:[%s1 + $0x1a8] sm:$0xff]
  %v65 = vld [vmem:[%s1 + $0x1b0] sm:$0xff]
  %v66 = vld [vmem:[%s1 + $0x1b8] sm:$0xff]
  %v67 = vld [vmem:[%s1 + $0x1c0] sm:$0xff]
  %v68 = vld [vmem:[%s1 + $0x1c8] sm:$0xff]
  %v69 = vld [vmem:[%s1 + $0x1d0] sm:$0xff]
  %v70 = vld [vmem:[%s1 + $0x1d8] sm:$0xff]
  %v71 = vld [vmem:[%s1 + $0x1e0] sm:$0xff]
  %v72 = vld [vmem:[%s1 + $0x1e8] sm:$0xff]
  %v73 = vld [vmem:[%s1 + $0x1f0] sm:$0xff]
  %v74 = vld [vmem:[%s1 + $0x1f8] sm:$0xff]
  %v75 = vmax.f32 %v11, 0.0
  %v76 = vmax.f32 %v12, 0.0
  %v77 = vmax.f32 %v13, 0.0
  %v78 = vmax.f32 %v14, 0.0
  %v79 = vmax.f32 %v15, 0.0
  %v80 = vmax.f32 %v16, 0.0
  %v81 = vmax.f32 %v17, 0.0
  %v82 = vmax.f32 %v18, 0.0
  %v83 = vmax.f32 %v19, 0.0
  %v84 = vmax.f32 %v20, 0.0
  %v85 = vmax.f32 %v21, 0.0
  %v86 = vmax.f32 %v22, 0.0
  %v87 = vmax.f32 %v23, 0.0
  %v88 = vmax.f32 %v24, 0.0
  %v89 = vmax.f32 %v25, 0.0
  %v90 = vmax.f32 %v26, 0.0
  %v91 = vmax.f32 %v27, 0.0
  %v92 = vmax.f32 %v28, 0.0
  %v93 = vmax.f32 %v29, 0.0
  %v94 = vmax.f32 %v30, 0.0
  %v95 = vmax.f32 %v31, 0.0
  %v96 = vmax.f32 %v32, 0.0
  %v97 = vmax.f32 %v33, 0.0
  %v98 = vmax.f32 %v34, 0.0
  %v99 = vmax.f32 %v35, 0.0
  %v100 = vmax.f32 %v36, 0.0
  %v101 = vmax.f32 %v37, 0.0
  %v102 = vmax.f32 %v38, 0.0
  %v103 = vmax.f32 %v39, 0.0
  %v104 = vmax.f32 %v40, 0.0
  %v105 = vmax.f32 %v41, 0.0
  %v106 = vmax.f32 %v42, 0.0
  %v107 = vmax.f32 %v43, 0.0
  %v108 = vmax.f32 %v44, 0.0
  %v109 = vmax.f32 %v45, 0.0
  %v110 = vmax.f32 %v46, 0.0
  %v111 = vmax.f32 %v47, 0.0
  %v112 = vmax.f32 %v48, 0.0
  %v113 = vmax.f32 %v49, 0.0
  %v114 = vmax.f32 %v50, 0.0
  %v115 = vmax.f32 %v51, 0.0
  %v116 = vmax.f32 %v52, 0.0
  %v117 = vmax.f32 %v53, 0.0
  %v118 = vmax.f32 %v54, 0.0
  %v119 = vmax.f32 %v55, 0.0
  %v120 = vmax.f32 %v56, 0.0
  %v121 = vmax.f32 %v57, 0.0
  %v122 = vmax.f32 %v58, 0.0
  %v123 = vmax.f32 %v59, 0.0
  %v124 = vmax.f32 %v60, 0.0
  %v125 = vmax.f32 %v61, 0.0
  %v126 = vmax.f32 %v62, 0.0
  %v127 = vmax.f32 %v63, 0.0
  %v128 = vmax.f32 %v64, 0.0
  %v129 = vmax.f32 %v65, 0.0
  %v130 = vmax.f32 %v66, 0.0
  %v131 = vmax.f32 %v67, 0.0
  %v132 = vmax.f32 %v68, 0.0
  %v133 = vmax.f32 %v69, 0.0
  %v134 = vmax.f32 %v70, 0.0
  %v135 = vmax.f32 %v71, 0.0
  %v136 = vmax.f32 %v72, 0.0
  %v137 = vmax.f32 %v73, 0.0
  %v138 = vmax.f32 %v74, 0.0
  %v139 = vld [vmem:[%s0] sm:$0xff]
  %v140 = vld [vmem:[%s0 + $0x8] sm:$0xff]
  %v141 = vld [vmem:[%s0 + $0x10] sm:$0xff]
  %v142 = vld [vmem:[%s0 + $0x18] sm:$0xff]
  %v143 = vld [vmem:[%s0 + $0x20] sm:$0xff]
  %v144 = vld [vmem:[%s0 + $0x28] sm:$0xff]
  %v145 = vld [vmem:[%s0 + $0x30] sm:$0xff]
  %v146 = vld [vmem:[%s0 + $0x38] sm:$0xff]
  %147 = vmatprep.subr.mxu0 0.0
  %148 = vmatpush1.msra.mxu0 %v90
  %149 = vmatprep.subr.mxu0 0.0
  %150 = vmatpush1.msra.mxu0 %v89
  %151 = vmatprep.subr.mxu0 0.0
  %152 = vmatpush1.msra.mxu0 %v88
  %153 = vmatprep.subr.mxu0 0.0
  %154 = vmatpush1.msra.mxu0 %v87
  %155 = vmatprep.subr.mxu0 0.0
  %156 = vmatpush1.msra.mxu0 %v86
  %157 = vmatprep.subr.mxu0 0.0
  %158 = vmatpush1.msra.mxu0 %v85
  %159 = vmatprep.subr.mxu0 0.0
  %160 = vmatpush1.msra.mxu0 %v84
  %161 = vmatprep.subr.mxu0 0.0
  %162 = vmatpush1.msra.mxu0 %v83
  %163 = vmatprep.subr.mxu0 0.0
  %164 = vmatpush1.msra.mxu0 %v82
  %165 = vmatprep.subr.mxu0 0.0
  %166 = vmatpush1.msra.mxu0 %v81
  %167 = vmatprep.subr.mxu0 0.0
  %168 = vmatpush1.msra.mxu0 %v80
  %169 = vmatprep.subr.mxu0 0.0
  %170 = vmatpush1.msra.mxu0 %v79
  %171 = vmatprep.subr.mxu0 0.0
  %172 = vmatpush1.msra.mxu0 %v78
  %173 = vmatprep.subr.mxu0 0.0
  %174 = vmatpush1.msra.mxu0 %v77
  %175 = vmatprep.subr.mxu0 0.0
  %176 = vmatpush1.msra.mxu0 %v76
  %177 = vmatprep.subr.mxu0 0.0
  %178 = vmatpush1.msra.mxu0 %v75
  %179 = vmatprep.subr.mxu0 0.0
  %180 = vmatpush2.msra.mxu0 %v106
  %181 = vmatprep.subr.mxu0 0.0
  %182 = vmatpush2.msra.mxu0 %v105
  %183 = vmatprep.subr.mxu0 0.0
  %184 = vmatpush2.msra.mxu0 %v104
  %185 = vmatprep.subr.mxu0 0.0
  %186 = vmatpush2.msra.mxu0 %v103
  %187 = vmatprep.subr.mxu0 0.0
  %188 = vmatpush2.msra.mxu0 %v102
  %189 = vmatprep.subr.mxu0 0.0
  %190 = vmatpush2.msra.mxu0 %v101
  %191 = vmatprep.subr.mxu0 0.0
  %192 = vmatpush2.msra.mxu0 %v100
  %193 = vmatprep.subr.mxu0 0.0
  %194 = vmatpush2.msra.mxu0 %v99
  %195 = vmatprep.subr.mxu0 0.0
  %196 = vmatpush2.msra.mxu0 %v98
  %197 = vmatprep.subr.mxu0 0.0
  %198 = vmatpush2.msra.mxu0 %v97
  %199 = vmatprep.subr.mxu0 0.0
  %200 = vmatpush2.msra.mxu0 %v96
  %201 = vmatprep.subr.mxu0 0.0
  %202 = vmatpush2.msra.mxu0 %v95
  %203 = vmatprep.subr.mxu0 0.0
  %204 = vmatpush2.msra.mxu0 %v94
  %205 = vmatprep.subr.mxu0 0.0
  %206 = vmatpush2.msra.mxu0 %v93
  %207 = vmatprep.subr.mxu0 0.0
  %208 = vmatpush2.msra.mxu0 %v92
  %209 = vmatprep.subr.mxu0 0.0
  %210 = vmatpush2.msra.mxu0 %v91
  %211 = vmatprep.mubr.f32.mxu0 %v140
  %212 = vmatmul.mubr.f32.gmra.mxu0 %v139
  %v213 = vpop.f32.mrf.mxu0
  %v214 = vadd.f32 0.0, %v213
  %v215 = vpop.f32.mrf.mxu0
  %216 = vmatprep.mubr.f32.mxu0 %v144
  %217 = vmatmul.mubr.f32.gmra.mxu0 %v143
  %v218 = vpop.f32.mrf.mxu0
  %v219 = vadd.f32 0.0, %v218
  %v220 = vpop.f32.mrf.mxu0
  %221 = vdwg.mxu0
  %222 = vmatprep.subr.mxu0 0.0
  %223 = vmatpush1.msra.mxu0 %v122
  %224 = vmatprep.subr.mxu0 0.0
  %225 = vmatpush1.msra.mxu0 %v121
  %226 = vmatprep.subr.mxu0 0.0
  %227 = vmatpush1.msra.mxu0 %v120
  %228 = vmatprep.subr.mxu0 0.0
  %229 = vmatpush1.msra.mxu0 %v119
  %230 = vmatprep.subr.mxu0 0.0
  %231 = vmatpush1.msra.mxu0 %v118
  %232 = vmatprep.subr.mxu0 0.0
  %233 = vmatpush1.msra.mxu0 %v117
  %234 = vmatprep.subr.mxu0 0.0
  %235 = vmatpush1.msra.mxu0 %v116
  %236 = vmatprep.subr.mxu0 0.0
  %237 = vmatpush1.msra.mxu0 %v115
  %238 = vmatprep.subr.mxu0 0.0
  %239 = vmatpush1.msra.mxu0 %v114
  %240 = vmatprep.subr.mxu0 0.0
  %241 = vmatpush1.msra.mxu0 %v113
  %242 = vmatprep.subr.mxu0 0.0
  %243 = vmatpush1.msra.mxu0 %v112
  %244 = vmatprep.subr.mxu0 0.0
  %245 = vmatpush1.msra.mxu0 %v111
  %246 = vmatprep.subr.mxu0 0.0
  %247 = vmatpush1.msra.mxu0 %v110
  %248 = vmatprep.subr.mxu0 0.0
  %249 = vmatpush1.msra.mxu0 %v109
  %250 = vmatprep.subr.mxu0 0.0
  %251 = vmatpush1.msra.mxu0 %v108
  %252 = vmatprep.subr.mxu0 0.0
  %253 = vmatpush1.msra.mxu0 %v107
  %254 = vmatprep.subr.mxu0 0.0
  %255 = vmatpush2.msra.mxu0 %v138
  %256 = vmatprep.subr.mxu0 0.0
  %257 = vmatpush2.msra.mxu0 %v137
  %258 = vmatprep.subr.mxu0 0.0
  %259 = vmatpush2.msra.mxu0 %v136
  %260 = vmatprep.subr.mxu0 0.0
  %261 = vmatpush2.msra.mxu0 %v135
  %262 = vmatprep.subr.mxu0 0.0
  %263 = vmatpush2.msra.mxu0 %v134
  %264 = vmatprep.subr.mxu0 0.0
  %265 = vmatpush2.msra.mxu0 %v133
  %266 = vmatprep.subr.mxu0 0.0
  %267 = vmatpush2.msra.mxu0 %v132
  %268 = vmatprep.subr.mxu0 0.0
  %269 = vmatpush2.msra.mxu0 %v131
  %270 = vmatprep.subr.mxu0 0.0
  %271 = vmatpush2.msra.mxu0 %v130
  %272 = vmatprep.subr.mxu0 0.0
  %273 = vmatpush2.msra.mxu0 %v129
  %274 = vmatprep.subr.mxu0 0.0
  %275 = vmatpush2.msra.mxu0 %v128
  %276 = vmatprep.subr.mxu0 0.0
  %277 = vmatpush2.msra.mxu0 %v127
  %278 = vmatprep.subr.mxu0 0.0
  %279 = vmatpush2.msra.mxu0 %v126
  %280 = vmatprep.subr.mxu0 0.0
  %281 = vmatpush2.msra.mxu0 %v125
  %282 = vmatprep.subr.mxu0 0.0
  %283 = vmatpush2.msra.mxu0 %v124
  %284 = vmatprep.subr.mxu0 0.0
  %285 = vmatpush2.msra.mxu0 %v123
  %286 = vmatprep.mubr.f32.mxu0 %v142
  %287 = vmatmul.mubr.f32.gmra.mxu0 %v141
  %v288 = vpop.f32.mrf.mxu0
  %v289 = vadd.f32 %v214, %v288
  %v290 = vpop.f32.mrf.mxu0
  %291 = vmatprep.mubr.f32.mxu0 %v146
  %292 = vmatmul.mubr.f32.gmra.mxu0 %v145
  %v293 = vpop.f32.mrf.mxu0
  %v294 = vadd.f32 %v219, %v293
  %v295 = vpop.f32.mrf.mxu0
  %296 = vdwg.mxu0
  %v297 = vlaneseq
  %v298 = vand.u32 %v297, 127
  %vm299 = vcmp.lt.s32.totalorder %v298, 32
  %v300 = vsel %vm299, %v289, 0.0
  %v301 = vsel %vm299, %v294, 0.0
  %302 = vadd.xlane.f32.xlu0 %v300
  %v303 = vpop.xlane.xlu0 %302
  %304 = vadd.xlane.f32.xlu0 %v301
  %v305 = vpop.xlane.xlu0 %304
  %v306 = vmul.f32 %v303, 0.03125
  %v307 = vmul.f32 %v305, 0.03125
  %v308 = vsub.f32 %v289, %v306
  %v309 = vsub.f32 %v294, %v307
  %v310 = vsel %vm299, %v308, 0.0
  %v311 = vsel %vm299, %v309, 0.0
  %v312 = vmul.f32 %v310, %v310
  %v313 = vmul.f32 %v311, %v311
  %314 = vadd.xlane.f32.xlu0 %v312
  %v315 = vpop.xlane.xlu0 %314
  %316 = vadd.xlane.f32.xlu0 %v313
  %v317 = vpop.xlane.xlu0 %316
  %v318 = vmul.f32 %v315, 0.03125
  %v319 = vmul.f32 %v317, 0.03125
  %v320 = vadd.f32 %v318, 1e-05
  %v321 = vadd.f32 %v319, 1e-05
  %v322 = vrsqrt.pop %v320
  %v323 = vrsqrt.pop %v321
  %v324 = vmul.f32 %v308, %v322
  %v325 = vmul.f32 %v309, %v323
  %326 = vst [vmem:[%s2] sm:$0xff] %v324
  %327 = vst [vmem:[%s2 + $0x8] sm:$0xff] %v325
  // Predicated region
  $region10: #{_forward_impl.121} parent=0 // pred_check
    _
  $region11: #{_forward_impl.121} parent=0 // pred_check_branch
    %329 = sbr.rel (0) target = $region13
  $region12: #{_forward_impl.121} parent=0 // pred_region
    _
  $region13: #{_forward_impl.121} parent=0 // pred_fallthru
    _
  // Predicated region
  $region14: #{_forward_impl.121} parent=0 // pred_check
    _
  $region15: #{_forward_impl.121} parent=0 // pred_check_branch
    %331 = sbr.rel (0) target = $region17
  $region16: #{_forward_impl.121} parent=0 // pred_region
    _
  $region17: #{_forward_impl.121} parent=0 // pred_fallthru
    _

// kernel: _forward_impl.115
$region0: #{_forward_impl.115}
  #allocation0 [shape = 'u32[]', space=smem, size = 0x4, offset = 0x4, fixed_abs, tag = 'smem constant byte address 0x4 - core index']
  #allocation1 [shape = 'u32[144,128]{1,0:T(1,128)}', space=vmem, size = 0x12000, scoped, tag = 'internal scratch']
  %s0 = inlined_call_operand.vmem [shape: f32[16,256], index: 0, kind: input, shape index: {}]
  %s1 = inlined_call_operand.vmem [shape: f32[256,128], index: 1, kind: input, shape index: {}]
  %s2 = inlined_call_operand.vmem [shape: f32[16,128], index: 2, kind: output, shape index: {}]
  %s3 = sld [smem:[#allocation0]]
  $region18: #{_forward_impl.115} parent=0
    _
  %s5 = ssub.s32 1, %s3
  %s6 = scalar_select 0, %s5, %s3
  // Predicated region
  $region2: #{_forward_impl.115} parent=0 // pred_check
    _
  $region3: #{_forward_impl.115} parent=0 // pred_check_branch
    %8 = sbr.rel (0) target = $region5
  $region4: #{_forward_impl.115} parent=0 // pred_region
    _
  $region5: #{_forward_impl.115} parent=0 // pred_fallthru
    _
  // Predicated region
  $region6: #{_forward_impl.115} parent=0 // pred_check
    _
  $region7: #{_forward_impl.115} parent=0 // pred_check_branch
    %10 = sbr.rel (0) target = $region9
  $region8: #{_forward_impl.115} parent=0 // pred_region
    _
  $region9: #{_forward_impl.115} parent=0 // pred_fallthru
    _
  %v11 = vld [vmem:[%s1] sm:$0xff]
  %v12 = vld [vmem:[%s1 + $0x8] sm:$0xff]
  %v13 = vld [vmem:[%s1 + $0x10] sm:$0xff]
  %v14 = vld [vmem:[%s1 + $0x18] sm:$0xff]
  %v15 = vld [vmem:[%s1 + $0x20] sm:$0xff]
  %v16 = vld [vmem:[%s1 + $0x28] sm:$0xff]
  %v17 = vld [vmem:[%s1 + $0x30] sm:$0xff]
  %v18 = vld [vmem:[%s1 + $0x38] sm:$0xff]
  %v19 = vld [vmem:[%s1 + $0x40] sm:$0xff]
  %v20 = vld [vmem:[%s1 + $0x48] sm:$0xff]
  %v21 = vld [vmem:[%s1 + $0x50] sm:$0xff]
  %v22 = vld [vmem:[%s1 + $0x58] sm:$0xff]
  %v23 = vld [vmem:[%s1 + $0x60] sm:$0xff]
  %v24 = vld [vmem:[%s1 + $0x68] sm:$0xff]
  %v25 = vld [vmem:[%s1 + $0x70] sm:$0xff]
  %v26 = vld [vmem:[%s1 + $0x78] sm:$0xff]
  %v27 = vld [vmem:[%s1 + $0x80] sm:$0xff]
  %v28 = vld [vmem:[%s1 + $0x88] sm:$0xff]
  %v29 = vld [vmem:[%s1 + $0x90] sm:$0xff]
  %v30 = vld [vmem:[%s1 + $0x98] sm:$0xff]
  %v31 = vld [vmem:[%s1 + $0xa0] sm:$0xff]
  %v32 = vld [vmem:[%s1 + $0xa8] sm:$0xff]
  %v33 = vld [vmem:[%s1 + $0xb0] sm:$0xff]
  %v34 = vld [vmem:[%s1 + $0xb8] sm:$0xff]
  %v35 = vld [vmem:[%s1 + $0xc0] sm:$0xff]
  %v36 = vld [vmem:[%s1 + $0xc8] sm:$0xff]
  %v37 = vld [vmem:[%s1 + $0xd0] sm:$0xff]
  %v38 = vld [vmem:[%s1 + $0xd8] sm:$0xff]
  %v39 = vld [vmem:[%s1 + $0xe0] sm:$0xff]
  %v40 = vld [vmem:[%s1 + $0xe8] sm:$0xff]
  %v41 = vld [vmem:[%s1 + $0xf0] sm:$0xff]
  %v42 = vld [vmem:[%s1 + $0xf8] sm:$0xff]
  %v43 = vmax.f32 %v11, 0.0
  %v44 = vmax.f32 %v12, 0.0
  %v45 = vmax.f32 %v13, 0.0
  %v46 = vmax.f32 %v14, 0.0
  %v47 = vmax.f32 %v15, 0.0
  %v48 = vmax.f32 %v16, 0.0
  %v49 = vmax.f32 %v17, 0.0
  %v50 = vmax.f32 %v18, 0.0
  %v51 = vmax.f32 %v19, 0.0
  %v52 = vmax.f32 %v20, 0.0
  %v53 = vmax.f32 %v21, 0.0
  %v54 = vmax.f32 %v22, 0.0
  %v55 = vmax.f32 %v23, 0.0
  %v56 = vmax.f32 %v24, 0.0
  %v57 = vmax.f32 %v25, 0.0
  %v58 = vmax.f32 %v26, 0.0
  %v59 = vmax.f32 %v27, 0.0
  %v60 = vmax.f32 %v28, 0.0
  %v61 = vmax.f32 %v29, 0.0
  %v62 = vmax.f32 %v30, 0.0
  %v63 = vmax.f32 %v31, 0.0
  %v64 = vmax.f32 %v32, 0.0
  %v65 = vmax.f32 %v33, 0.0
  %v66 = vmax.f32 %v34, 0.0
  %v67 = vmax.f32 %v35, 0.0
  %v68 = vmax.f32 %v36, 0.0
  %v69 = vmax.f32 %v37, 0.0
  %v70 = vmax.f32 %v38, 0.0
  %v71 = vmax.f32 %v39, 0.0
  %v72 = vmax.f32 %v40, 0.0
  %v73 = vmax.f32 %v41, 0.0
  %v74 = vmax.f32 %v42, 0.0
  %v75 = vld [vmem:[%s0] sm:$0xff]
  %v76 = vld [vmem:[%s0 + $0x8] sm:$0xff]
  %v77 = vld [vmem:[%s0 + $0x10] sm:$0xff]
  %v78 = vld [vmem:[%s0 + $0x18] sm:$0xff]
  %79 = vmatprep.subr.mxu0 0.0
  %80 = vmatpush1.msra.mxu0 %v58
  %81 = vmatprep.subr.mxu0 0.0
  %82 = vmatpush1.msra.mxu0 %v57
  %83 = vmatprep.subr.mxu0 0.0
  %84 = vmatpush1.msra.mxu0 %v56
  %85 = vmatprep.subr.mxu0 0.0
  %86 = vmatpush1.msra.mxu0 %v55
  %87 = vmatprep.subr.mxu0 0.0
  %88 = vmatpush1.msra.mxu0 %v54
  %89 = vmatprep.subr.mxu0 0.0
  %90 = vmatpush1.msra.mxu0 %v53
  %91 = vmatprep.subr.mxu0 0.0
  %92 = vmatpush1.msra.mxu0 %v52
  %93 = vmatprep.subr.mxu0 0.0
  %94 = vmatpush1.msra.mxu0 %v51
  %95 = vmatprep.subr.mxu0 0.0
  %96 = vmatpush1.msra.mxu0 %v50
  %97 = vmatprep.subr.mxu0 0.0
  %98 = vmatpush1.msra.mxu0 %v49
  %99 = vmatprep.subr.mxu0 0.0
  %100 = vmatpush1.msra.mxu0 %v48
  %101 = vmatprep.subr.mxu0 0.0
  %102 = vmatpush1.msra.mxu0 %v47
  %103 = vmatprep.subr.mxu0 0.0
  %104 = vmatpush1.msra.mxu0 %v46
  %105 = vmatprep.subr.mxu0 0.0
  %106 = vmatpush1.msra.mxu0 %v45
  %107 = vmatprep.subr.mxu0 0.0
  %108 = vmatpush1.msra.mxu0 %v44
  %109 = vmatprep.subr.mxu0 0.0
  %110 = vmatpush1.msra.mxu0 %v43
  %111 = vmatprep.subr.mxu0 0.0
  %112 = vmatpush2.msra.mxu0 %v74
  %113 = vmatprep.subr.mxu0 0.0
  %114 = vmatpush2.msra.mxu0 %v73
  %115 = vmatprep.subr.mxu0 0.0
  %116 = vmatpush2.msra.mxu0 %v72
  %117 = vmatprep.subr.mxu0 0.0
  %118 = vmatpush2.msra.mxu0 %v71
  %119 = vmatprep.subr.mxu0 0.0
  %120 = vmatpush2.msra.mxu0 %v70
  %121 = vmatprep.subr.mxu0 0.0
  %122 = vmatpush2.msra.mxu0 %v69
  %123 = vmatprep.subr.mxu0 0.0
  %124 = vmatpush2.msra.mxu0 %v68
  %125 = vmatprep.subr.mxu0 0.0
  %126 = vmatpush2.msra.mxu0 %v67
  %127 = vmatprep.subr.mxu0 0.0
  %128 = vmatpush2.msra.mxu0 %v66
  %129 = vmatprep.subr.mxu0 0.0
  %130 = vmatpush2.msra.mxu0 %v65
  %131 = vmatprep.subr.mxu0 0.0
  %132 = vmatpush2.msra.mxu0 %v64
  %133 = vmatprep.subr.mxu0 0.0
  %134 = vmatpush2.msra.mxu0 %v63
  %135 = vmatprep.subr.mxu0 0.0
  %136 = vmatpush2.msra.mxu0 %v62
  %137 = vmatprep.subr.mxu0 0.0
  %138 = vmatpush2.msra.mxu0 %v61
  %139 = vmatprep.subr.mxu0 0.0
  %140 = vmatpush2.msra.mxu0 %v60
  %141 = vmatprep.subr.mxu0 0.0
  %142 = vmatpush2.msra.mxu0 %v59
  %143 = vmatprep.mubr.f32.mxu0 %v76
  %144 = vmatmul.mubr.f32.gmra.mxu0 %v75
  %v145 = vpop.f32.mrf.mxu0
  %v146 = vadd.f32 0.0, %v145
  %v147 = vpop.f32.mrf.mxu0
  %148 = vmatprep.mubr.f32.mxu0 %v78
  %149 = vmatmul.mubr.f32.gmra.mxu0 %v77
  %v150 = vpop.f32.mrf.mxu0
  %v151 = vadd.f32 0.0, %v150
  %v152 = vpop.f32.mrf.mxu0
  %153 = vdwg.mxu0
  %v154 = vlaneseq
  %v155 = vand.u32 %v154, 127
  %vm156 = vcmp.lt.s32.totalorder %v155, 32
  %v157 = vsel %vm156, %v146, 0.0
  %v158 = vsel %vm156, %v151, 0.0
  %159 = vadd.xlane.f32.xlu0 %v157
  %v160 = vpop.xlane.xlu0 %159
  %161 = vadd.xlane.f32.xlu0 %v158
  %v162 = vpop.xlane.xlu0 %161
  %v163 = vmul.f32 %v160, 0.03125
  %v164 = vmul.f32 %v162, 0.03125
  %v165 = vsub.f32 %v146, %v163
  %v166 = vsub.f32 %v151, %v164
  %v167 = vsel %vm156, %v165, 0.0
  %v168 = vsel %vm156, %v166, 0.0
  %v169 = vmul.f32 %v167, %v167
  %v170 = vmul.f32 %v168, %v168
  %171 = vadd.xlane.f32.xlu0 %v169
  %v172 = vpop.xlane.xlu0 %171
  %173 = vadd.xlane.f32.xlu0 %v170
  %v174 = vpop.xlane.xlu0 %173
  %v175 = vmul.f32 %v172, 0.03125
  %v176 = vmul.f32 %v174, 0.03125
  %v177 = vadd.f32 %v175, 1e-05
  %v178 = vadd.f32 %v176, 1e-05
  %v179 = vrsqrt.pop %v177
  %v180 = vrsqrt.pop %v178
  %v181 = vmul.f32 %v165, %v179
  %v182 = vmul.f32 %v166, %v180
  %183 = vst [vmem:[%s2] sm:$0xff] %v181
  %184 = vst [vmem:[%s2 + $0x8] sm:$0xff] %v182
  // Predicated region
  $region10: #{_forward_impl.115} parent=0 // pred_check
    _
  $region11: #{_forward_impl.115} parent=0 // pred_check_branch
    %186 = sbr.rel (0) target = $region13
  $region12: #{_forward_impl.115} parent=0 // pred_region
    _
  $region13: #{_forward_impl.115} parent=0 // pred_fallthru
    _
  // Predicated region
  $region14: #{_forward_impl.115} parent=0 // pred_check
    _
  $region15: #{_forward_impl.115} parent=0 // pred_check_branch
    %188 = sbr.rel (0) target = $region17
  $region16: #{_forward_impl.115} parent=0 // pred_region
    _
  $region17: #{_forward_impl.115} parent=0 // pred_fallthru
    _

// kernel: _forward_impl.110
$region0: #{_forward_impl.110}
  #allocation0 [shape = 'u32[]', space=smem, size = 0x4, offset = 0x4, fixed_abs, tag = 'smem constant byte address 0x4 - core index']
  #allocation1 [shape = 'u32[144,128]{1,0:T(1,128)}', space=vmem, size = 0x12000, scoped, tag = 'internal scratch']
  %s0 = inlined_call_operand.vmem [shape: f32[9,16,128], index: 0, kind: input, shape index: {}]
  %s1 = inlined_call_operand.vmem [shape: f32[1,128], index: 1, kind: input, shape index: {}]
  %s2 = inlined_call_operand.vmem [shape: f32[16,128], index: 2, kind: output, shape index: {}]
  %s3 = sld [smem:[#allocation0]]
  $region18: #{_forward_impl.110} parent=0
    _
  %s5 = ssub.s32 1, %s3
  %s6 = scalar_select 0, %s5, %s3
  // Predicated region
  $region2: #{_forward_impl.110} parent=0 // pred_check
    _
  $region3: #{_forward_impl.110} parent=0 // pred_check_branch
    %8 = sbr.rel (0) target = $region5
  $region4: #{_forward_impl.110} parent=0 // pred_region
    _
  $region5: #{_forward_impl.110} parent=0 // pred_fallthru
    _
  // Predicated region
  $region6: #{_forward_impl.110} parent=0 // pred_check
    _
  $region7: #{_forward_impl.110} parent=0 // pred_check_branch
    %10 = sbr.rel (0) target = $region9
  $region8: #{_forward_impl.110} parent=0 // pred_region
    _
  $region9: #{_forward_impl.110} parent=0 // pred_fallthru
    _
  %v11 = vld [vmem:[%s0] sm:$0xff]
  %v12 = vld [vmem:[%s0 + $0x8] sm:$0xff]
  %s13 = scalar_lea.vmem %s0, 16
  %v14 = vld [vmem:[%s13] sm:$0xff]
  %v15 = vld [vmem:[%s13 + $0x8] sm:$0xff]
  %v16 = vmax.f32 %v11, %v14
  %v17 = vmax.f32 %v12, %v15
  %s18 = scalar_lea.vmem %s0, 32
  %v19 = vld [vmem:[%s18] sm:$0xff]
  %v20 = vld [vmem:[%s18 + $0x8] sm:$0xff]
  %v21 = vmax.f32 %v16, %v19
  %v22 = vmax.f32 %v17, %v20
  %s23 = scalar_lea.vmem %s0, 48
  %v24 = vld [vmem:[%s23] sm:$0xff]
  %v25 = vld [vmem:[%s23 + $0x8] sm:$0xff]
  %v26 = vmax.f32 %v21, %v24
  %v27 = vmax.f32 %v22, %v25
  %s28 = scalar_lea.vmem %s0, 64
  %v29 = vld [vmem:[%s28] sm:$0xff]
  %v30 = vld [vmem:[%s28 + $0x8] sm:$0xff]
  %v31 = vmax.f32 %v26, %v29
  %v32 = vmax.f32 %v27, %v30
  %s33 = scalar_lea.vmem %s0, 80
  %v34 = vld [vmem:[%s33] sm:$0xff]
  %v35 = vld [vmem:[%s33 + $0x8] sm:$0xff]
  %v36 = vmax.f32 %v31, %v34
  %v37 = vmax.f32 %v32, %v35
  %s38 = scalar_lea.vmem %s0, 96
  %v39 = vld [vmem:[%s38] sm:$0xff]
  %v40 = vld [vmem:[%s38 + $0x8] sm:$0xff]
  %v41 = vmax.f32 %v36, %v39
  %v42 = vmax.f32 %v37, %v40
  %s43 = scalar_lea.vmem %s0, 112
  %v44 = vld [vmem:[%s43] sm:$0xff]
  %v45 = vld [vmem:[%s43 + $0x8] sm:$0xff]
  %v46 = vmax.f32 %v41, %v44
  %v47 = vmax.f32 %v42, %v45
  %s48 = scalar_lea.vmem %s0, 128
  %v49 = vld [vmem:[%s48] sm:$0xff]
  %v50 = vld [vmem:[%s48 + $0x8] sm:$0xff]
  %v51 = vmax.f32 %v46, %v49
  %v52 = vmax.f32 %v47, %v50
  %v53 = vlaneseq
  %v54 = vand.u32 %v53, 127
  %vm55 = vcmp.lt.s32.totalorder %v54, 32
  %v56 = vsel %vm55, %v51, 0.0
  %v57 = vsel %vm55, %v52, 0.0
  %58 = vadd.xlane.f32.xlu0 %v56
  %v59 = vpop.xlane.xlu0 %58
  %60 = vadd.xlane.f32.xlu0 %v57
  %v61 = vpop.xlane.xlu0 %60
  %v62 = vmul.f32 %v59, 0.03125
  %v63 = vmul.f32 %v61, 0.03125
  %v64 = vsub.f32 %v51, %v62
  %v65 = vsub.f32 %v52, %v63
  %v66 = vsel %vm55, %v64, 0.0
  %v67 = vsel %vm55, %v65, 0.0
  %v68 = vmul.f32 %v66, %v66
  %v69 = vmul.f32 %v67, %v67
  %70 = vadd.xlane.f32.xlu0 %v68
  %v71 = vpop.xlane.xlu0 %70
  %72 = vadd.xlane.f32.xlu0 %v69
  %v73 = vpop.xlane.xlu0 %72
  %v74 = vmul.f32 %v71, 0.03125
  %v75 = vmul.f32 %v73, 0.03125
  %v76 = vadd.f32 %v74, 1e-05
  %v77 = vadd.f32 %v75, 1e-05
  %v78 = vrsqrt.pop %v76
  %v79 = vrsqrt.pop %v77
  %v80 = vmul.f32 %v64, %v78
  %v81 = vmul.f32 %v65, %v79
  %82 = vst [vmem:[%s2] sm:$0xff] %v80
  %83 = vst [vmem:[%s2 + $0x8] sm:$0xff] %v81
  // Predicated region
  $region10: #{_forward_impl.110} parent=0 // pred_check
    _
  $region11: #{_forward_impl.110} parent=0 // pred_check_branch
    %85 = sbr.rel (0) target = $region13
  $region12: #{_forward_impl.110} parent=0 // pred_region
    _
  $region13: #{_forward_impl.110} parent=0 // pred_fallthru
    _
  // Predicated region
  $region14: #{_forward_impl.110} parent=0 // pred_check
    _
  $region15: #{_forward_impl.110} parent=0 // pred_check_branch
    %87 = sbr.rel (0) target = $region17
  $region16: #{_forward_impl.110} parent=0 // pred_region
    _
  $region17: #{_forward_impl.110} parent=0 // pred_fallthru
    _

// kernel: _forward_impl.125
$region0: #{_forward_impl.125}
  #allocation0 [shape = 'u32[]', space=smem, size = 0x4, offset = 0x4, fixed_abs, tag = 'smem constant byte address 0x4 - core index']
  #allocation1 [shape = 'u32[144,128]{1,0:T(1,128)}', space=vmem, size = 0x12000, scoped, tag = 'internal scratch']
  %s0 = inlined_call_operand.vmem [shape: f32[16,128], index: 0, kind: input, shape index: {}]
  %s1 = inlined_call_operand.vmem [shape: f32[128,128], index: 1, kind: input, shape index: {}]
  %s2 = inlined_call_operand.vmem [shape: f32[16,128], index: 2, kind: output, shape index: {}]
  %s3 = sld [smem:[#allocation0]]
  $region18: #{_forward_impl.125} parent=0
    _
  %s5 = ssub.s32 1, %s3
  %s6 = scalar_select 0, %s5, %s3
  // Predicated region
  $region2: #{_forward_impl.125} parent=0 // pred_check
    _
  $region3: #{_forward_impl.125} parent=0 // pred_check_branch
    %8 = sbr.rel (0) target = $region5
  $region4: #{_forward_impl.125} parent=0 // pred_region
    _
  $region5: #{_forward_impl.125} parent=0 // pred_fallthru
    _
  // Predicated region
  $region6: #{_forward_impl.125} parent=0 // pred_check
    _
  $region7: #{_forward_impl.125} parent=0 // pred_check_branch
    %10 = sbr.rel (0) target = $region9
  $region8: #{_forward_impl.125} parent=0 // pred_region
    _
  $region9: #{_forward_impl.125} parent=0 // pred_fallthru
    _
  %v11 = vld [vmem:[%s1] sm:$0xff]
  %v12 = vld [vmem:[%s1 + $0x8] sm:$0xff]
  %v13 = vld [vmem:[%s1 + $0x10] sm:$0xff]
  %v14 = vld [vmem:[%s1 + $0x18] sm:$0xff]
  %v15 = vld [vmem:[%s1 + $0x20] sm:$0xff]
  %v16 = vld [vmem:[%s1 + $0x28] sm:$0xff]
  %v17 = vld [vmem:[%s1 + $0x30] sm:$0xff]
  %v18 = vld [vmem:[%s1 + $0x38] sm:$0xff]
  %v19 = vld [vmem:[%s1 + $0x40] sm:$0xff]
  %v20 = vld [vmem:[%s1 + $0x48] sm:$0xff]
  %v21 = vld [vmem:[%s1 + $0x50] sm:$0xff]
  %v22 = vld [vmem:[%s1 + $0x58] sm:$0xff]
  %v23 = vld [vmem:[%s1 + $0x60] sm:$0xff]
  %v24 = vld [vmem:[%s1 + $0x68] sm:$0xff]
  %v25 = vld [vmem:[%s1 + $0x70] sm:$0xff]
  %v26 = vld [vmem:[%s1 + $0x78] sm:$0xff]
  %v27 = vld [vmem:[%s0] sm:$0xff]
  %v28 = vld [vmem:[%s0 + $0x8] sm:$0xff]
  %29 = vmatprep.subr.mxu0 0.0
  %30 = vmatpush1.msra.mxu0 %v26
  %31 = vmatprep.subr.mxu0 0.0
  %32 = vmatpush1.msra.mxu0 %v25
  %33 = vmatprep.subr.mxu0 0.0
  %34 = vmatpush1.msra.mxu0 %v24
  %35 = vmatprep.subr.mxu0 0.0
  %36 = vmatpush1.msra.mxu0 %v23
  %37 = vmatprep.subr.mxu0 0.0
  %38 = vmatpush1.msra.mxu0 %v22
  %39 = vmatprep.subr.mxu0 0.0
  %40 = vmatpush1.msra.mxu0 %v21
  %41 = vmatprep.subr.mxu0 0.0
  %42 = vmatpush1.msra.mxu0 %v20
  %43 = vmatprep.subr.mxu0 0.0
  %44 = vmatpush1.msra.mxu0 %v19
  %45 = vmatprep.subr.mxu0 0.0
  %46 = vmatpush1.msra.mxu0 %v18
  %47 = vmatprep.subr.mxu0 0.0
  %48 = vmatpush1.msra.mxu0 %v17
  %49 = vmatprep.subr.mxu0 0.0
  %50 = vmatpush1.msra.mxu0 %v16
  %51 = vmatprep.subr.mxu0 0.0
  %52 = vmatpush1.msra.mxu0 %v15
  %53 = vmatprep.subr.mxu0 0.0
  %54 = vmatpush1.msra.mxu0 %v14
  %55 = vmatprep.subr.mxu0 0.0
  %56 = vmatpush1.msra.mxu0 %v13
  %57 = vmatprep.subr.mxu0 0.0
  %58 = vmatpush1.msra.mxu0 %v12
  %59 = vmatprep.subr.mxu0 0.0
  %60 = vmatpush1.msra.mxu0 %v11
  %61 = vmatprep.subr.mxu0 0.0
  %62 = vmatpush2.msra.mxu0 0.0
  %63 = vmatprep.subr.mxu0 0.0
  %64 = vmatpush2.msra.mxu0 0.0
  %65 = vmatprep.subr.mxu0 0.0
  %66 = vmatpush2.msra.mxu0 0.0
  %67 = vmatprep.subr.mxu0 0.0
  %68 = vmatpush2.msra.mxu0 0.0
  %69 = vmatprep.subr.mxu0 0.0
  %70 = vmatpush2.msra.mxu0 0.0
  %71 = vmatprep.subr.mxu0 0.0
  %72 = vmatpush2.msra.mxu0 0.0
  %73 = vmatprep.subr.mxu0 0.0
  %74 = vmatpush2.msra.mxu0 0.0
  %75 = vmatprep.subr.mxu0 0.0
  %76 = vmatpush2.msra.mxu0 0.0
  %77 = vmatprep.subr.mxu0 0.0
  %78 = vmatpush2.msra.mxu0 0.0
  %79 = vmatprep.subr.mxu0 0.0
  %80 = vmatpush2.msra.mxu0 0.0
  %81 = vmatprep.subr.mxu0 0.0
  %82 = vmatpush2.msra.mxu0 0.0
  %83 = vmatprep.subr.mxu0 0.0
  %84 = vmatpush2.msra.mxu0 0.0
  %85 = vmatprep.subr.mxu0 0.0
  %86 = vmatpush2.msra.mxu0 0.0
  %87 = vmatprep.subr.mxu0 0.0
  %88 = vmatpush2.msra.mxu0 0.0
  %89 = vmatprep.subr.mxu0 0.0
  %90 = vmatpush2.msra.mxu0 0.0
  %91 = vmatprep.subr.mxu0 0.0
  %92 = vmatpush2.msra.mxu0 0.0
  %93 = vmatprep.mubr.f32.mxu0 0.0
  %94 = vmatmul.mubr.f32.gmra.mxu0 %v27
  %v95 = vpop.f32.mrf.mxu0
  %v96 = vadd.f32 0.0, %v95
  %v97 = vpop.f32.mrf.mxu0
  %98 = vmatprep.mubr.f32.mxu0 0.0
  %99 = vmatmul.mubr.f32.gmra.mxu0 %v28
  %v100 = vpop.f32.mrf.mxu0
  %v101 = vadd.f32 0.0, %v100
  %v102 = vpop.f32.mrf.mxu0
  %103 = vdwg.mxu0
  %104 = vst [vmem:[%s2] sm:$0xff] %v96
  %105 = vst [vmem:[%s2 + $0x8] sm:$0xff] %v101
  // Predicated region
  $region10: #{_forward_impl.125} parent=0 // pred_check
    _
  $region11: #{_forward_impl.125} parent=0 // pred_check_branch
    %107 = sbr.rel (0) target = $region13
  $region12: #{_forward_impl.125} parent=0 // pred_region
    _
  $region13: #{_forward_impl.125} parent=0 // pred_fallthru
    _
  // Predicated region
  $region14: #{_forward_impl.125} parent=0 // pred_check
    _
  $region15: #{_forward_impl.125} parent=0 // pred_check_branch
    %109 = sbr.rel (0) target = $region17
  $region16: #{_forward_impl.125} parent=0 // pred_region
    _
  $region17: #{_forward_impl.125} parent=0 // pred_fallthru
    _

// kernel: _forward_impl.119
$region0: #{_forward_impl.119}
  #allocation0 [shape = 'u32[]', space=smem, size = 0x4, offset = 0x4, fixed_abs, tag = 'smem constant byte address 0x4 - core index']
  #allocation1 [shape = 'u32[144,128]{1,0:T(1,128)}', space=vmem, size = 0x12000, scoped, tag = 'internal scratch']
  %s0 = inlined_call_operand.vmem [shape: f32[9,16,128], index: 0, kind: input, shape index: {}]
  %s1 = inlined_call_operand.vmem [shape: f32[1,128], index: 1, kind: input, shape index: {}]
  %s2 = inlined_call_operand.vmem [shape: f32[16,128], index: 2, kind: output, shape index: {}]
  %s3 = sld [smem:[#allocation0]]
  $region18: #{_forward_impl.119} parent=0
    _
  %s5 = ssub.s32 1, %s3
  %s6 = scalar_select 0, %s5, %s3
  // Predicated region
  $region2: #{_forward_impl.119} parent=0 // pred_check
    _
  $region3: #{_forward_impl.119} parent=0 // pred_check_branch
    %8 = sbr.rel (0) target = $region5
  $region4: #{_forward_impl.119} parent=0 // pred_region
    _
  $region5: #{_forward_impl.119} parent=0 // pred_fallthru
    _
  // Predicated region
  $region6: #{_forward_impl.119} parent=0 // pred_check
    _
  $region7: #{_forward_impl.119} parent=0 // pred_check_branch
    %10 = sbr.rel (0) target = $region9
  $region8: #{_forward_impl.119} parent=0 // pred_region
    _
  $region9: #{_forward_impl.119} parent=0 // pred_fallthru
    _
  %v11 = vld [vmem:[%s0] sm:$0xff]
  %v12 = vld [vmem:[%s0 + $0x8] sm:$0xff]
  %s13 = scalar_lea.vmem %s0, 16
  %v14 = vld [vmem:[%s13] sm:$0xff]
  %v15 = vld [vmem:[%s13 + $0x8] sm:$0xff]
  %v16 = vadd.f32 %v11, %v14
  %v17 = vadd.f32 %v12, %v15
  %s18 = scalar_lea.vmem %s0, 32
  %v19 = vld [vmem:[%s18] sm:$0xff]
  %v20 = vld [vmem:[%s18 + $0x8] sm:$0xff]
  %v21 = vadd.f32 %v16, %v19
  %v22 = vadd.f32 %v17, %v20
  %s23 = scalar_lea.vmem %s0, 48
  %v24 = vld [vmem:[%s23] sm:$0xff]
  %v25 = vld [vmem:[%s23 + $0x8] sm:$0xff]
  %v26 = vadd.f32 %v21, %v24
  %v27 = vadd.f32 %v22, %v25
  %s28 = scalar_lea.vmem %s0, 64
  %v29 = vld [vmem:[%s28] sm:$0xff]
  %v30 = vld [vmem:[%s28 + $0x8] sm:$0xff]
  %v31 = vadd.f32 %v26, %v29
  %v32 = vadd.f32 %v27, %v30
  %s33 = scalar_lea.vmem %s0, 80
  %v34 = vld [vmem:[%s33] sm:$0xff]
  %v35 = vld [vmem:[%s33 + $0x8] sm:$0xff]
  %v36 = vadd.f32 %v31, %v34
  %v37 = vadd.f32 %v32, %v35
  %s38 = scalar_lea.vmem %s0, 96
  %v39 = vld [vmem:[%s38] sm:$0xff]
  %v40 = vld [vmem:[%s38 + $0x8] sm:$0xff]
  %v41 = vadd.f32 %v36, %v39
  %v42 = vadd.f32 %v37, %v40
  %s43 = scalar_lea.vmem %s0, 112
  %v44 = vld [vmem:[%s43] sm:$0xff]
  %v45 = vld [vmem:[%s43 + $0x8] sm:$0xff]
  %v46 = vadd.f32 %v41, %v44
  %v47 = vadd.f32 %v42, %v45
  %s48 = scalar_lea.vmem %s0, 128
  %v49 = vld [vmem:[%s48] sm:$0xff]
  %v50 = vld [vmem:[%s48 + $0x8] sm:$0xff]
  %v51 = vadd.f32 %v46, %v49
  %v52 = vadd.f32 %v47, %v50
  %v53 = vld [vmem:[%s1] sm:$0x1]
  %v55 = vlaneseq
  %v56 = vshrl.u32 %v55, 7
  %v57 = vsub.s32 0, %v56
  %v58 = vrot.slane %v53, %v57
  %v60 = vmul.f32 %v51, %v58
  %v61 = vmul.f32 %v52, %v58
  %v62 = vlaneseq
  %v63 = vand.u32 %v62, 127
  %vm64 = vcmp.lt.s32.totalorder %v63, 32
  %v65 = vsel %vm64, %v60, 0.0
  %v66 = vsel %vm64, %v61, 0.0
  %67 = vadd.xlane.f32.xlu0 %v65
  %v68 = vpop.xlane.xlu0 %67
  %69 = vadd.xlane.f32.xlu0 %v66
  %v70 = vpop.xlane.xlu0 %69
  %v71 = vmul.f32 %v68, 0.03125
  %v72 = vmul.f32 %v70, 0.03125
  %v73 = vsub.f32 %v60, %v71
  %v74 = vsub.f32 %v61, %v72
  %v75 = vsel %vm64, %v73, 0.0
  %v76 = vsel %vm64, %v74, 0.0
  %v77 = vmul.f32 %v75, %v75
  %v78 = vmul.f32 %v76, %v76
  %79 = vadd.xlane.f32.xlu0 %v77
  %v80 = vpop.xlane.xlu0 %79
  %81 = vadd.xlane.f32.xlu0 %v78
  %v82 = vpop.xlane.xlu0 %81
  %v83 = vmul.f32 %v80, 0.03125
  %v84 = vmul.f32 %v82, 0.03125
  %v85 = vadd.f32 %v83, 1e-05
  %v86 = vadd.f32 %v84, 1e-05
  %v87 = vrsqrt.pop %v85
  %v88 = vrsqrt.pop %v86
  %v89 = vmul.f32 %v73, %v87
  %v90 = vmul.f32 %v74, %v88
  %91 = vst [vmem:[%s2] sm:$0xff] %v89
  %92 = vst [vmem:[%s2 + $0x8] sm:$0xff] %v90
  // Predicated region
  $region10: #{_forward_impl.119} parent=0 // pred_check
    _
  $region11: #{_forward_impl.119} parent=0 // pred_check_branch
    %94 = sbr.rel (0) target = $region13
  $region12: #{_forward_impl.119} parent=0 // pred_region
    _
  $region13: #{_forward_impl.119} parent=0 // pred_fallthru
    _
  // Predicated region
  $region14: #{_forward_impl.119} parent=0 // pred_check
    _
  $region15: #{_forward_impl.119} parent=0 // pred_check_branch
    %96 = sbr.rel (0) target = $region17
  $region16: #{_forward_impl.119} parent=0 // pred_region
    _
  $region17: #{_forward_impl.119} parent=0 // pred_fallthru
    _

</llo_original>
